<compile_context>
chip_gen: v7x
topology: tpu7x:2x2x1
jax: 0.10.0
libtpu: 0.0.40
codegen_flags: <defaults>
</compile_context>

<pallas_src>
import math

import jax
import jax.numpy as jnp
from jax.experimental import pallas as pl
from jax.experimental.pallas import tpu as pltpu

# Fixed by the PyTorch module: image_shape = (1, 16, 80), Linear(32 * 2 * 10, 1).
IMG_C, IMG_H, IMG_W = 1, 16, 80
CH = 32
SLOPE = 0.2


# ----------------------------------------------------------------------------
# Fused Pallas kernel: conv1 -> conv2 -> conv3 -> fc, one batch element / step
# ----------------------------------------------------------------------------
def make_fused_kernel(H, W, C, slope=SLOPE):
    H1, W1 = H // 2, W // 2          # 8, 40   conv1 output
    H2, W2 = H1 // 2, W1 // 2        # 4, 20   conv2 output
    H3, W3 = H2 // 2, W2 // 2        # 2, 10   conv3 output
    WP2 = W1 // 2 + 1                # 21      col-phase width of conv2 input
    WP3 = W2 // 2 + 1                # 11      col-phase width of conv3 input

    def lrelu(v):
        return jnp.where(v >= 0.0, v, slope * v)

    def phase_selectors(w_in, w_ph):
        # 0/1 matrices mapping a row of width w_in to the even / odd column
        # phases (each of width w_ph) of the same row zero-padded by 1.
        j = jax.lax.broadcasted_iota(jnp.int32, (w_ph, w_in), 0)
        w = jax.lax.broadcasted_iota(jnp.int32, (w_ph, w_in), 1)
        sel_even = (w == 2 * j - 1).astype(jnp.float32)   # padded col 2j
        sel_odd = (w == 2 * j).astype(jnp.float32)        # padded col 2j + 1
        return sel_even, sel_odd

    def kernel(p_ref, w1_ref, b1_ref, w2_ref, b2_ref, w3_ref, b3_ref,
               wfc_ref, bfc_ref, out_ref,
               even2_ref, odd2_ref, even3_ref, odd3_ref):
        # Zero the phase scratches (only the padded border rows really need it,
        # every interior row is fully rewritten below).  ~70 KB total: cheap.
        even2_ref[...] = jnp.zeros_like(even2_ref)
        odd2_ref[...] = jnp.zeros_like(odd2_ref)
        even3_ref[...] = jnp.zeros_like(even3_ref)
        odd3_ref[...] = jnp.zeros_like(odd3_ref)

        se1, so1 = phase_selectors(W1, WP2)   # (21, 40)
        se2, so2 = phase_selectors(W2, WP3)   # (11, 20)

        # ---- conv1 + LeakyReLU: one MXU matmul over pre-built patches -------
        y1 = jnp.dot(p_ref[0], w1_ref[...],
                     preferred_element_type=jnp.float32)       # (H1*W1, C)
        y1 = lrelu(y1 + b1_ref[...])
        # Emit conv1 output directly as the column-parity phases of conv2's
        # zero-padded input (rows 1..H1 of the padded image).
        for h in range(H1):
            row = y1[h * W1:(h + 1) * W1, :]                   # (W1, C)
            even2_ref[h + 1] = jnp.dot(se1, row,
                                       preferred_element_type=jnp.float32)
            odd2_ref[h + 1] = jnp.dot(so1, row,
                                      preferred_element_type=jnp.float32)

        def taps_for(even_ref, odd_ref, r, wo):
            # kw = 0 -> padded col 2w ; kw = 1 -> 2w + 1 ; kw = 2 -> 2w + 2
            return [even_ref[r, 0:wo, :],
                    odd_ref[r, 0:wo, :],
                    even_ref[r, 1:wo + 1, :]]

        # ---- conv2 + LeakyReLU: one K = 9*C matmul per output row -----------
        for h in range(H2):
            patch = jnp.concatenate(
                [t for kh in range(3)
                 for t in taps_for(even2_ref, odd2_ref, 2 * h + kh, W2)],
                axis=-1)                                       # (W2, 9*C)
            row = lrelu(jnp.dot(patch, w2_ref[...],
                                preferred_element_type=jnp.float32)
                        + b2_ref[...])                         # (W2, C)
            even3_ref[h + 1] = jnp.dot(se2, row,
                                       preferred_element_type=jnp.float32)
            odd3_ref[h + 1] = jnp.dot(so2, row,
                                      preferred_element_type=jnp.float32)

        # ---- conv3 + LeakyReLU + Linear(640, 1) folded as multiply+reduce ---
        fc_acc = jnp.zeros((1, C), dtype=jnp.float32)
        for h in range(H3):
            patch = jnp.concatenate(
                [t for kh in range(3)
                 for t in taps_for(even3_ref, odd3_ref, 2 * h + kh, W3)],
                axis=-1)                                       # (W3, 9*C)
            row = lrelu(jnp.dot(patch, w3_ref[...],
                                preferred_element_type=jnp.float32)
                        + b3_ref[...])                         # (W3, C)
            fc_acc = fc_acc + jnp.sum(row * wfc_ref[h * W3:(h + 1) * W3, :],
                                      axis=0, keepdims=True)   # (1, C)
        out = jnp.sum(fc_acc, axis=1, keepdims=True) + bfc_ref[...]   # (1, 1)
        out_ref[0] = out.astype(out_ref.dtype)

    return kernel


# ----------------------------------------------------------------------------
# One-time parameter repack (hoisted out of the forward pass)
# ----------------------------------------------------------------------------
def prepare_params(params):
    (w1, b1), (w2, b2), (w3, b3) = params["convs"]
    C = w1.shape[-1]
    H3, W3 = IMG_H // 8, IMG_W // 8
    return {
        "w1": w1.reshape(-1, C),                 # (9*Cin, C) = (9, 32)
        "b1": b1.reshape(1, C),
        "w2": w2.reshape(-1, C),                 # (288, 32)
        "b2": b2.reshape(1, C),
        "w3": w3.reshape(-1, C),                 # (288, 32)
        "b3": b3.reshape(1, C),
        # PyTorch fc weight indexes the NCHW flatten (c, h, w); the kernel
        # consumes the conv3 activation as (h*w, c).
        "wfc": params["fc_w"].reshape(C, H3, W3)
                              .transpose(1, 2, 0).reshape(H3 * W3, C),
        "bfc": params["fc_b"].reshape(1, 1),
    }


# ----------------------------------------------------------------------------
# Forward wrapper (glue: conv1 im2col + the single pallas_call)
# ----------------------------------------------------------------------------
def discriminator_forward(x_nchw, prep):
    """Pallas forward. x_nchw: (N, 1, 16, 80), PyTorch convention."""
    N = x_nchw.shape[0]
    C = prep["w1"].shape[-1]
    H, W = IMG_H, IMG_W
    H1, W1 = H // 2, W // 2
    H2, W2 = H1 // 2, W1 // 2
    H3, W3 = H2 // 2, W2 // 2
    WP2, WP3 = W1 // 2 + 1, W2 // 2 + 1

    # conv1 im2col patches in plain JAX (tiny, Cin == 1): (N, H1*W1, 9).
    xp = jnp.pad(x_nchw[:, 0], ((0, 0), (1, 1), (1, 1)))
    patches = jnp.stack(
        [xp[:, kh:kh + H:2, kw:kw + W:2] for kh in range(3) for kw in range(3)],
        axis=-1).reshape(N, H1 * W1, 9)

    def full(shape):
        return pl.BlockSpec(shape, lambda n: (0,) * len(shape))

    out = pl.pallas_call(
        make_fused_kernel(H, W, C),
        out_shape=jax.ShapeDtypeStruct((N, 1, 1), jnp.float32),
        grid=(N,),
        in_specs=[
            pl.BlockSpec((1, H1 * W1, 9), lambda n: (n, 0, 0)),
            full((9, C)), full((1, C)),
            full((9 * C, C)), full((1, C)),
            full((9 * C, C)), full((1, C)),
            full((H3 * W3, C)), full((1, 1)),
        ],
        out_specs=pl.BlockSpec((1, 1, 1), lambda n: (n, 0, 0)),
        scratch_shapes=[
            pltpu.VMEM((H1 + 2, WP2, C), jnp.float32),   # conv2 input, even cols
            pltpu.VMEM((H1 + 2, WP2, C), jnp.float32),   # conv2 input, odd cols
            pltpu.VMEM((H2 + 2, WP3, C), jnp.float32),   # conv3 input, even cols
            pltpu.VMEM((H2 + 2, WP3, C), jnp.float32),   # conv3 input, odd cols
        ],
        compiler_params=pltpu.CompilerParams(
            dimension_semantics=("parallel",)),
    )(patches, prep["w1"], prep["b1"], prep["w2"], prep["b2"],
      prep["w3"], prep["b3"], prep["wfc"], prep["bfc"])
    return out.reshape(N, 1)


# ----------------------------------------------------------------------------
# Pure-JAX reference (for correctness check)
# ----------------------------------------------------------------------------
def reference_forward(x_nchw, params):
    x = jnp.transpose(x_nchw, (0, 2, 3, 1))
    for w, b in params["convs"]:
        x = jax.lax.conv_general_dilated(
            x, w, window_strides=(2, 2), padding=((1, 1), (1, 1)),
            dimension_numbers=("NHWC", "HWIO", "NHWC"),
            precision=jax.lax.Precision.HIGHEST)
        x = x + b
        x = jnp.where(x >= 0.0, x, SLOPE * x)
    N = x.shape[0]
    x_pt = jnp.transpose(x, (0, 3, 1, 2)).reshape(N, -1)  # PyTorch NCHW flatten
    return (jnp.dot(x_pt, params["fc_w"].T,
                    precision=jax.lax.Precision.HIGHEST)
            + params["fc_b"])


# ----------------------------------------------------------------------------
# Deterministic parameter construction + run
# ----------------------------------------------------------------------------
def make_params(key, c_in):
    ks = jax.random.split(key, 8)
    chans = [(c_in, CH), (CH, CH), (CH, CH)]
    convs = []
    for i, (ci, co) in enumerate(chans):
        w = jax.random.normal(ks[2 * i], (3, 3, ci, co), jnp.float32) \
            * (1.0 / math.sqrt(9.0 * ci))
        b = 0.01 * jax.random.normal(ks[2 * i + 1], (co,), jnp.float32)
        convs.append((w, b))
    fc_in = CH * (IMG_H // 8) * (IMG_W // 8)
    fc_w = jax.random.normal(ks[6], (1, fc_in), jnp.float32) \
        * (1.0 / math.sqrt(fc_in))
    fc_b = 0.01 * jax.random.normal(ks[7], (1,), jnp.float32)
    return {"convs": convs, "fc_w": fc_w, "fc_b": fc_b}


if __name__ == "__main__":
    batch = 2
    root = jax.random.PRNGKey(0)
    k_x, k_p = jax.random.split(root)
    params = make_params(k_p, IMG_C)
    x = jax.random.normal(k_x, (batch, IMG_C, IMG_H, IMG_W), jnp.float32)

    prep = prepare_params(params)          # one-time static weight repack
    fwd = jax.jit(discriminator_forward)

    out = jax.block_until_ready(fwd(x, prep))
    ref = jax.block_until_ready(reference_forward(x, params))

    assert out.shape == (batch, 1), out.shape
    # Tolerance covers the MXU's default-precision f32 matmul path.
    assert jnp.allclose(out, ref, rtol=1e-2, atol=1e-2), (out, ref)

    print("KERNEL_OK")
</pallas_src>

<mosaic_0001>
module attributes {stable_mosaic.version = 11 : i64} {
  func.func @kernel(%arg0: i32, %arg1: memref<1x320x9xf32, #tpu.memory_space<vmem>>, %arg2: memref<9x32xf32, #tpu.memory_space<vmem>>, %arg3: memref<1x32xf32, #tpu.memory_space<vmem>>, %arg4: memref<288x32xf32, #tpu.memory_space<vmem>>, %arg5: memref<1x32xf32, #tpu.memory_space<vmem>>, %arg6: memref<288x32xf32, #tpu.memory_space<vmem>>, %arg7: memref<1x32xf32, #tpu.memory_space<vmem>>, %arg8: memref<20x32xf32, #tpu.memory_space<vmem>>, %arg9: memref<1x1xf32, #tpu.memory_space<vmem>>, %arg10: memref<1x1x1xf32, #tpu.memory_space<vmem>>, %arg11: memref<10x21x32xf32, #tpu.memory_space<vmem>>, %arg12: memref<10x21x32xf32, #tpu.memory_space<vmem>>, %arg13: memref<6x11x32xf32, #tpu.memory_space<vmem>>, %arg14: memref<6x11x32xf32, #tpu.memory_space<vmem>>) attributes {dimension_semantics = [#tpu.dimension_semantics<parallel>], iteration_bounds = array<i64: 2>, scalar_prefetch = 0 : i64, scratch_operands = 4 : i64, tpu.core_type = #tpu.core_type<tc>, window_params = [{transform_indices = @transform_0, window_bounds = array<i64: 1, 320, 9>}, {pipeline_mode = #tpu.pipeline_mode<synchronous>, transform_indices = @transform_1, window_bounds = array<i64: 9, 32>}, {pipeline_mode = #tpu.pipeline_mode<synchronous>, transform_indices = @transform_2, window_bounds = array<i64: 1, 32>}, {pipeline_mode = #tpu.pipeline_mode<synchronous>, transform_indices = @transform_3, window_bounds = array<i64: 288, 32>}, {pipeline_mode = #tpu.pipeline_mode<synchronous>, transform_indices = @transform_4, window_bounds = array<i64: 1, 32>}, {pipeline_mode = #tpu.pipeline_mode<synchronous>, transform_indices = @transform_5, window_bounds = array<i64: 288, 32>}, {pipeline_mode = #tpu.pipeline_mode<synchronous>, transform_indices = @transform_6, window_bounds = array<i64: 1, 32>}, {pipeline_mode = #tpu.pipeline_mode<synchronous>, transform_indices = @transform_7, window_bounds = array<i64: 20, 32>}, {pipeline_mode = #tpu.pipeline_mode<synchronous>, transform_indices = @transform_8, window_bounds = array<i64: 1, 1>}, {transform_indices = @transform_9, window_bounds = array<i64: 1, 1, 1>}]} {
    %cst = arith.constant 0.000000e+00 : f32
    %0 = vector.broadcast %cst : f32 to vector<10x21x32xf32>
    %c0 = arith.constant 0 : index
    %c0_0 = arith.constant 0 : index
    %c0_1 = arith.constant 0 : index
    %1 = vector.load %arg11[%c0, %c0_0, %c0_1] : memref<10x21x32xf32, #tpu.memory_space<vmem>>, vector<10x21x32xf32>
    tpu.vector_store %arg11[%c0, %c0_0, %c0_1], %0 {strides = array<i32>} : memref<10x21x32xf32, #tpu.memory_space<vmem>>, vector<10x21x32xf32>,
    %cst_2 = arith.constant 0.000000e+00 : f32
    %2 = vector.broadcast %cst_2 : f32 to vector<10x21x32xf32>
    %c0_3 = arith.constant 0 : index
    %c0_4 = arith.constant 0 : index
    %c0_5 = arith.constant 0 : index
    %3 = vector.load %arg12[%c0_3, %c0_4, %c0_5] : memref<10x21x32xf32, #tpu.memory_space<vmem>>, vector<10x21x32xf32>
    tpu.vector_store %arg12[%c0_3, %c0_4, %c0_5], %2 {strides = array<i32>} : memref<10x21x32xf32, #tpu.memory_space<vmem>>, vector<10x21x32xf32>,
    %cst_6 = arith.constant 0.000000e+00 : f32
    %4 = vector.broadcast %cst_6 : f32 to vector<6x11x32xf32>
    %c0_7 = arith.constant 0 : index
    %c0_8 = arith.constant 0 : index
    %c0_9 = arith.constant 0 : index
    %5 = vector.load %arg13[%c0_7, %c0_8, %c0_9] : memref<6x11x32xf32, #tpu.memory_space<vmem>>, vector<6x11x32xf32>
    tpu.vector_store %arg13[%c0_7, %c0_8, %c0_9], %4 {strides = array<i32>} : memref<6x11x32xf32, #tpu.memory_space<vmem>>, vector<6x11x32xf32>,
    %cst_10 = arith.constant 0.000000e+00 : f32
    %6 = vector.broadcast %cst_10 : f32 to vector<6x11x32xf32>
    %c0_11 = arith.constant 0 : index
    %c0_12 = arith.constant 0 : index
    %c0_13 = arith.constant 0 : index
    %7 = vector.load %arg14[%c0_11, %c0_12, %c0_13] : memref<6x11x32xf32, #tpu.memory_space<vmem>>, vector<6x11x32xf32>
    tpu.vector_store %arg14[%c0_11, %c0_12, %c0_13], %6 {strides = array<i32>} : memref<6x11x32xf32, #tpu.memory_space<vmem>>, vector<6x11x32xf32>,
    %8 = tpu.iota {dimensions = array<i32: 0>} : vector<21x40xi32>
    %9 = tpu.iota {dimensions = array<i32: 1>} : vector<21x40xi32>
    %c2_i32 = arith.constant 2 : i32
    %10 = vector.broadcast %c2_i32 : i32 to vector<21x40xi32>
    %11 = arith.muli %10, %8 : vector<21x40xi32>
    %c1_i32 = arith.constant 1 : i32
    %12 = vector.broadcast %c1_i32 : i32 to vector<21x40xi32>
    %13 = arith.subi %11, %12 : vector<21x40xi32>
    %14 = arith.cmpi eq, %9, %13 : vector<21x40xi32>
    %15 = arith.extui %14 : vector<21x40xi1> to vector<21x40xi32>
    %16 = arith.sitofp %15 : vector<21x40xi32> to vector<21x40xf32>
    %c2_i32_14 = arith.constant 2 : i32
    %17 = vector.broadcast %c2_i32_14 : i32 to vector<21x40xi32>
    %18 = arith.muli %17, %8 : vector<21x40xi32>
    %19 = arith.cmpi eq, %9, %18 : vector<21x40xi32>
    %20 = arith.extui %19 : vector<21x40xi1> to vector<21x40xi32>
    %21 = arith.sitofp %20 : vector<21x40xi32> to vector<21x40xf32>
    %22 = tpu.iota {dimensions = array<i32: 0>} : vector<11x20xi32>
    %23 = tpu.iota {dimensions = array<i32: 1>} : vector<11x20xi32>
    %c2_i32_15 = arith.constant 2 : i32
    %24 = vector.broadcast %c2_i32_15 : i32 to vector<11x20xi32>
    %25 = arith.muli %24, %22 : vector<11x20xi32>
    %c1_i32_16 = arith.constant 1 : i32
    %26 = vector.broadcast %c1_i32_16 : i32 to vector<11x20xi32>
    %27 = arith.subi %25, %26 : vector<11x20xi32>
    %28 = arith.cmpi eq, %23, %27 : vector<11x20xi32>
    %29 = arith.extui %28 : vector<11x20xi1> to vector<11x20xi32>
    %30 = arith.sitofp %29 : vector<11x20xi32> to vector<11x20xf32>
    %c2_i32_17 = arith.constant 2 : i32
    %31 = vector.broadcast %c2_i32_17 : i32 to vector<11x20xi32>
    %32 = arith.muli %31, %22 : vector<11x20xi32>
    %33 = arith.cmpi eq, %23, %32 : vector<11x20xi32>
    %34 = arith.extui %33 : vector<11x20xi1> to vector<11x20xi32>
    %35 = arith.sitofp %34 : vector<11x20xi32> to vector<11x20xf32>
    %c0_18 = arith.constant 0 : index
    %c0_19 = arith.constant 0 : index
    %c0_20 = arith.constant 0 : index
    %36 = vector.load %arg1[%c0_18, %c0_19, %c0_20] : memref<1x320x9xf32, #tpu.memory_space<vmem>>, vector<1x320x9xf32>
    %37 = vector.shape_cast %36 : vector<1x320x9xf32> to vector<320x9xf32>
    %c0_21 = arith.constant 0 : index
    %c0_22 = arith.constant 0 : index
    %38 = vector.load %arg2[%c0_21, %c0_22] : memref<9x32xf32, #tpu.memory_space<vmem>>, vector<9x32xf32>
    %cst_23 = arith.constant dense<0.000000e+00> : vector<320x32xf32>
    %39 = tpu.matmul %37, %38, %cst_23 {dimension_numbers = #tpu.dot_dimension_numbers<[1], [0], [0], [1], [0, 0, 1, 1], [], []>} : vector<320x9xf32>, vector<9x32xf32>, vector<320x32xf32> -> vector<320x32xf32>
    %c0_24 = arith.constant 0 : index
    %c0_25 = arith.constant 0 : index
    %40 = vector.load %arg3[%c0_24, %c0_25] : memref<1x32xf32, #tpu.memory_space<vmem>>, vector<1x32xf32>
    %41 = vector.broadcast %40 : vector<1x32xf32> to vector<320x32xf32>
    %42 = arith.addf %39, %41 : vector<320x32xf32>
    %cst_26 = arith.constant 0.000000e+00 : f32
    %43 = vector.broadcast %cst_26 : f32 to vector<320x32xf32>
    %44 = arith.cmpf oge, %42, %43 : vector<320x32xf32>
    %cst_27 = arith.constant 2.000000e-01 : f32
    %45 = vector.broadcast %cst_27 : f32 to vector<320x32xf32>
    %46 = arith.mulf %45, %42 : vector<320x32xf32>
    %47 = arith.select %44, %42, %46 : vector<320x32xi1>, vector<320x32xf32>
    %48 = vector.extract_strided_slice %47 {offsets = [0, 0], sizes = [40, 32], strides = [1, 1]} : vector<320x32xf32> to vector<40x32xf32>
    %cst_28 = arith.constant dense<0.000000e+00> : vector<21x32xf32>
    %49 = tpu.matmul %16, %48, %cst_28 {dimension_numbers = #tpu.dot_dimension_numbers<[1], [0], [0], [1], [0, 0, 1, 1], [], []>} : vector<21x40xf32>, vector<40x32xf32>, vector<21x32xf32> -> vector<21x32xf32>
    %c1 = arith.constant 1 : index
    %c0_29 = arith.constant 0 : index
    %c0_30 = arith.constant 0 : index
    %50 = vector.load %arg11[%c1, %c0_29, %c0_30] : memref<10x21x32xf32, #tpu.memory_space<vmem>>, vector<1x21x32xf32>
    %51 = vector.shape_cast %50 : vector<1x21x32xf32> to vector<21x32xf32>
    %52 = vector.shape_cast %49 : vector<21x32xf32> to vector<1x21x32xf32>
    tpu.vector_store %arg11[%c1, %c0_29, %c0_30], %52 {strides = array<i32>} : memref<10x21x32xf32, #tpu.memory_space<vmem>>, vector<1x21x32xf32>,
    %cst_31 = arith.constant dense<0.000000e+00> : vector<21x32xf32>
    %53 = tpu.matmul %21, %48, %cst_31 {dimension_numbers = #tpu.dot_dimension_numbers<[1], [0], [0], [1], [0, 0, 1, 1], [], []>} : vector<21x40xf32>, vector<40x32xf32>, vector<21x32xf32> -> vector<21x32xf32>
    %c1_32 = arith.constant 1 : index
    %c0_33 = arith.constant 0 : index
    %c0_34 = arith.constant 0 : index
    %54 = vector.load %arg12[%c1_32, %c0_33, %c0_34] : memref<10x21x32xf32, #tpu.memory_space<vmem>>, vector<1x21x32xf32>
    %55 = vector.shape_cast %54 : vector<1x21x32xf32> to vector<21x32xf32>
    %56 = vector.shape_cast %53 : vector<21x32xf32> to vector<1x21x32xf32>
    tpu.vector_store %arg12[%c1_32, %c0_33, %c0_34], %56 {strides = array<i32>} : memref<10x21x32xf32, #tpu.memory_space<vmem>>, vector<1x21x32xf32>,
    %57 = vector.extract_strided_slice %47 {offsets = [40, 0], sizes = [40, 32], strides = [1, 1]} : vector<320x32xf32> to vector<40x32xf32>
    %cst_35 = arith.constant dense<0.000000e+00> : vector<21x32xf32>
    %58 = tpu.matmul %16, %57, %cst_35 {dimension_numbers = #tpu.dot_dimension_numbers<[1], [0], [0], [1], [0, 0, 1, 1], [], []>} : vector<21x40xf32>, vector<40x32xf32>, vector<21x32xf32> -> vector<21x32xf32>
    %c2 = arith.constant 2 : index
    %c0_36 = arith.constant 0 : index
    %c0_37 = arith.constant 0 : index
    %59 = vector.load %arg11[%c2, %c0_36, %c0_37] : memref<10x21x32xf32, #tpu.memory_space<vmem>>, vector<1x21x32xf32>
    %60 = vector.shape_cast %59 : vector<1x21x32xf32> to vector<21x32xf32>
    %61 = vector.shape_cast %58 : vector<21x32xf32> to vector<1x21x32xf32>
    tpu.vector_store %arg11[%c2, %c0_36, %c0_37], %61 {strides = array<i32>} : memref<10x21x32xf32, #tpu.memory_space<vmem>>, vector<1x21x32xf32>,
    %cst_38 = arith.constant dense<0.000000e+00> : vector<21x32xf32>
    %62 = tpu.matmul %21, %57, %cst_38 {dimension_numbers = #tpu.dot_dimension_numbers<[1], [0], [0], [1], [0, 0, 1, 1], [], []>} : vector<21x40xf32>, vector<40x32xf32>, vector<21x32xf32> -> vector<21x32xf32>
    %c2_39 = arith.constant 2 : index
    %c0_40 = arith.constant 0 : index
    %c0_41 = arith.constant 0 : index
    %63 = vector.load %arg12[%c2_39, %c0_40, %c0_41] : memref<10x21x32xf32, #tpu.memory_space<vmem>>, vector<1x21x32xf32>
    %64 = vector.shape_cast %63 : vector<1x21x32xf32> to vector<21x32xf32>
    %65 = vector.shape_cast %62 : vector<21x32xf32> to vector<1x21x32xf32>
    tpu.vector_store %arg12[%c2_39, %c0_40, %c0_41], %65 {strides = array<i32>} : memref<10x21x32xf32, #tpu.memory_space<vmem>>, vector<1x21x32xf32>,
    %66 = vector.extract_strided_slice %47 {offsets = [80, 0], sizes = [40, 32], strides = [1, 1]} : vector<320x32xf32> to vector<40x32xf32>
    %cst_42 = arith.constant dense<0.000000e+00> : vector<21x32xf32>
    %67 = tpu.matmul %16, %66, %cst_42 {dimension_numbers = #tpu.dot_dimension_numbers<[1], [0], [0], [1], [0, 0, 1, 1], [], []>} : vector<21x40xf32>, vector<40x32xf32>, vector<21x32xf32> -> vector<21x32xf32>
    %c3 = arith.constant 3 : index
    %c0_43 = arith.constant 0 : index
    %c0_44 = arith.constant 0 : index
    %68 = vector.load %arg11[%c3, %c0_43, %c0_44] : memref<10x21x32xf32, #tpu.memory_space<vmem>>, vector<1x21x32xf32>
    %69 = vector.shape_cast %68 : vector<1x21x32xf32> to vector<21x32xf32>
    %70 = vector.shape_cast %67 : vector<21x32xf32> to vector<1x21x32xf32>
    tpu.vector_store %arg11[%c3, %c0_43, %c0_44], %70 {strides = array<i32>} : memref<10x21x32xf32, #tpu.memory_space<vmem>>, vector<1x21x32xf32>,
    %cst_45 = arith.constant dense<0.000000e+00> : vector<21x32xf32>
    %71 = tpu.matmul %21, %66, %cst_45 {dimension_numbers = #tpu.dot_dimension_numbers<[1], [0], [0], [1], [0, 0, 1, 1], [], []>} : vector<21x40xf32>, vector<40x32xf32>, vector<21x32xf32> -> vector<21x32xf32>
    %c3_46 = arith.constant 3 : index
    %c0_47 = arith.constant 0 : index
    %c0_48 = arith.constant 0 : index
    %72 = vector.load %arg12[%c3_46, %c0_47, %c0_48] : memref<10x21x32xf32, #tpu.memory_space<vmem>>, vector<1x21x32xf32>
    %73 = vector.shape_cast %72 : vector<1x21x32xf32> to vector<21x32xf32>
    %74 = vector.shape_cast %71 : vector<21x32xf32> to vector<1x21x32xf32>
    tpu.vector_store %arg12[%c3_46, %c0_47, %c0_48], %74 {strides = array<i32>} : memref<10x21x32xf32, #tpu.memory_space<vmem>>, vector<1x21x32xf32>,
    %75 = vector.extract_strided_slice %47 {offsets = [120, 0], sizes = [40, 32], strides = [1, 1]} : vector<320x32xf32> to vector<40x32xf32>
    %cst_49 = arith.constant dense<0.000000e+00> : vector<21x32xf32>
    %76 = tpu.matmul %16, %75, %cst_49 {dimension_numbers = #tpu.dot_dimension_numbers<[1], [0], [0], [1], [0, 0, 1, 1], [], []>} : vector<21x40xf32>, vector<40x32xf32>, vector<21x32xf32> -> vector<21x32xf32>
    %c4 = arith.constant 4 : index
    %c0_50 = arith.constant 0 : index
    %c0_51 = arith.constant 0 : index
    %77 = vector.load %arg11[%c4, %c0_50, %c0_51] : memref<10x21x32xf32, #tpu.memory_space<vmem>>, vector<1x21x32xf32>
    %78 = vector.shape_cast %77 : vector<1x21x32xf32> to vector<21x32xf32>
    %79 = vector.shape_cast %76 : vector<21x32xf32> to vector<1x21x32xf32>
    tpu.vector_store %arg11[%c4, %c0_50, %c0_51], %79 {strides = array<i32>} : memref<10x21x32xf32, #tpu.memory_space<vmem>>, vector<1x21x32xf32>,
    %cst_52 = arith.constant dense<0.000000e+00> : vector<21x32xf32>
    %80 = tpu.matmul %21, %75, %cst_52 {dimension_numbers = #tpu.dot_dimension_numbers<[1], [0], [0], [1], [0, 0, 1, 1], [], []>} : vector<21x40xf32>, vector<40x32xf32>, vector<21x32xf32> -> vector<21x32xf32>
    %c4_53 = arith.constant 4 : index
    %c0_54 = arith.constant 0 : index
    %c0_55 = arith.constant 0 : index
    %81 = vector.load %arg12[%c4_53, %c0_54, %c0_55] : memref<10x21x32xf32, #tpu.memory_space<vmem>>, vector<1x21x32xf32>
    %82 = vector.shape_cast %81 : vector<1x21x32xf32> to vector<21x32xf32>
    %83 = vector.shape_cast %80 : vector<21x32xf32> to vector<1x21x32xf32>
    tpu.vector_store %arg12[%c4_53, %c0_54, %c0_55], %83 {strides = array<i32>} : memref<10x21x32xf32, #tpu.memory_space<vmem>>, vector<1x21x32xf32>,
    %84 = vector.extract_strided_slice %47 {offsets = [160, 0], sizes = [40, 32], strides = [1, 1]} : vector<320x32xf32> to vector<40x32xf32>
    %cst_56 = arith.constant dense<0.000000e+00> : vector<21x32xf32>
    %85 = tpu.matmul %16, %84, %cst_56 {dimension_numbers = #tpu.dot_dimension_numbers<[1], [0], [0], [1], [0, 0, 1, 1], [], []>} : vector<21x40xf32>, vector<40x32xf32>, vector<21x32xf32> -> vector<21x32xf32>
    %c5 = arith.constant 5 : index
    %c0_57 = arith.constant 0 : index
    %c0_58 = arith.constant 0 : index
    %86 = vector.load %arg11[%c5, %c0_57, %c0_58] : memref<10x21x32xf32, #tpu.memory_space<vmem>>, vector<1x21x32xf32>
    %87 = vector.shape_cast %86 : vector<1x21x32xf32> to vector<21x32xf32>
    %88 = vector.shape_cast %85 : vector<21x32xf32> to vector<1x21x32xf32>
    tpu.vector_store %arg11[%c5, %c0_57, %c0_58], %88 {strides = array<i32>} : memref<10x21x32xf32, #tpu.memory_space<vmem>>, vector<1x21x32xf32>,
    %cst_59 = arith.constant dense<0.000000e+00> : vector<21x32xf32>
    %89 = tpu.matmul %21, %84, %cst_59 {dimension_numbers = #tpu.dot_dimension_numbers<[1], [0], [0], [1], [0, 0, 1, 1], [], []>} : vector<21x40xf32>, vector<40x32xf32>, vector<21x32xf32> -> vector<21x32xf32>
    %c5_60 = arith.constant 5 : index
    %c0_61 = arith.constant 0 : index
    %c0_62 = arith.constant 0 : index
    %90 = vector.load %arg12[%c5_60, %c0_61, %c0_62] : memref<10x21x32xf32, #tpu.memory_space<vmem>>, vector<1x21x32xf32>
    %91 = vector.shape_cast %90 : vector<1x21x32xf32> to vector<21x32xf32>
    %92 = vector.shape_cast %89 : vector<21x32xf32> to vector<1x21x32xf32>
    tpu.vector_store %arg12[%c5_60, %c0_61, %c0_62], %92 {strides = array<i32>} : memref<10x21x32xf32, #tpu.memory_space<vmem>>, vector<1x21x32xf32>,
    %93 = vector.extract_strided_slice %47 {offsets = [200, 0], sizes = [40, 32], strides = [1, 1]} : vector<320x32xf32> to vector<40x32xf32>
    %cst_63 = arith.constant dense<0.000000e+00> : vector<21x32xf32>
    %94 = tpu.matmul %16, %93, %cst_63 {dimension_numbers = #tpu.dot_dimension_numbers<[1], [0], [0], [1], [0, 0, 1, 1], [], []>} : vector<21x40xf32>, vector<40x32xf32>, vector<21x32xf32> -> vector<21x32xf32>
    %c6 = arith.constant 6 : index
    %c0_64 = arith.constant 0 : index
    %c0_65 = arith.constant 0 : index
    %95 = vector.load %arg11[%c6, %c0_64, %c0_65] : memref<10x21x32xf32, #tpu.memory_space<vmem>>, vector<1x21x32xf32>
    %96 = vector.shape_cast %95 : vector<1x21x32xf32> to vector<21x32xf32>
    %97 = vector.shape_cast %94 : vector<21x32xf32> to vector<1x21x32xf32>
    tpu.vector_store %arg11[%c6, %c0_64, %c0_65], %97 {strides = array<i32>} : memref<10x21x32xf32, #tpu.memory_space<vmem>>, vector<1x21x32xf32>,
    %cst_66 = arith.constant dense<0.000000e+00> : vector<21x32xf32>
    %98 = tpu.matmul %21, %93, %cst_66 {dimension_numbers = #tpu.dot_dimension_numbers<[1], [0], [0], [1], [0, 0, 1, 1], [], []>} : vector<21x40xf32>, vector<40x32xf32>, vector<21x32xf32> -> vector<21x32xf32>
    %c6_67 = arith.constant 6 : index
    %c0_68 = arith.constant 0 : index
    %c0_69 = arith.constant 0 : index
    %99 = vector.load %arg12[%c6_67, %c0_68, %c0_69] : memref<10x21x32xf32, #tpu.memory_space<vmem>>, vector<1x21x32xf32>
    %100 = vector.shape_cast %99 : vector<1x21x32xf32> to vector<21x32xf32>
    %101 = vector.shape_cast %98 : vector<21x32xf32> to vector<1x21x32xf32>
    tpu.vector_store %arg12[%c6_67, %c0_68, %c0_69], %101 {strides = array<i32>} : memref<10x21x32xf32, #tpu.memory_space<vmem>>, vector<1x21x32xf32>,
    %102 = vector.extract_strided_slice %47 {offsets = [240, 0], sizes = [40, 32], strides = [1, 1]} : vector<320x32xf32> to vector<40x32xf32>
    %cst_70 = arith.constant dense<0.000000e+00> : vector<21x32xf32>
    %103 = tpu.matmul %16, %102, %cst_70 {dimension_numbers = #tpu.dot_dimension_numbers<[1], [0], [0], [1], [0, 0, 1, 1], [], []>} : vector<21x40xf32>, vector<40x32xf32>, vector<21x32xf32> -> vector<21x32xf32>
    %c7 = arith.constant 7 : index
    %c0_71 = arith.constant 0 : index
    %c0_72 = arith.constant 0 : index
    %104 = vector.load %arg11[%c7, %c0_71, %c0_72] : memref<10x21x32xf32, #tpu.memory_space<vmem>>, vector<1x21x32xf32>
    %105 = vector.shape_cast %104 : vector<1x21x32xf32> to vector<21x32xf32>
    %106 = vector.shape_cast %103 : vector<21x32xf32> to vector<1x21x32xf32>
    tpu.vector_store %arg11[%c7, %c0_71, %c0_72], %106 {strides = array<i32>} : memref<10x21x32xf32, #tpu.memory_space<vmem>>, vector<1x21x32xf32>,
    %cst_73 = arith.constant dense<0.000000e+00> : vector<21x32xf32>
    %107 = tpu.matmul %21, %102, %cst_73 {dimension_numbers = #tpu.dot_dimension_numbers<[1], [0], [0], [1], [0, 0, 1, 1], [], []>} : vector<21x40xf32>, vector<40x32xf32>, vector<21x32xf32> -> vector<21x32xf32>
    %c7_74 = arith.constant 7 : index
    %c0_75 = arith.constant 0 : index
    %c0_76 = arith.constant 0 : index
    %108 = vector.load %arg12[%c7_74, %c0_75, %c0_76] : memref<10x21x32xf32, #tpu.memory_space<vmem>>, vector<1x21x32xf32>
    %109 = vector.shape_cast %108 : vector<1x21x32xf32> to vector<21x32xf32>
    %110 = vector.shape_cast %107 : vector<21x32xf32> to vector<1x21x32xf32>
    tpu.vector_store %arg12[%c7_74, %c0_75, %c0_76], %110 {strides = array<i32>} : memref<10x21x32xf32, #tpu.memory_space<vmem>>, vector<1x21x32xf32>,
    %111 = vector.extract_strided_slice %47 {offsets = [280, 0], sizes = [40, 32], strides = [1, 1]} : vector<320x32xf32> to vector<40x32xf32>
    %cst_77 = arith.constant dense<0.000000e+00> : vector<21x32xf32>
    %112 = tpu.matmul %16, %111, %cst_77 {dimension_numbers = #tpu.dot_dimension_numbers<[1], [0], [0], [1], [0, 0, 1, 1], [], []>} : vector<21x40xf32>, vector<40x32xf32>, vector<21x32xf32> -> vector<21x32xf32>
    %c8 = arith.constant 8 : index
    %c0_78 = arith.constant 0 : index
    %c0_79 = arith.constant 0 : index
    %113 = vector.load %arg11[%c8, %c0_78, %c0_79] : memref<10x21x32xf32, #tpu.memory_space<vmem>>, vector<1x21x32xf32>
    %114 = vector.shape_cast %113 : vector<1x21x32xf32> to vector<21x32xf32>
    %115 = vector.shape_cast %112 : vector<21x32xf32> to vector<1x21x32xf32>
    tpu.vector_store %arg11[%c8, %c0_78, %c0_79], %115 {strides = array<i32>} : memref<10x21x32xf32, #tpu.memory_space<vmem>>, vector<1x21x32xf32>,
    %cst_80 = arith.constant dense<0.000000e+00> : vector<21x32xf32>
    %116 = tpu.matmul %21, %111, %cst_80 {dimension_numbers = #tpu.dot_dimension_numbers<[1], [0], [0], [1], [0, 0, 1, 1], [], []>} : vector<21x40xf32>, vector<40x32xf32>, vector<21x32xf32> -> vector<21x32xf32>
    %c8_81 = arith.constant 8 : index
    %c0_82 = arith.constant 0 : index
    %c0_83 = arith.constant 0 : index
    %117 = vector.load %arg12[%c8_81, %c0_82, %c0_83] : memref<10x21x32xf32, #tpu.memory_space<vmem>>, vector<1x21x32xf32>
    %118 = vector.shape_cast %117 : vector<1x21x32xf32> to vector<21x32xf32>
    %119 = vector.shape_cast %116 : vector<21x32xf32> to vector<1x21x32xf32>
    tpu.vector_store %arg12[%c8_81, %c0_82, %c0_83], %119 {strides = array<i32>} : memref<10x21x32xf32, #tpu.memory_space<vmem>>, vector<1x21x32xf32>,
    %c0_84 = arith.constant 0 : index
    %c0_85 = arith.constant 0 : index
    %c0_86 = arith.constant 0 : index
    %120 = vector.load %arg11[%c0_84, %c0_85, %c0_86] : memref<10x21x32xf32, #tpu.memory_space<vmem>>, vector<1x20x32xf32>
    %121 = vector.shape_cast %120 : vector<1x20x32xf32> to vector<20x32xf32>
    %c0_87 = arith.constant 0 : index
    %c0_88 = arith.constant 0 : index
    %c0_89 = arith.constant 0 : index
    %122 = vector.load %arg12[%c0_87, %c0_88, %c0_89] : memref<10x21x32xf32, #tpu.memory_space<vmem>>, vector<1x20x32xf32>
    %123 = vector.shape_cast %122 : vector<1x20x32xf32> to vector<20x32xf32>
    %c0_90 = arith.constant 0 : index
    %c1_91 = arith.constant 1 : index
    %c0_92 = arith.constant 0 : index
    %124 = vector.load %arg11[%c0_90, %c1_91, %c0_92] : memref<10x21x32xf32, #tpu.memory_space<vmem>>, vector<1x20x32xf32>
    %125 = vector.shape_cast %124 : vector<1x20x32xf32> to vector<20x32xf32>
    %c1_93 = arith.constant 1 : index
    %c0_94 = arith.constant 0 : index
    %c0_95 = arith.constant 0 : index
    %126 = vector.load %arg11[%c1_93, %c0_94, %c0_95] : memref<10x21x32xf32, #tpu.memory_space<vmem>>, vector<1x20x32xf32>
    %127 = vector.shape_cast %126 : vector<1x20x32xf32> to vector<20x32xf32>
    %c1_96 = arith.constant 1 : index
    %c0_97 = arith.constant 0 : index
    %c0_98 = arith.constant 0 : index
    %128 = vector.load %arg12[%c1_96, %c0_97, %c0_98] : memref<10x21x32xf32, #tpu.memory_space<vmem>>, vector<1x20x32xf32>
    %129 = vector.shape_cast %128 : vector<1x20x32xf32> to vector<20x32xf32>
    %c1_99 = arith.constant 1 : index
    %c1_100 = arith.constant 1 : index
    %c0_101 = arith.constant 0 : index
    %130 = vector.load %arg11[%c1_99, %c1_100, %c0_101] : memref<10x21x32xf32, #tpu.memory_space<vmem>>, vector<1x20x32xf32>
    %131 = vector.shape_cast %130 : vector<1x20x32xf32> to vector<20x32xf32>
    %c2_102 = arith.constant 2 : index
    %c0_103 = arith.constant 0 : index
    %c0_104 = arith.constant 0 : index
    %132 = vector.load %arg11[%c2_102, %c0_103, %c0_104] : memref<10x21x32xf32, #tpu.memory_space<vmem>>, vector<1x20x32xf32>
    %133 = vector.shape_cast %132 : vector<1x20x32xf32> to vector<20x32xf32>
    %c2_105 = arith.constant 2 : index
    %c0_106 = arith.constant 0 : index
    %c0_107 = arith.constant 0 : index
    %134 = vector.load %arg12[%c2_105, %c0_106, %c0_107] : memref<10x21x32xf32, #tpu.memory_space<vmem>>, vector<1x20x32xf32>
    %135 = vector.shape_cast %134 : vector<1x20x32xf32> to vector<20x32xf32>
    %c2_108 = arith.constant 2 : index
    %c1_109 = arith.constant 1 : index
    %c0_110 = arith.constant 0 : index
    %136 = vector.load %arg11[%c2_108, %c1_109, %c0_110] : memref<10x21x32xf32, #tpu.memory_space<vmem>>, vector<1x20x32xf32>
    %137 = vector.shape_cast %136 : vector<1x20x32xf32> to vector<20x32xf32>
    %138 = tpu.concatenate %121, %123, %125, %127, %129, %131, %133, %135, %137 in 1 : vector<20x32xf32>, vector<20x32xf32>, vector<20x32xf32>, vector<20x32xf32>, vector<20x32xf32>, vector<20x32xf32>, vector<20x32xf32>, vector<20x32xf32>, vector<20x32xf32> -> vector<20x288xf32>
    %c0_111 = arith.constant 0 : index
    %c0_112 = arith.constant 0 : index
    %139 = vector.load %arg4[%c0_111, %c0_112] : memref<288x32xf32, #tpu.memory_space<vmem>>, vector<288x32xf32>
    %cst_113 = arith.constant dense<0.000000e+00> : vector<20x32xf32>
    %140 = tpu.matmul %138, %139, %cst_113 {dimension_numbers = #tpu.dot_dimension_numbers<[1], [0], [0], [1], [0, 0, 1, 1], [], []>} : vector<20x288xf32>, vector<288x32xf32>, vector<20x32xf32> -> vector<20x32xf32>
    %c0_114 = arith.constant 0 : index
    %c0_115 = arith.constant 0 : index
    %141 = vector.load %arg5[%c0_114, %c0_115] : memref<1x32xf32, #tpu.memory_space<vmem>>, vector<1x32xf32>
    %142 = vector.broadcast %141 : vector<1x32xf32> to vector<20x32xf32>
    %143 = arith.addf %140, %142 : vector<20x32xf32>
    %cst_116 = arith.constant 0.000000e+00 : f32
    %144 = vector.broadcast %cst_116 : f32 to vector<20x32xf32>
    %145 = arith.cmpf oge, %143, %144 : vector<20x32xf32>
    %cst_117 = arith.constant 2.000000e-01 : f32
    %146 = vector.broadcast %cst_117 : f32 to vector<20x32xf32>
    %147 = arith.mulf %146, %143 : vector<20x32xf32>
    %148 = arith.select %145, %143, %147 : vector<20x32xi1>, vector<20x32xf32>
    %cst_118 = arith.constant dense<0.000000e+00> : vector<11x32xf32>
    %149 = tpu.matmul %30, %148, %cst_118 {dimension_numbers = #tpu.dot_dimension_numbers<[1], [0], [0], [1], [0, 0, 1, 1], [], []>} : vector<11x20xf32>, vector<20x32xf32>, vector<11x32xf32> -> vector<11x32xf32>
    %c1_119 = arith.constant 1 : index
    %c0_120 = arith.constant 0 : index
    %c0_121 = arith.constant 0 : index
    %150 = vector.load %arg13[%c1_119, %c0_120, %c0_121] : memref<6x11x32xf32, #tpu.memory_space<vmem>>, vector<1x11x32xf32>
    %151 = vector.shape_cast %150 : vector<1x11x32xf32> to vector<11x32xf32>
    %152 = vector.shape_cast %149 : vector<11x32xf32> to vector<1x11x32xf32>
    tpu.vector_store %arg13[%c1_119, %c0_120, %c0_121], %152 {strides = array<i32>} : memref<6x11x32xf32, #tpu.memory_space<vmem>>, vector<1x11x32xf32>,
    %cst_122 = arith.constant dense<0.000000e+00> : vector<11x32xf32>
    %153 = tpu.matmul %35, %148, %cst_122 {dimension_numbers = #tpu.dot_dimension_numbers<[1], [0], [0], [1], [0, 0, 1, 1], [], []>} : vector<11x20xf32>, vector<20x32xf32>, vector<11x32xf32> -> vector<11x32xf32>
    %c1_123 = arith.constant 1 : index
    %c0_124 = arith.constant 0 : index
    %c0_125 = arith.constant 0 : index
    %154 = vector.load %arg14[%c1_123, %c0_124, %c0_125] : memref<6x11x32xf32, #tpu.memory_space<vmem>>, vector<1x11x32xf32>
    %155 = vector.shape_cast %154 : vector<1x11x32xf32> to vector<11x32xf32>
    %156 = vector.shape_cast %153 : vector<11x32xf32> to vector<1x11x32xf32>
    tpu.vector_store %arg14[%c1_123, %c0_124, %c0_125], %156 {strides = array<i32>} : memref<6x11x32xf32, #tpu.memory_space<vmem>>, vector<1x11x32xf32>,
    %c2_126 = arith.constant 2 : index
    %c0_127 = arith.constant 0 : index
    %c0_128 = arith.constant 0 : index
    %157 = vector.load %arg11[%c2_126, %c0_127, %c0_128] : memref<10x21x32xf32, #tpu.memory_space<vmem>>, vector<1x20x32xf32>
    %158 = vector.shape_cast %157 : vector<1x20x32xf32> to vector<20x32xf32>
    %c2_129 = arith.constant 2 : index
    %c0_130 = arith.constant 0 : index
    %c0_131 = arith.constant 0 : index
    %159 = vector.load %arg12[%c2_129, %c0_130, %c0_131] : memref<10x21x32xf32, #tpu.memory_space<vmem>>, vector<1x20x32xf32>
    %160 = vector.shape_cast %159 : vector<1x20x32xf32> to vector<20x32xf32>
    %c2_132 = arith.constant 2 : index
    %c1_133 = arith.constant 1 : index
    %c0_134 = arith.constant 0 : index
    %161 = vector.load %arg11[%c2_132, %c1_133, %c0_134] : memref<10x21x32xf32, #tpu.memory_space<vmem>>, vector<1x20x32xf32>
    %162 = vector.shape_cast %161 : vector<1x20x32xf32> to vector<20x32xf32>
    %c3_135 = arith.constant 3 : index
    %c0_136 = arith.constant 0 : index
    %c0_137 = arith.constant 0 : index
    %163 = vector.load %arg11[%c3_135, %c0_136, %c0_137] : memref<10x21x32xf32, #tpu.memory_space<vmem>>, vector<1x20x32xf32>
    %164 = vector.shape_cast %163 : vector<1x20x32xf32> to vector<20x32xf32>
    %c3_138 = arith.constant 3 : index
    %c0_139 = arith.constant 0 : index
    %c0_140 = arith.constant 0 : index
    %165 = vector.load %arg12[%c3_138, %c0_139, %c0_140] : memref<10x21x32xf32, #tpu.memory_space<vmem>>, vector<1x20x32xf32>
    %166 = vector.shape_cast %165 : vector<1x20x32xf32> to vector<20x32xf32>
    %c3_141 = arith.constant 3 : index
    %c1_142 = arith.constant 1 : index
    %c0_143 = arith.constant 0 : index
    %167 = vector.load %arg11[%c3_141, %c1_142, %c0_143] : memref<10x21x32xf32, #tpu.memory_space<vmem>>, vector<1x20x32xf32>
    %168 = vector.shape_cast %167 : vector<1x20x32xf32> to vector<20x32xf32>
    %c4_144 = arith.constant 4 : index
    %c0_145 = arith.constant 0 : index
    %c0_146 = arith.constant 0 : index
    %169 = vector.load %arg11[%c4_144, %c0_145, %c0_146] : memref<10x21x32xf32, #tpu.memory_space<vmem>>, vector<1x20x32xf32>
    %170 = vector.shape_cast %169 : vector<1x20x32xf32> to vector<20x32xf32>
    %c4_147 = arith.constant 4 : index
    %c0_148 = arith.constant 0 : index
    %c0_149 = arith.constant 0 : index
    %171 = vector.load %arg12[%c4_147, %c0_148, %c0_149] : memref<10x21x32xf32, #tpu.memory_space<vmem>>, vector<1x20x32xf32>
    %172 = vector.shape_cast %171 : vector<1x20x32xf32> to vector<20x32xf32>
    %c4_150 = arith.constant 4 : index
    %c1_151 = arith.constant 1 : index
    %c0_152 = arith.constant 0 : index
    %173 = vector.load %arg11[%c4_150, %c1_151, %c0_152] : memref<10x21x32xf32, #tpu.memory_space<vmem>>, vector<1x20x32xf32>
    %174 = vector.shape_cast %173 : vector<1x20x32xf32> to vector<20x32xf32>
    %175 = tpu.concatenate %158, %160, %162, %164, %166, %168, %170, %172, %174 in 1 : vector<20x32xf32>, vector<20x32xf32>, vector<20x32xf32>, vector<20x32xf32>, vector<20x32xf32>, vector<20x32xf32>, vector<20x32xf32>, vector<20x32xf32>, vector<20x32xf32> -> vector<20x288xf32>
    %c0_153 = arith.constant 0 : index
    %c0_154 = arith.constant 0 : index
    %176 = vector.load %arg4[%c0_153, %c0_154] : memref<288x32xf32, #tpu.memory_space<vmem>>, vector<288x32xf32>
    %cst_155 = arith.constant dense<0.000000e+00> : vector<20x32xf32>
    %177 = tpu.matmul %175, %176, %cst_155 {dimension_numbers = #tpu.dot_dimension_numbers<[1], [0], [0], [1], [0, 0, 1, 1], [], []>} : vector<20x288xf32>, vector<288x32xf32>, vector<20x32xf32> -> vector<20x32xf32>
    %c0_156 = arith.constant 0 : index
    %c0_157 = arith.constant 0 : index
    %178 = vector.load %arg5[%c0_156, %c0_157] : memref<1x32xf32, #tpu.memory_space<vmem>>, vector<1x32xf32>
    %179 = vector.broadcast %178 : vector<1x32xf32> to vector<20x32xf32>
    %180 = arith.addf %177, %179 : vector<20x32xf32>
    %cst_158 = arith.constant 0.000000e+00 : f32
    %181 = vector.broadcast %cst_158 : f32 to vector<20x32xf32>
    %182 = arith.cmpf oge, %180, %181 : vector<20x32xf32>
    %cst_159 = arith.constant 2.000000e-01 : f32
    %183 = vector.broadcast %cst_159 : f32 to vector<20x32xf32>
    %184 = arith.mulf %183, %180 : vector<20x32xf32>
    %185 = arith.select %182, %180, %184 : vector<20x32xi1>, vector<20x32xf32>
    %cst_160 = arith.constant dense<0.000000e+00> : vector<11x32xf32>
    %186 = tpu.matmul %30, %185, %cst_160 {dimension_numbers = #tpu.dot_dimension_numbers<[1], [0], [0], [1], [0, 0, 1, 1], [], []>} : vector<11x20xf32>, vector<20x32xf32>, vector<11x32xf32> -> vector<11x32xf32>
    %c2_161 = arith.constant 2 : index
    %c0_162 = arith.constant 0 : index
    %c0_163 = arith.constant 0 : index
    %187 = vector.load %arg13[%c2_161, %c0_162, %c0_163] : memref<6x11x32xf32, #tpu.memory_space<vmem>>, vector<1x11x32xf32>
    %188 = vector.shape_cast %187 : vector<1x11x32xf32> to vector<11x32xf32>
    %189 = vector.shape_cast %186 : vector<11x32xf32> to vector<1x11x32xf32>
    tpu.vector_store %arg13[%c2_161, %c0_162, %c0_163], %189 {strides = array<i32>} : memref<6x11x32xf32, #tpu.memory_space<vmem>>, vector<1x11x32xf32>,
    %cst_164 = arith.constant dense<0.000000e+00> : vector<11x32xf32>
    %190 = tpu.matmul %35, %185, %cst_164 {dimension_numbers = #tpu.dot_dimension_numbers<[1], [0], [0], [1], [0, 0, 1, 1], [], []>} : vector<11x20xf32>, vector<20x32xf32>, vector<11x32xf32> -> vector<11x32xf32>
    %c2_165 = arith.constant 2 : index
    %c0_166 = arith.constant 0 : index
    %c0_167 = arith.constant 0 : index
    %191 = vector.load %arg14[%c2_165, %c0_166, %c0_167] : memref<6x11x32xf32, #tpu.memory_space<vmem>>, vector<1x11x32xf32>
    %192 = vector.shape_cast %191 : vector<1x11x32xf32> to vector<11x32xf32>
    %193 = vector.shape_cast %190 : vector<11x32xf32> to vector<1x11x32xf32>
    tpu.vector_store %arg14[%c2_165, %c0_166, %c0_167], %193 {strides = array<i32>} : memref<6x11x32xf32, #tpu.memory_space<vmem>>, vector<1x11x32xf32>,
    %c4_168 = arith.constant 4 : index
    %c0_169 = arith.constant 0 : index
    %c0_170 = arith.constant 0 : index
    %194 = vector.load %arg11[%c4_168, %c0_169, %c0_170] : memref<10x21x32xf32, #tpu.memory_space<vmem>>, vector<1x20x32xf32>
    %195 = vector.shape_cast %194 : vector<1x20x32xf32> to vector<20x32xf32>
    %c4_171 = arith.constant 4 : index
    %c0_172 = arith.constant 0 : index
    %c0_173 = arith.constant 0 : index
    %196 = vector.load %arg12[%c4_171, %c0_172, %c0_173] : memref<10x21x32xf32, #tpu.memory_space<vmem>>, vector<1x20x32xf32>
    %197 = vector.shape_cast %196 : vector<1x20x32xf32> to vector<20x32xf32>
    %c4_174 = arith.constant 4 : index
    %c1_175 = arith.constant 1 : index
    %c0_176 = arith.constant 0 : index
    %198 = vector.load %arg11[%c4_174, %c1_175, %c0_176] : memref<10x21x32xf32, #tpu.memory_space<vmem>>, vector<1x20x32xf32>
    %199 = vector.shape_cast %198 : vector<1x20x32xf32> to vector<20x32xf32>
    %c5_177 = arith.constant 5 : index
    %c0_178 = arith.constant 0 : index
    %c0_179 = arith.constant 0 : index
    %200 = vector.load %arg11[%c5_177, %c0_178, %c0_179] : memref<10x21x32xf32, #tpu.memory_space<vmem>>, vector<1x20x32xf32>
    %201 = vector.shape_cast %200 : vector<1x20x32xf32> to vector<20x32xf32>
    %c5_180 = arith.constant 5 : index
    %c0_181 = arith.constant 0 : index
    %c0_182 = arith.constant 0 : index
    %202 = vector.load %arg12[%c5_180, %c0_181, %c0_182] : memref<10x21x32xf32, #tpu.memory_space<vmem>>, vector<1x20x32xf32>
    %203 = vector.shape_cast %202 : vector<1x20x32xf32> to vector<20x32xf32>
    %c5_183 = arith.constant 5 : index
    %c1_184 = arith.constant 1 : index
    %c0_185 = arith.constant 0 : index
    %204 = vector.load %arg11[%c5_183, %c1_184, %c0_185] : memref<10x21x32xf32, #tpu.memory_space<vmem>>, vector<1x20x32xf32>
    %205 = vector.shape_cast %204 : vector<1x20x32xf32> to vector<20x32xf32>
    %c6_186 = arith.constant 6 : index
    %c0_187 = arith.constant 0 : index
    %c0_188 = arith.constant 0 : index
    %206 = vector.load %arg11[%c6_186, %c0_187, %c0_188] : memref<10x21x32xf32, #tpu.memory_space<vmem>>, vector<1x20x32xf32>
    %207 = vector.shape_cast %206 : vector<1x20x32xf32> to vector<20x32xf32>
    %c6_189 = arith.constant 6 : index
    %c0_190 = arith.constant 0 : index
    %c0_191 = arith.constant 0 : index
    %208 = vector.load %arg12[%c6_189, %c0_190, %c0_191] : memref<10x21x32xf32, #tpu.memory_space<vmem>>, vector<1x20x32xf32>
    %209 = vector.shape_cast %208 : vector<1x20x32xf32> to vector<20x32xf32>
    %c6_192 = arith.constant 6 : index
    %c1_193 = arith.constant 1 : index
    %c0_194 = arith.constant 0 : index
    %210 = vector.load %arg11[%c6_192, %c1_193, %c0_194] : memref<10x21x32xf32, #tpu.memory_space<vmem>>, vector<1x20x32xf32>
    %211 = vector.shape_cast %210 : vector<1x20x32xf32> to vector<20x32xf32>
    %212 = tpu.concatenate %195, %197, %199, %201, %203, %205, %207, %209, %211 in 1 : vector<20x32xf32>, vector<20x32xf32>, vector<20x32xf32>, vector<20x32xf32>, vector<20x32xf32>, vector<20x32xf32>, vector<20x32xf32>, vector<20x32xf32>, vector<20x32xf32> -> vector<20x288xf32>
    %c0_195 = arith.constant 0 : index
    %c0_196 = arith.constant 0 : index
    %213 = vector.load %arg4[%c0_195, %c0_196] : memref<288x32xf32, #tpu.memory_space<vmem>>, vector<288x32xf32>
    %cst_197 = arith.constant dense<0.000000e+00> : vector<20x32xf32>
    %214 = tpu.matmul %212, %213, %cst_197 {dimension_numbers = #tpu.dot_dimension_numbers<[1], [0], [0], [1], [0, 0, 1, 1], [], []>} : vector<20x288xf32>, vector<288x32xf32>, vector<20x32xf32> -> vector<20x32xf32>
    %c0_198 = arith.constant 0 : index
    %c0_199 = arith.constant 0 : index
    %215 = vector.load %arg5[%c0_198, %c0_199] : memref<1x32xf32, #tpu.memory_space<vmem>>, vector<1x32xf32>
    %216 = vector.broadcast %215 : vector<1x32xf32> to vector<20x32xf32>
    %217 = arith.addf %214, %216 : vector<20x32xf32>
    %cst_200 = arith.constant 0.000000e+00 : f32
    %218 = vector.broadcast %cst_200 : f32 to vector<20x32xf32>
    %219 = arith.cmpf oge, %217, %218 : vector<20x32xf32>
    %cst_201 = arith.constant 2.000000e-01 : f32
    %220 = vector.broadcast %cst_201 : f32 to vector<20x32xf32>
    %221 = arith.mulf %220, %217 : vector<20x32xf32>
    %222 = arith.select %219, %217, %221 : vector<20x32xi1>, vector<20x32xf32>
    %cst_202 = arith.constant dense<0.000000e+00> : vector<11x32xf32>
    %223 = tpu.matmul %30, %222, %cst_202 {dimension_numbers = #tpu.dot_dimension_numbers<[1], [0], [0], [1], [0, 0, 1, 1], [], []>} : vector<11x20xf32>, vector<20x32xf32>, vector<11x32xf32> -> vector<11x32xf32>
    %c3_203 = arith.constant 3 : index
    %c0_204 = arith.constant 0 : index
    %c0_205 = arith.constant 0 : index
    %224 = vector.load %arg13[%c3_203, %c0_204, %c0_205] : memref<6x11x32xf32, #tpu.memory_space<vmem>>, vector<1x11x32xf32>
    %225 = vector.shape_cast %224 : vector<1x11x32xf32> to vector<11x32xf32>
    %226 = vector.shape_cast %223 : vector<11x32xf32> to vector<1x11x32xf32>
    tpu.vector_store %arg13[%c3_203, %c0_204, %c0_205], %226 {strides = array<i32>} : memref<6x11x32xf32, #tpu.memory_space<vmem>>, vector<1x11x32xf32>,
    %cst_206 = arith.constant dense<0.000000e+00> : vector<11x32xf32>
    %227 = tpu.matmul %35, %222, %cst_206 {dimension_numbers = #tpu.dot_dimension_numbers<[1], [0], [0], [1], [0, 0, 1, 1], [], []>} : vector<11x20xf32>, vector<20x32xf32>, vector<11x32xf32> -> vector<11x32xf32>
    %c3_207 = arith.constant 3 : index
    %c0_208 = arith.constant 0 : index
    %c0_209 = arith.constant 0 : index
    %228 = vector.load %arg14[%c3_207, %c0_208, %c0_209] : memref<6x11x32xf32, #tpu.memory_space<vmem>>, vector<1x11x32xf32>
    %229 = vector.shape_cast %228 : vector<1x11x32xf32> to vector<11x32xf32>
    %230 = vector.shape_cast %227 : vector<11x32xf32> to vector<1x11x32xf32>
    tpu.vector_store %arg14[%c3_207, %c0_208, %c0_209], %230 {strides = array<i32>} : memref<6x11x32xf32, #tpu.memory_space<vmem>>, vector<1x11x32xf32>,
    %c6_210 = arith.constant 6 : index
    %c0_211 = arith.constant 0 : index
    %c0_212 = arith.constant 0 : index
    %231 = vector.load %arg11[%c6_210, %c0_211, %c0_212] : memref<10x21x32xf32, #tpu.memory_space<vmem>>, vector<1x20x32xf32>
    %232 = vector.shape_cast %231 : vector<1x20x32xf32> to vector<20x32xf32>
    %c6_213 = arith.constant 6 : index
    %c0_214 = arith.constant 0 : index
    %c0_215 = arith.constant 0 : index
    %233 = vector.load %arg12[%c6_213, %c0_214, %c0_215] : memref<10x21x32xf32, #tpu.memory_space<vmem>>, vector<1x20x32xf32>
    %234 = vector.shape_cast %233 : vector<1x20x32xf32> to vector<20x32xf32>
    %c6_216 = arith.constant 6 : index
    %c1_217 = arith.constant 1 : index
    %c0_218 = arith.constant 0 : index
    %235 = vector.load %arg11[%c6_216, %c1_217, %c0_218] : memref<10x21x32xf32, #tpu.memory_space<vmem>>, vector<1x20x32xf32>
    %236 = vector.shape_cast %235 : vector<1x20x32xf32> to vector<20x32xf32>
    %c7_219 = arith.constant 7 : index
    %c0_220 = arith.constant 0 : index
    %c0_221 = arith.constant 0 : index
    %237 = vector.load %arg11[%c7_219, %c0_220, %c0_221] : memref<10x21x32xf32, #tpu.memory_space<vmem>>, vector<1x20x32xf32>
    %238 = vector.shape_cast %237 : vector<1x20x32xf32> to vector<20x32xf32>
    %c7_222 = arith.constant 7 : index
    %c0_223 = arith.constant 0 : index
    %c0_224 = arith.constant 0 : index
    %239 = vector.load %arg12[%c7_222, %c0_223, %c0_224] : memref<10x21x32xf32, #tpu.memory_space<vmem>>, vector<1x20x32xf32>
    %240 = vector.shape_cast %239 : vector<1x20x32xf32> to vector<20x32xf32>
    %c7_225 = arith.constant 7 : index
    %c1_226 = arith.constant 1 : index
    %c0_227 = arith.constant 0 : index
    %241 = vector.load %arg11[%c7_225, %c1_226, %c0_227] : memref<10x21x32xf32, #tpu.memory_space<vmem>>, vector<1x20x32xf32>
    %242 = vector.shape_cast %241 : vector<1x20x32xf32> to vector<20x32xf32>
    %c8_228 = arith.constant 8 : index
    %c0_229 = arith.constant 0 : index
    %c0_230 = arith.constant 0 : index
    %243 = vector.load %arg11[%c8_228, %c0_229, %c0_230] : memref<10x21x32xf32, #tpu.memory_space<vmem>>, vector<1x20x32xf32>
    %244 = vector.shape_cast %243 : vector<1x20x32xf32> to vector<20x32xf32>
    %c8_231 = arith.constant 8 : index
    %c0_232 = arith.constant 0 : index
    %c0_233 = arith.constant 0 : index
    %245 = vector.load %arg12[%c8_231, %c0_232, %c0_233] : memref<10x21x32xf32, #tpu.memory_space<vmem>>, vector<1x20x32xf32>
    %246 = vector.shape_cast %245 : vector<1x20x32xf32> to vector<20x32xf32>
    %c8_234 = arith.constant 8 : index
    %c1_235 = arith.constant 1 : index
    %c0_236 = arith.constant 0 : index
    %247 = vector.load %arg11[%c8_234, %c1_235, %c0_236] : memref<10x21x32xf32, #tpu.memory_space<vmem>>, vector<1x20x32xf32>
    %248 = vector.shape_cast %247 : vector<1x20x32xf32> to vector<20x32xf32>
    %249 = tpu.concatenate %232, %234, %236, %238, %240, %242, %244, %246, %248 in 1 : vector<20x32xf32>, vector<20x32xf32>, vector<20x32xf32>, vector<20x32xf32>, vector<20x32xf32>, vector<20x32xf32>, vector<20x32xf32>, vector<20x32xf32>, vector<20x32xf32> -> vector<20x288xf32>
    %c0_237 = arith.constant 0 : index
    %c0_238 = arith.constant 0 : index
    %250 = vector.load %arg4[%c0_237, %c0_238] : memref<288x32xf32, #tpu.memory_space<vmem>>, vector<288x32xf32>
    %cst_239 = arith.constant dense<0.000000e+00> : vector<20x32xf32>
    %251 = tpu.matmul %249, %250, %cst_239 {dimension_numbers = #tpu.dot_dimension_numbers<[1], [0], [0], [1], [0, 0, 1, 1], [], []>} : vector<20x288xf32>, vector<288x32xf32>, vector<20x32xf32> -> vector<20x32xf32>
    %c0_240 = arith.constant 0 : index
    %c0_241 = arith.constant 0 : index
    %252 = vector.load %arg5[%c0_240, %c0_241] : memref<1x32xf32, #tpu.memory_space<vmem>>, vector<1x32xf32>
    %253 = vector.broadcast %252 : vector<1x32xf32> to vector<20x32xf32>
    %254 = arith.addf %251, %253 : vector<20x32xf32>
    %cst_242 = arith.constant 0.000000e+00 : f32
    %255 = vector.broadcast %cst_242 : f32 to vector<20x32xf32>
    %256 = arith.cmpf oge, %254, %255 : vector<20x32xf32>
    %cst_243 = arith.constant 2.000000e-01 : f32
    %257 = vector.broadcast %cst_243 : f32 to vector<20x32xf32>
    %258 = arith.mulf %257, %254 : vector<20x32xf32>
    %259 = arith.select %256, %254, %258 : vector<20x32xi1>, vector<20x32xf32>
    %cst_244 = arith.constant dense<0.000000e+00> : vector<11x32xf32>
    %260 = tpu.matmul %30, %259, %cst_244 {dimension_numbers = #tpu.dot_dimension_numbers<[1], [0], [0], [1], [0, 0, 1, 1], [], []>} : vector<11x20xf32>, vector<20x32xf32>, vector<11x32xf32> -> vector<11x32xf32>
    %c4_245 = arith.constant 4 : index
    %c0_246 = arith.constant 0 : index
    %c0_247 = arith.constant 0 : index
    %261 = vector.load %arg13[%c4_245, %c0_246, %c0_247] : memref<6x11x32xf32, #tpu.memory_space<vmem>>, vector<1x11x32xf32>
    %262 = vector.shape_cast %261 : vector<1x11x32xf32> to vector<11x32xf32>
    %263 = vector.shape_cast %260 : vector<11x32xf32> to vector<1x11x32xf32>
    tpu.vector_store %arg13[%c4_245, %c0_246, %c0_247], %263 {strides = array<i32>} : memref<6x11x32xf32, #tpu.memory_space<vmem>>, vector<1x11x32xf32>,
    %cst_248 = arith.constant dense<0.000000e+00> : vector<11x32xf32>
    %264 = tpu.matmul %35, %259, %cst_248 {dimension_numbers = #tpu.dot_dimension_numbers<[1], [0], [0], [1], [0, 0, 1, 1], [], []>} : vector<11x20xf32>, vector<20x32xf32>, vector<11x32xf32> -> vector<11x32xf32>
    %c4_249 = arith.constant 4 : index
    %c0_250 = arith.constant 0 : index
    %c0_251 = arith.constant 0 : index
    %265 = vector.load %arg14[%c4_249, %c0_250, %c0_251] : memref<6x11x32xf32, #tpu.memory_space<vmem>>, vector<1x11x32xf32>
    %266 = vector.shape_cast %265 : vector<1x11x32xf32> to vector<11x32xf32>
    %267 = vector.shape_cast %264 : vector<11x32xf32> to vector<1x11x32xf32>
    tpu.vector_store %arg14[%c4_249, %c0_250, %c0_251], %267 {strides = array<i32>} : memref<6x11x32xf32, #tpu.memory_space<vmem>>, vector<1x11x32xf32>,
    %cst_252 = arith.constant 0.000000e+00 : f32
    %268 = vector.broadcast %cst_252 : f32 to vector<1x32xf32>
    %c0_253 = arith.constant 0 : index
    %c0_254 = arith.constant 0 : index
    %c0_255 = arith.constant 0 : index
    %269 = vector.load %arg13[%c0_253, %c0_254, %c0_255] : memref<6x11x32xf32, #tpu.memory_space<vmem>>, vector<1x10x32xf32>
    %270 = vector.shape_cast %269 : vector<1x10x32xf32> to vector<10x32xf32>
    %c0_256 = arith.constant 0 : index
    %c0_257 = arith.constant 0 : index
    %c0_258 = arith.constant 0 : index
    %271 = vector.load %arg14[%c0_256, %c0_257, %c0_258] : memref<6x11x32xf32, #tpu.memory_space<vmem>>, vector<1x10x32xf32>
    %272 = vector.shape_cast %271 : vector<1x10x32xf32> to vector<10x32xf32>
    %c0_259 = arith.constant 0 : index
    %c1_260 = arith.constant 1 : index
    %c0_261 = arith.constant 0 : index
    %273 = vector.load %arg13[%c0_259, %c1_260, %c0_261] : memref<6x11x32xf32, #tpu.memory_space<vmem>>, vector<1x10x32xf32>
    %274 = vector.shape_cast %273 : vector<1x10x32xf32> to vector<10x32xf32>
    %c1_262 = arith.constant 1 : index
    %c0_263 = arith.constant 0 : index
    %c0_264 = arith.constant 0 : index
    %275 = vector.load %arg13[%c1_262, %c0_263, %c0_264] : memref<6x11x32xf32, #tpu.memory_space<vmem>>, vector<1x10x32xf32>
    %276 = vector.shape_cast %275 : vector<1x10x32xf32> to vector<10x32xf32>
    %c1_265 = arith.constant 1 : index
    %c0_266 = arith.constant 0 : index
    %c0_267 = arith.constant 0 : index
    %277 = vector.load %arg14[%c1_265, %c0_266, %c0_267] : memref<6x11x32xf32, #tpu.memory_space<vmem>>, vector<1x10x32xf32>
    %278 = vector.shape_cast %277 : vector<1x10x32xf32> to vector<10x32xf32>
    %c1_268 = arith.constant 1 : index
    %c1_269 = arith.constant 1 : index
    %c0_270 = arith.constant 0 : index
    %279 = vector.load %arg13[%c1_268, %c1_269, %c0_270] : memref<6x11x32xf32, #tpu.memory_space<vmem>>, vector<1x10x32xf32>
    %280 = vector.shape_cast %279 : vector<1x10x32xf32> to vector<10x32xf32>
    %c2_271 = arith.constant 2 : index
    %c0_272 = arith.constant 0 : index
    %c0_273 = arith.constant 0 : index
    %281 = vector.load %arg13[%c2_271, %c0_272, %c0_273] : memref<6x11x32xf32, #tpu.memory_space<vmem>>, vector<1x10x32xf32>
    %282 = vector.shape_cast %281 : vector<1x10x32xf32> to vector<10x32xf32>
    %c2_274 = arith.constant 2 : index
    %c0_275 = arith.constant 0 : index
    %c0_276 = arith.constant 0 : index
    %283 = vector.load %arg14[%c2_274, %c0_275, %c0_276] : memref<6x11x32xf32, #tpu.memory_space<vmem>>, vector<1x10x32xf32>
    %284 = vector.shape_cast %283 : vector<1x10x32xf32> to vector<10x32xf32>
    %c2_277 = arith.constant 2 : index
    %c1_278 = arith.constant 1 : index
    %c0_279 = arith.constant 0 : index
    %285 = vector.load %arg13[%c2_277, %c1_278, %c0_279] : memref<6x11x32xf32, #tpu.memory_space<vmem>>, vector<1x10x32xf32>
    %286 = vector.shape_cast %285 : vector<1x10x32xf32> to vector<10x32xf32>
    %287 = tpu.concatenate %270, %272, %274, %276, %278, %280, %282, %284, %286 in 1 : vector<10x32xf32>, vector<10x32xf32>, vector<10x32xf32>, vector<10x32xf32>, vector<10x32xf32>, vector<10x32xf32>, vector<10x32xf32>, vector<10x32xf32>, vector<10x32xf32> -> vector<10x288xf32>
    %c0_280 = arith.constant 0 : index
    %c0_281 = arith.constant 0 : index
    %288 = vector.load %arg6[%c0_280, %c0_281] : memref<288x32xf32, #tpu.memory_space<vmem>>, vector<288x32xf32>
    %cst_282 = arith.constant dense<0.000000e+00> : vector<10x32xf32>
    %289 = tpu.matmul %287, %288, %cst_282 {dimension_numbers = #tpu.dot_dimension_numbers<[1], [0], [0], [1], [0, 0, 1, 1], [], []>} : vector<10x288xf32>, vector<288x32xf32>, vector<10x32xf32> -> vector<10x32xf32>
    %c0_283 = arith.constant 0 : index
    %c0_284 = arith.constant 0 : index
    %290 = vector.load %arg7[%c0_283, %c0_284] : memref<1x32xf32, #tpu.memory_space<vmem>>, vector<1x32xf32>
    %291 = vector.broadcast %290 : vector<1x32xf32> to vector<10x32xf32>
    %292 = arith.addf %289, %291 : vector<10x32xf32>
    %cst_285 = arith.constant 0.000000e+00 : f32
    %293 = vector.broadcast %cst_285 : f32 to vector<10x32xf32>
    %294 = arith.cmpf oge, %292, %293 : vector<10x32xf32>
    %cst_286 = arith.constant 2.000000e-01 : f32
    %295 = vector.broadcast %cst_286 : f32 to vector<10x32xf32>
    %296 = arith.mulf %295, %292 : vector<10x32xf32>
    %297 = arith.select %294, %292, %296 : vector<10x32xi1>, vector<10x32xf32>
    %c0_287 = arith.constant 0 : index
    %c0_288 = arith.constant 0 : index
    %298 = vector.load %arg8[%c0_287, %c0_288] : memref<20x32xf32, #tpu.memory_space<vmem>>, vector<10x32xf32>
    %299 = arith.mulf %297, %298 : vector<10x32xf32>
    %cst_289 = arith.constant dense<0.000000e+00> : vector<32xf32>
    %300 = vector.multi_reduction <add>, %299, %cst_289 [0] : vector<10x32xf32> to vector<32xf32>
    %301 = vector.shape_cast %300 : vector<32xf32> to vector<1x32xf32>
    %302 = arith.addf %268, %301 : vector<1x32xf32>
    %c2_290 = arith.constant 2 : index
    %c0_291 = arith.constant 0 : index
    %c0_292 = arith.constant 0 : index
    %303 = vector.load %arg13[%c2_290, %c0_291, %c0_292] : memref<6x11x32xf32, #tpu.memory_space<vmem>>, vector<1x10x32xf32>
    %304 = vector.shape_cast %303 : vector<1x10x32xf32> to vector<10x32xf32>
    %c2_293 = arith.constant 2 : index
    %c0_294 = arith.constant 0 : index
    %c0_295 = arith.constant 0 : index
    %305 = vector.load %arg14[%c2_293, %c0_294, %c0_295] : memref<6x11x32xf32, #tpu.memory_space<vmem>>, vector<1x10x32xf32>
    %306 = vector.shape_cast %305 : vector<1x10x32xf32> to vector<10x32xf32>
    %c2_296 = arith.constant 2 : index
    %c1_297 = arith.constant 1 : index
    %c0_298 = arith.constant 0 : index
    %307 = vector.load %arg13[%c2_296, %c1_297, %c0_298] : memref<6x11x32xf32, #tpu.memory_space<vmem>>, vector<1x10x32xf32>
    %308 = vector.shape_cast %307 : vector<1x10x32xf32> to vector<10x32xf32>
    %c3_299 = arith.constant 3 : index
    %c0_300 = arith.constant 0 : index
    %c0_301 = arith.constant 0 : index
    %309 = vector.load %arg13[%c3_299, %c0_300, %c0_301] : memref<6x11x32xf32, #tpu.memory_space<vmem>>, vector<1x10x32xf32>
    %310 = vector.shape_cast %309 : vector<1x10x32xf32> to vector<10x32xf32>
    %c3_302 = arith.constant 3 : index
    %c0_303 = arith.constant 0 : index
    %c0_304 = arith.constant 0 : index
    %311 = vector.load %arg14[%c3_302, %c0_303, %c0_304] : memref<6x11x32xf32, #tpu.memory_space<vmem>>, vector<1x10x32xf32>
    %312 = vector.shape_cast %311 : vector<1x10x32xf32> to vector<10x32xf32>
    %c3_305 = arith.constant 3 : index
    %c1_306 = arith.constant 1 : index
    %c0_307 = arith.constant 0 : index
    %313 = vector.load %arg13[%c3_305, %c1_306, %c0_307] : memref<6x11x32xf32, #tpu.memory_space<vmem>>, vector<1x10x32xf32>
    %314 = vector.shape_cast %313 : vector<1x10x32xf32> to vector<10x32xf32>
    %c4_308 = arith.constant 4 : index
    %c0_309 = arith.constant 0 : index
    %c0_310 = arith.constant 0 : index
    %315 = vector.load %arg13[%c4_308, %c0_309, %c0_310] : memref<6x11x32xf32, #tpu.memory_space<vmem>>, vector<1x10x32xf32>
    %316 = vector.shape_cast %315 : vector<1x10x32xf32> to vector<10x32xf32>
    %c4_311 = arith.constant 4 : index
    %c0_312 = arith.constant 0 : index
    %c0_313 = arith.constant 0 : index
    %317 = vector.load %arg14[%c4_311, %c0_312, %c0_313] : memref<6x11x32xf32, #tpu.memory_space<vmem>>, vector<1x10x32xf32>
    %318 = vector.shape_cast %317 : vector<1x10x32xf32> to vector<10x32xf32>
    %c4_314 = arith.constant 4 : index
    %c1_315 = arith.constant 1 : index
    %c0_316 = arith.constant 0 : index
    %319 = vector.load %arg13[%c4_314, %c1_315, %c0_316] : memref<6x11x32xf32, #tpu.memory_space<vmem>>, vector<1x10x32xf32>
    %320 = vector.shape_cast %319 : vector<1x10x32xf32> to vector<10x32xf32>
    %321 = tpu.concatenate %304, %306, %308, %310, %312, %314, %316, %318, %320 in 1 : vector<10x32xf32>, vector<10x32xf32>, vector<10x32xf32>, vector<10x32xf32>, vector<10x32xf32>, vector<10x32xf32>, vector<10x32xf32>, vector<10x32xf32>, vector<10x32xf32> -> vector<10x288xf32>
    %c0_317 = arith.constant 0 : index
    %c0_318 = arith.constant 0 : index
    %322 = vector.load %arg6[%c0_317, %c0_318] : memref<288x32xf32, #tpu.memory_space<vmem>>, vector<288x32xf32>
    %cst_319 = arith.constant dense<0.000000e+00> : vector<10x32xf32>
    %323 = tpu.matmul %321, %322, %cst_319 {dimension_numbers = #tpu.dot_dimension_numbers<[1], [0], [0], [1], [0, 0, 1, 1], [], []>} : vector<10x288xf32>, vector<288x32xf32>, vector<10x32xf32> -> vector<10x32xf32>
    %c0_320 = arith.constant 0 : index
    %c0_321 = arith.constant 0 : index
    %324 = vector.load %arg7[%c0_320, %c0_321] : memref<1x32xf32, #tpu.memory_space<vmem>>, vector<1x32xf32>
    %325 = vector.broadcast %324 : vector<1x32xf32> to vector<10x32xf32>
    %326 = arith.addf %323, %325 : vector<10x32xf32>
    %cst_322 = arith.constant 0.000000e+00 : f32
    %327 = vector.broadcast %cst_322 : f32 to vector<10x32xf32>
    %328 = arith.cmpf oge, %326, %327 : vector<10x32xf32>
    %cst_323 = arith.constant 2.000000e-01 : f32
    %329 = vector.broadcast %cst_323 : f32 to vector<10x32xf32>
    %330 = arith.mulf %329, %326 : vector<10x32xf32>
    %331 = arith.select %328, %326, %330 : vector<10x32xi1>, vector<10x32xf32>
    %c10 = arith.constant 10 : index
    %c0_324 = arith.constant 0 : index
    %332 = vector.load %arg8[%c10, %c0_324] : memref<20x32xf32, #tpu.memory_space<vmem>>, vector<10x32xf32>
    %333 = arith.mulf %331, %332 : vector<10x32xf32>
    %cst_325 = arith.constant dense<0.000000e+00> : vector<32xf32>
    %334 = vector.multi_reduction <add>, %333, %cst_325 [0] : vector<10x32xf32> to vector<32xf32>
    %335 = vector.shape_cast %334 : vector<32xf32> to vector<1x32xf32>
    %336 = arith.addf %302, %335 : vector<1x32xf32>
    %cst_326 = arith.constant dense<0.000000e+00> : vector<1xf32>
    %337 = vector.multi_reduction <add>, %336, %cst_326 [1] : vector<1x32xf32> to vector<1xf32>
    %338 = vector.shape_cast %337 : vector<1xf32> to vector<1x1xf32>
    %c0_327 = arith.constant 0 : index
    %c0_328 = arith.constant 0 : index
    %339 = vector.load %arg9[%c0_327, %c0_328] : memref<1x1xf32, #tpu.memory_space<vmem>>, vector<1x1xf32>
    %340 = arith.addf %338, %339 : vector<1x1xf32>
    %c0_329 = arith.constant 0 : index
    %c0_330 = arith.constant 0 : index
    %c0_331 = arith.constant 0 : index
    %341 = vector.load %arg10[%c0_329, %c0_330, %c0_331] : memref<1x1x1xf32, #tpu.memory_space<vmem>>, vector<1x1x1xf32>
    %342 = vector.shape_cast %341 : vector<1x1x1xf32> to vector<1x1xf32>
    %343 = vector.shape_cast %340 : vector<1x1xf32> to vector<1x1x1xf32>
    tpu.vector_store %arg10[%c0_329, %c0_330, %c0_331], %343 {strides = array<i32>} : memref<1x1x1xf32, #tpu.memory_space<vmem>>, vector<1x1x1xf32>,
    return
  }
  func.func @transform_0(%arg0: i32) -> (i32, i32, i32) {
    %c0_i32 = arith.constant 0 : i32
    %c0_i32_0 = arith.constant 0 : i32
    %c0_i32_1 = arith.constant 0 : i32
    return %arg0, %c0_i32, %c0_i32_0 : i32, i32, i32
  }
  func.func @transform_1(%arg0: i32) -> (i32, i32) {
    %c0_i32 = arith.constant 0 : i32
    %c0_i32_0 = arith.constant 0 : i32
    %c0_i32_1 = arith.constant 0 : i32
    return %c0_i32, %c0_i32_0 : i32, i32
  }
  func.func @transform_2(%arg0: i32) -> (i32, i32) {
    %c0_i32 = arith.constant 0 : i32
    %c0_i32_0 = arith.constant 0 : i32
    %c0_i32_1 = arith.constant 0 : i32
    return %c0_i32, %c0_i32_0 : i32, i32
  }
  func.func @transform_3(%arg0: i32) -> (i32, i32) {
    %c0_i32 = arith.constant 0 : i32
    %c0_i32_0 = arith.constant 0 : i32
    %c0_i32_1 = arith.constant 0 : i32
    return %c0_i32, %c0_i32_0 : i32, i32
  }
  func.func @transform_4(%arg0: i32) -> (i32, i32) {
    %c0_i32 = arith.constant 0 : i32
    %c0_i32_0 = arith.constant 0 : i32
    %c0_i32_1 = arith.constant 0 : i32
    return %c0_i32, %c0_i32_0 : i32, i32
  }
  func.func @transform_5(%arg0: i32) -> (i32, i32) {
    %c0_i32 = arith.constant 0 : i32
    %c0_i32_0 = arith.constant 0 : i32
    %c0_i32_1 = arith.constant 0 : i32
    return %c0_i32, %c0_i32_0 : i32, i32
  }
  func.func @transform_6(%arg0: i32) -> (i32, i32) {
    %c0_i32 = arith.constant 0 : i32
    %c0_i32_0 = arith.constant 0 : i32
    %c0_i32_1 = arith.constant 0 : i32
    return %c0_i32, %c0_i32_0 : i32, i32
  }
  func.func @transform_7(%arg0: i32) -> (i32, i32) {
    %c0_i32 = arith.constant 0 : i32
    %c0_i32_0 = arith.constant 0 : i32
    %c0_i32_1 = arith.constant 0 : i32
    return %c0_i32, %c0_i32_0 : i32, i32
  }
  func.func @transform_8(%arg0: i32) -> (i32, i32) {
    %c0_i32 = arith.constant 0 : i32
    %c0_i32_0 = arith.constant 0 : i32
    %c0_i32_1 = arith.constant 0 : i32
    return %c0_i32, %c0_i32_0 : i32, i32
  }
  func.func @transform_9(%arg0: i32) -> (i32, i32, i32) {
    %c0_i32 = arith.constant 0 : i32
    %c0_i32_0 = arith.constant 0 : i32
    %c0_i32_1 = arith.constant 0 : i32
    return %arg0, %c0_i32, %c0_i32_0 : i32, i32, i32
  }
}

</mosaic_0001>

<llo_original>
// kernel: discriminator_forward.1
$region0: #{discriminator_forward.1}
  #allocation0 [shape = 'u32[]', space=smem, size = 0x4, offset = 0x4, fixed_abs, tag = 'smem constant byte address 0x4 - core index']
  #allocation1 [shape = 'u32[144,128]{1,0:T(1,128)}', space=vmem, size = 0x12000, scoped, tag = 'internal scratch']
  #allocation2 [shape = 'f32[10,21,32]{2,1,0:T(8,128)}', space=vmem, size = 0x1e000, scoped, tag = 'scratch operand']
  #allocation3 [shape = 'f32[10,21,32]{2,1,0:T(8,128)}', space=vmem, size = 0x1e000, scoped, tag = 'scratch operand']
  #allocation4 [shape = 'f32[6,11,32]{2,1,0:T(8,128)}', space=vmem, size = 0xc000, scoped, tag = 'scratch operand']
  #allocation5 [shape = 'f32[6,11,32]{2,1,0:T(8,128)}', space=vmem, size = 0xc000, scoped, tag = 'scratch operand']
  #allocation6 [shape = 'f32[1,1]{1,0:T(1,128)S(1)}', space=vmem, size = 0x200, scoped, tag = 'scoped memory for discriminator_forward.1']
  %s0 = inlined_call_operand.vmem [shape: f32[2,320,9], index: 0, kind: input, shape index: {}]
  %s1 = inlined_call_operand.vmem [shape: f32[9,32], index: 1, kind: input, shape index: {}]
  %s2 = inlined_call_operand.vmem [shape: f32[1,32], index: 2, kind: input, shape index: {}]
  %s3 = inlined_call_operand.vmem [shape: f32[288,32], index: 3, kind: input, shape index: {}]
  %s4 = inlined_call_operand.vmem [shape: f32[1,32], index: 4, kind: input, shape index: {}]
  %s5 = inlined_call_operand.vmem [shape: f32[288,32], index: 5, kind: input, shape index: {}]
  %s6 = inlined_call_operand.vmem [shape: f32[1,32], index: 6, kind: input, shape index: {}]
  %s7 = inlined_call_operand.vmem [shape: f32[20,32], index: 7, kind: input, shape index: {}]
  %s8 = inlined_call_operand.<no memory space> [shape: f32[1,1], index: 8, kind: input, shape index: {}]
  %s9 = inlined_call_operand.vmem [shape: f32[2,1,1], index: 9, kind: output, shape index: {}]
  %s10 = sld [smem:[#allocation0]]
  $region69: #{discriminator_forward.1} parent=0
    _
  %s12 = ssub.s32 1, %s10
  %s13 = scalar_select 0, %s12, %s10
  %v14 = vstv %s8
  %15 = vst [vmem:[#allocation6] sm:$0x1] %v14
  loop: start=0, step=1, limit=4
  $region2: #{discriminator_forward.1} parent=0 // loop_pre_header
    _
  $region3: #{discriminator_forward.1} parent=0 // loop_header
    %s17 = sphi 0, %s21
    %p18 = scmp.ge.s32.totalorder %s17, 4
    %s27 = sphi 0, %s29
    %s30 = sphi 0, %s27
    %s31 = sphi 0, %s30
    %s47 = sphi 0, %s31
    %s51 = sphi 0, %s51
    %s53 = sphi 0, %s51
    %s54 = sphi 0, %s53
    %s68 = sphi 0, %s54
    %s72 = sphi 0, %s72
    %s74 = sphi 0, %s72
    %s75 = sphi 0, %s74
    %s89 = sphi 0, %s75
    %s93 = sphi 0, %s93
    %s95 = sphi 0, %s93
    %s96 = sphi 0, %s95
    %s110 = sphi 0, %s96
    %s114 = sphi 0, %s114
    %s116 = sphi 0, %s114
    %s117 = sphi 0, %s116
    %s131 = sphi 0, %s117
    %s135 = sphi 0, %s135
    %s137 = sphi 0, %s135
    %s138 = sphi 0, %s137
    %s152 = sphi 0, %s138
    %s156 = sphi 0, %s156
    %s158 = sphi 0, %s156
    %s159 = sphi 0, %s158
    %s173 = sphi 0, %s159
    %s177 = sphi 0, %s177
    %s179 = sphi 0, %s177
    %s180 = sphi 0, %s179
    %s194 = sphi 0, %s180
    %s198 = sphi 0, %s198
    %s200 = sphi 0, %s198
    %s201 = sphi 0, %s200
    %s215 = sphi 0, %s201
    %s221 = sphi 0, %s223
    %s224 = sphi 0, %s221
    %s225 = sphi 0, %s224
    %s241 = sphi 0, %s225
  $region4: #{discriminator_forward.1} parent=0 // loop_header_branch
    %20 = sbr.rel (%p18) target = $region8
  $region5: #{discriminator_forward.1} parent=0 // loop_body
    %s22 = ssub.s32 %s17, 1
    %s23 = ssub.s32 %s17, 2
    %s24 = sadd.s32 %s17, 1
    %s25 = ssub.s32 %s17, %s24
    %p26 = scmp.eq.s32.totalorder %s25, 0
    %s28 = sadd.s32 %s27, 1
    %s29 = scalar_select %p26, %s27, %s28
    %p32 = pneg %p26
    %p33 = scmp.eq.s32.totalorder %s17, 1
    %p34 = por %p32, %p33
    %p35 = scmp.ne.s32.totalorder %s27, %s30
    %p36 = scmp.eq.s32.totalorder %s17, 0
    %p37 = por %p35, %p36
    %p38 = scmp.ne.s32.totalorder %s27, %s30
    %p39 = scmp.eq.s32.totalorder %s22, 1
    %p40 = por %p38, %p39
    %p41 = scmp.ne.s32.totalorder %s30, %s31
    %p42 = scmp.eq.s32.totalorder %s22, 0
    %p43 = por %p41, %p42
    %p44 = scmp.ne.s32.totalorder %s30, %s31
    %p45 = scmp.eq.s32.totalorder %s23, 1
    %p46 = por %p44, %p45
    %p48 = scmp.ne.s32.totalorder %s31, %s47
    %p49 = scmp.eq.s32.totalorder %s23, 0
    %p50 = por %p48, %p49
    %s52 = sadd.s32 %s51, 1
    %p55 = scmp.eq.s32.totalorder %s17, 1
    %p56 = scmp.ne.s32.totalorder %s51, %s53
    %p57 = scmp.eq.s32.totalorder %s17, 0
    %p58 = por %p56, %p57
    %p59 = scmp.ne.s32.totalorder %s51, %s53
    %p60 = scmp.eq.s32.totalorder %s22, 1
    %p61 = por %p59, %p60
    %p62 = scmp.ne.s32.totalorder %s53, %s54
    %p63 = scmp.eq.s32.totalorder %s22, 0
    %p64 = por %p62, %p63
    %p65 = scmp.ne.s32.totalorder %s53, %s54
    %p66 = scmp.eq.s32.totalorder %s23, 1
    %p67 = por %p65, %p66
    %p69 = scmp.ne.s32.totalorder %s54, %s68
    %p70 = scmp.eq.s32.totalorder %s23, 0
    %p71 = por %p69, %p70
    %s73 = sadd.s32 %s72, 1
    %p76 = scmp.eq.s32.totalorder %s17, 1
    %p77 = scmp.ne.s32.totalorder %s72, %s74
    %p78 = scmp.eq.s32.totalorder %s17, 0
    %p79 = por %p77, %p78
    %p80 = scmp.ne.s32.totalorder %s72, %s74
    %p81 = scmp.eq.s32.totalorder %s22, 1
    %p82 = por %p80, %p81
    %p83 = scmp.ne.s32.totalorder %s74, %s75
    %p84 = scmp.eq.s32.totalorder %s22, 0
    %p85 = por %p83, %p84
    %p86 = scmp.ne.s32.totalorder %s74, %s75
    %p87 = scmp.eq.s32.totalorder %s23, 1
    %p88 = por %p86, %p87
    %p90 = scmp.ne.s32.totalorder %s75, %s89
    %p91 = scmp.eq.s32.totalorder %s23, 0
    %p92 = por %p90, %p91
    %s94 = sadd.s32 %s93, 1
    %p97 = scmp.eq.s32.totalorder %s17, 1
    %p98 = scmp.ne.s32.totalorder %s93, %s95
    %p99 = scmp.eq.s32.totalorder %s17, 0
    %p100 = por %p98, %p99
    %p101 = scmp.ne.s32.totalorder %s93, %s95
    %p102 = scmp.eq.s32.totalorder %s22, 1
    %p103 = por %p101, %p102
    %p104 = scmp.ne.s32.totalorder %s95, %s96
    %p105 = scmp.eq.s32.totalorder %s22, 0
    %p106 = por %p104, %p105
    %p107 = scmp.ne.s32.totalorder %s95, %s96
    %p108 = scmp.eq.s32.totalorder %s23, 1
    %p109 = por %p107, %p108
    %p111 = scmp.ne.s32.totalorder %s96, %s110
    %p112 = scmp.eq.s32.totalorder %s23, 0
    %p113 = por %p111, %p112
    %s115 = sadd.s32 %s114, 1
    %p118 = scmp.eq.s32.totalorder %s17, 1
    %p119 = scmp.ne.s32.totalorder %s114, %s116
    %p120 = scmp.eq.s32.totalorder %s17, 0
    %p121 = por %p119, %p120
    %p122 = scmp.ne.s32.totalorder %s114, %s116
    %p123 = scmp.eq.s32.totalorder %s22, 1
    %p124 = por %p122, %p123
    %p125 = scmp.ne.s32.totalorder %s116, %s117
    %p126 = scmp.eq.s32.totalorder %s22, 0
    %p127 = por %p125, %p126
    %p128 = scmp.ne.s32.totalorder %s116, %s117
    %p129 = scmp.eq.s32.totalorder %s23, 1
    %p130 = por %p128, %p129
    %p132 = scmp.ne.s32.totalorder %s117, %s131
    %p133 = scmp.eq.s32.totalorder %s23, 0
    %p134 = por %p132, %p133
    %s136 = sadd.s32 %s135, 1
    %p139 = scmp.eq.s32.totalorder %s17, 1
    %p140 = scmp.ne.s32.totalorder %s135, %s137
    %p141 = scmp.eq.s32.totalorder %s17, 0
    %p142 = por %p140, %p141
    %p143 = scmp.ne.s32.totalorder %s135, %s137
    %p144 = scmp.eq.s32.totalorder %s22, 1
    %p145 = por %p143, %p144
    %p146 = scmp.ne.s32.totalorder %s137, %s138
    %p147 = scmp.eq.s32.totalorder %s22, 0
    %p148 = por %p146, %p147
    %p149 = scmp.ne.s32.totalorder %s137, %s138
    %p150 = scmp.eq.s32.totalorder %s23, 1
    %p151 = por %p149, %p150
    %p153 = scmp.ne.s32.totalorder %s138, %s152
    %p154 = scmp.eq.s32.totalorder %s23, 0
    %p155 = por %p153, %p154
    %s157 = sadd.s32 %s156, 1
    %p160 = scmp.eq.s32.totalorder %s17, 1
    %p161 = scmp.ne.s32.totalorder %s156, %s158
    %p162 = scmp.eq.s32.totalorder %s17, 0
    %p163 = por %p161, %p162
    %p164 = scmp.ne.s32.totalorder %s156, %s158
    %p165 = scmp.eq.s32.totalorder %s22, 1
    %p166 = por %p164, %p165
    %p167 = scmp.ne.s32.totalorder %s158, %s159
    %p168 = scmp.eq.s32.totalorder %s22, 0
    %p169 = por %p167, %p168
    %p170 = scmp.ne.s32.totalorder %s158, %s159
    %p171 = scmp.eq.s32.totalorder %s23, 1
    %p172 = por %p170, %p171
    %p174 = scmp.ne.s32.totalorder %s159, %s173
    %p175 = scmp.eq.s32.totalorder %s23, 0
    %p176 = por %p174, %p175
    %s178 = sadd.s32 %s177, 1
    %p181 = scmp.eq.s32.totalorder %s17, 1
    %p182 = scmp.ne.s32.totalorder %s177, %s179
    %p183 = scmp.eq.s32.totalorder %s17, 0
    %p184 = por %p182, %p183
    %p185 = scmp.ne.s32.totalorder %s177, %s179
    %p186 = scmp.eq.s32.totalorder %s22, 1
    %p187 = por %p185, %p186
    %p188 = scmp.ne.s32.totalorder %s179, %s180
    %p189 = scmp.eq.s32.totalorder %s22, 0
    %p190 = por %p188, %p189
    %p191 = scmp.ne.s32.totalorder %s179, %s180
    %p192 = scmp.eq.s32.totalorder %s23, 1
    %p193 = por %p191, %p192
    %p195 = scmp.ne.s32.totalorder %s180, %s194
    %p196 = scmp.eq.s32.totalorder %s23, 0
    %p197 = por %p195, %p196
    %s199 = sadd.s32 %s198, 1
    %p202 = scmp.eq.s32.totalorder %s17, 1
    %p203 = scmp.ne.s32.totalorder %s198, %s200
    %p204 = scmp.eq.s32.totalorder %s17, 0
    %p205 = por %p203, %p204
    %p206 = scmp.ne.s32.totalorder %s198, %s200
    %p207 = scmp.eq.s32.totalorder %s22, 1
    %p208 = por %p206, %p207
    %p209 = scmp.ne.s32.totalorder %s200, %s201
    %p210 = scmp.eq.s32.totalorder %s22, 0
    %p211 = por %p209, %p210
    %p212 = scmp.ne.s32.totalorder %s200, %s201
    %p213 = scmp.eq.s32.totalorder %s23, 1
    %p214 = por %p212, %p213
    %p216 = scmp.ne.s32.totalorder %s201, %s215
    %p217 = scmp.eq.s32.totalorder %s23, 0
    %p218 = por %p216, %p217
    %s219 = ssub.s32 %s17, %s24
    %p220 = scmp.eq.s32.totalorder %s219, 0
    %s222 = sadd.s32 %s221, 1
    %s223 = scalar_select %p220, %s221, %s222
    %p226 = pneg %p220
    %p227 = scmp.eq.s32.totalorder %s17, 1
    %p228 = por %p226, %p227
    %p229 = scmp.ne.s32.totalorder %s221, %s224
    %p230 = scmp.eq.s32.totalorder %s17, 0
    %p231 = por %p229, %p230
    %p232 = scmp.ne.s32.totalorder %s221, %s224
    %p233 = scmp.eq.s32.totalorder %s22, 1
    %p234 = por %p232, %p233
    %p235 = scmp.ne.s32.totalorder %s224, %s225
    %p236 = scmp.eq.s32.totalorder %s22, 0
    %p237 = por %p235, %p236
    %p238 = scmp.ne.s32.totalorder %s224, %s225
    %p239 = scmp.eq.s32.totalorder %s23, 1
    %p240 = por %p238, %p239
    %p242 = scmp.ne.s32.totalorder %s225, %s241
    %p243 = scmp.eq.s32.totalorder %s23, 0
    %p244 = por %p242, %p243
    %p245 = scmp.le.s32.totalorder 1, %s17
    %p246 = scmp.lt.s32.totalorder %s17, 3
    %p247 = pnand %p245, %p246
    %p248 = pneg %p247
    // Predicated region
    $region9: #{discriminator_forward.1} parent=5 // pred_check
      _
    $region10: #{discriminator_forward.1} parent=5 // pred_check_branch
      %250 = sbr.rel (%p247) target = $region12
    $region11: #{discriminator_forward.1} parent=5 // pred_region
      %s251 = ssub.s32 %s17, 1
      // Predicated region
      $region13: #{discriminator_forward.1} parent=11 // pred_check
        %p252 = pneg %p64
      $region14: #{discriminator_forward.1} parent=11 // pred_check_branch
        %254 = sbr.rel (%p252) target = $region16
      $region15: #{discriminator_forward.1} parent=11 // pred_region
        _
      $region16: #{discriminator_forward.1} parent=11 // pred_fallthru
        _
      // Predicated region
      $region17: #{discriminator_forward.1} parent=11 // pred_check
        %p255 = pneg %p85
      $region18: #{discriminator_forward.1} parent=11 // pred_check_branch
        %257 = sbr.rel (%p255) target = $region20
      $region19: #{discriminator_forward.1} parent=11 // pred_region
        _
      $region20: #{discriminator_forward.1} parent=11 // pred_fallthru
        _
      // Predicated region
      $region21: #{discriminator_forward.1} parent=11 // pred_check
        %p258 = pneg %p106
      $region22: #{discriminator_forward.1} parent=11 // pred_check_branch
        %260 = sbr.rel (%p258) target = $region24
      $region23: #{discriminator_forward.1} parent=11 // pred_region
        _
      $region24: #{discriminator_forward.1} parent=11 // pred_fallthru
        _
      // Predicated region
      $region25: #{discriminator_forward.1} parent=11 // pred_check
        %p261 = pneg %p127
      $region26: #{discriminator_forward.1} parent=11 // pred_check_branch
        %263 = sbr.rel (%p261) target = $region28
      $region27: #{discriminator_forward.1} parent=11 // pred_region
        _
      $region28: #{discriminator_forward.1} parent=11 // pred_fallthru
        _
      // Predicated region
      $region29: #{discriminator_forward.1} parent=11 // pred_check
        %p264 = pneg %p148
      $region30: #{discriminator_forward.1} parent=11 // pred_check_branch
        %266 = sbr.rel (%p264) target = $region32
      $region31: #{discriminator_forward.1} parent=11 // pred_region
        _
      $region32: #{discriminator_forward.1} parent=11 // pred_fallthru
        _
      // Predicated region
      $region33: #{discriminator_forward.1} parent=11 // pred_check
        %p267 = pneg %p169
      $region34: #{discriminator_forward.1} parent=11 // pred_check_branch
        %269 = sbr.rel (%p267) target = $region36
      $region35: #{discriminator_forward.1} parent=11 // pred_region
        _
      $region36: #{discriminator_forward.1} parent=11 // pred_fallthru
        _
      // Predicated region
      $region37: #{discriminator_forward.1} parent=11 // pred_check
        %p270 = pneg %p190
      $region38: #{discriminator_forward.1} parent=11 // pred_check_branch
        %272 = sbr.rel (%p270) target = $region40
      $region39: #{discriminator_forward.1} parent=11 // pred_region
        _
      $region40: #{discriminator_forward.1} parent=11 // pred_fallthru
        _
      // Predicated region
      $region41: #{discriminator_forward.1} parent=11 // pred_check
        %p273 = pneg %p211
      $region42: #{discriminator_forward.1} parent=11 // pred_check_branch
        %275 = sbr.rel (%p273) target = $region44
      $region43: #{discriminator_forward.1} parent=11 // pred_region
        _
      $region44: #{discriminator_forward.1} parent=11 // pred_fallthru
        _
    $region12: #{discriminator_forward.1} parent=5 // pred_fallthru
      _
    %p276 = scmp.lt.s32.totalorder %s17, 2
    // Predicated region
    $region45: #{discriminator_forward.1} parent=5 // pred_check
      %p277 = pneg %p276
    $region46: #{discriminator_forward.1} parent=5 // pred_check_branch
      %279 = sbr.rel (%p277) target = $region48
    $region47: #{discriminator_forward.1} parent=5 // pred_region
      // Predicated region
      $region49: #{discriminator_forward.1} parent=47 // pred_check
        %p280 = pneg %p37
      $region50: #{discriminator_forward.1} parent=47 // pred_check_branch
        %282 = sbr.rel (%p280) target = $region52
      $region51: #{discriminator_forward.1} parent=47 // pred_region
        %p283 = scmp.lt.s32.totalorder %s17, 1
        %s284 = scalar_select %p283, %s17, 1
        %s285 = smul.addr %s284, 40
        %s286 = smul.addr %s285, 8
        %s287 = scalar_lea.vmem %s0, %s286
      $region52: #{discriminator_forward.1} parent=47 // pred_fallthru
        _
    $region48: #{discriminator_forward.1} parent=5 // pred_fallthru
      _
    %p288 = scmp.le.s32.totalorder 1, %s17
    %p289 = scmp.lt.s32.totalorder %s17, 3
    %p290 = pnand %p288, %p289
    %p291 = pneg %p290
    // Predicated region
    $region53: #{discriminator_forward.1} parent=5 // pred_check
      _
    $region54: #{discriminator_forward.1} parent=5 // pred_check_branch
      %293 = sbr.rel (%p290) target = $region56
    $region55: #{discriminator_forward.1} parent=5 // pred_region
      %s294 = ssub.s32 %s17, 1
      %p295 = scmp.lt.s32.totalorder %s22, 1
      %s296 = scalar_select %p295, %s22, 1
      %s297 = smul.addr %s296, 40
      %s298 = smul.addr %s297, 8
      %s299 = scalar_lea.vmem %s0, %s298
      %p300 = pneg %p43
      %p301 = pneg %p40
      %p302 = pneg %p64
      %p303 = pneg %p61
      %p304 = pneg %p85
      %p305 = pneg %p82
      %p306 = pneg %p106
      %p307 = pneg %p103
      %p308 = pneg %p127
      %p309 = pneg %p124
      %p310 = pneg %p148
      %p311 = pneg %p145
      %p312 = pneg %p169
      %p313 = pneg %p166
      %p314 = pneg %p190
      %p315 = pneg %p187
      %p316 = pneg %p211
      %p317 = pneg %p208
      %p318 = pneg %p237
      %p319 = pneg %p234
      %p320 = scmp.lt.s32.totalorder %s22, 1
      %s321 = scalar_select %p320, %s22, 1
      %s322 = scalar_lea.vmem %s9, %s321
      %p323 = scmp.lt.s32.totalorder %s22, 1
      %s324 = scalar_select %p323, %s22, 1
      %s325 = smul.addr %s324, 40
      %s326 = smul.addr %s325, 8
      %s327 = scalar_lea.vmem %s0, %s326
      %p328 = scmp.lt.s32.totalorder %s22, 1
      %s329 = scalar_select %p328, %s22, 1
      %s330 = scalar_lea.vmem %s9, %s329
      %vm331 = vcmask 261120
      %332 = vst.msk [vmem:[#allocation2] sm:$0xff] %vm331, 0.0
      %333 = vst.msk [vmem:[#allocation2 + $0x8] sm:$0xff] %vm331, 0.0
      %vm334 = vcmask 258048
      %335 = vst.msk [vmem:[#allocation2 + $0x10] sm:$0x1f] %vm334, 0.0
      %336 = vst.msk [vmem:[#allocation2 + $0x18] sm:$0xff] %vm331, 0.0
      %337 = vst.msk [vmem:[#allocation2 + $0x20] sm:$0xff] %vm331, 0.0
      %338 = vst.msk [vmem:[#allocation2 + $0x28] sm:$0x1f] %vm334, 0.0
      %339 = vst.msk [vmem:[#allocation2 + $0x30] sm:$0xff] %vm331, 0.0
      %340 = vst.msk [vmem:[#allocation2 + $0x38] sm:$0xff] %vm331, 0.0
      %341 = vst.msk [vmem:[#allocation2 + $0x40] sm:$0x1f] %vm334, 0.0
      %342 = vst.msk [vmem:[#allocation2 + $0x48] sm:$0xff] %vm331, 0.0
      %343 = vst.msk [vmem:[#allocation2 + $0x50] sm:$0xff] %vm331, 0.0
      %344 = vst.msk [vmem:[#allocation2 + $0x58] sm:$0x1f] %vm334, 0.0
      %345 = vst.msk [vmem:[#allocation2 + $0x60] sm:$0xff] %vm331, 0.0
      %346 = vst.msk [vmem:[#allocation2 + $0x68] sm:$0xff] %vm331, 0.0
      %347 = vst.msk [vmem:[#allocation2 + $0x70] sm:$0x1f] %vm334, 0.0
      %348 = vst.msk [vmem:[#allocation2 + $0x78] sm:$0xff] %vm331, 0.0
      %349 = vst.msk [vmem:[#allocation2 + $0x80] sm:$0xff] %vm331, 0.0
      %350 = vst.msk [vmem:[#allocation2 + $0x88] sm:$0x1f] %vm334, 0.0
      %351 = vst.msk [vmem:[#allocation2 + $0x90] sm:$0xff] %vm331, 0.0
      %352 = vst.msk [vmem:[#allocation2 + $0x98] sm:$0xff] %vm331, 0.0
      %353 = vst.msk [vmem:[#allocation2 + $0xa0] sm:$0x1f] %vm334, 0.0
      %354 = vst.msk [vmem:[#allocation2 + $0xa8] sm:$0xff] %vm331, 0.0
      %355 = vst.msk [vmem:[#allocation2 + $0xb0] sm:$0xff] %vm331, 0.0
      %356 = vst.msk [vmem:[#allocation2 + $0xb8] sm:$0x1f] %vm334, 0.0
      %357 = vst.msk [vmem:[#allocation2 + $0xc0] sm:$0xff] %vm331, 0.0
      %358 = vst.msk [vmem:[#allocation2 + $0xc8] sm:$0xff] %vm331, 0.0
      %359 = vst.msk [vmem:[#allocation2 + $0xd0] sm:$0x1f] %vm334, 0.0
      %360 = vst.msk [vmem:[#allocation2 + $0xd8] sm:$0xff] %vm331, 0.0
      %361 = vst.msk [vmem:[#allocation2 + $0xe0] sm:$0xff] %vm331, 0.0
      %362 = vst.msk [vmem:[#allocation2 + $0xe8] sm:$0x1f] %vm334, 0.0
      %363 = vst.msk [vmem:[#allocation3] sm:$0xff] %vm331, 0.0
      %364 = vst.msk [vmem:[#allocation3 + $0x8] sm:$0xff] %vm331, 0.0
      %365 = vst.msk [vmem:[#allocation3 + $0x10] sm:$0x1f] %vm334, 0.0
      %366 = vst.msk [vmem:[#allocation3 + $0x18] sm:$0xff] %vm331, 0.0
      %367 = vst.msk [vmem:[#allocation3 + $0x20] sm:$0xff] %vm331, 0.0
      %368 = vst.msk [vmem:[#allocation3 + $0x28] sm:$0x1f] %vm334, 0.0
      %369 = vst.msk [vmem:[#allocation3 + $0x30] sm:$0xff] %vm331, 0.0
      %370 = vst.msk [vmem:[#allocation3 + $0x38] sm:$0xff] %vm331, 0.0
      %371 = vst.msk [vmem:[#allocation3 + $0x40] sm:$0x1f] %vm334, 0.0
      %372 = vst.msk [vmem:[#allocation3 + $0x48] sm:$0xff] %vm331, 0.0
      %373 = vst.msk [vmem:[#allocation3 + $0x50] sm:$0xff] %vm331, 0.0
      %374 = vst.msk [vmem:[#allocation3 + $0x58] sm:$0x1f] %vm334, 0.0
      %375 = vst.msk [vmem:[#allocation3 + $0x60] sm:$0xff] %vm331, 0.0
      %376 = vst.msk [vmem:[#allocation3 + $0x68] sm:$0xff] %vm331, 0.0
      %377 = vst.msk [vmem:[#allocation3 + $0x70] sm:$0x1f] %vm334, 0.0
      %378 = vst.msk [vmem:[#allocation3 + $0x78] sm:$0xff] %vm331, 0.0
      %379 = vst.msk [vmem:[#allocation3 + $0x80] sm:$0xff] %vm331, 0.0
      %380 = vst.msk [vmem:[#allocation3 + $0x88] sm:$0x1f] %vm334, 0.0
      %381 = vst.msk [vmem:[#allocation3 + $0x90] sm:$0xff] %vm331, 0.0
      %382 = vst.msk [vmem:[#allocation3 + $0x98] sm:$0xff] %vm331, 0.0
      %383 = vst.msk [vmem:[#allocation3 + $0xa0] sm:$0x1f] %vm334, 0.0
      %384 = vst.msk [vmem:[#allocation3 + $0xa8] sm:$0xff] %vm331, 0.0
      %385 = vst.msk [vmem:[#allocation3 + $0xb0] sm:$0xff] %vm331, 0.0
      %386 = vst.msk [vmem:[#allocation3 + $0xb8] sm:$0x1f] %vm334, 0.0
      %387 = vst.msk [vmem:[#allocation3 + $0xc0] sm:$0xff] %vm331, 0.0
      %388 = vst.msk [vmem:[#allocation3 + $0xc8] sm:$0xff] %vm331, 0.0
      %389 = vst.msk [vmem:[#allocation3 + $0xd0] sm:$0x1f] %vm334, 0.0
      %390 = vst.msk [vmem:[#allocation3 + $0xd8] sm:$0xff] %vm331, 0.0
      %391 = vst.msk [vmem:[#allocation3 + $0xe0] sm:$0xff] %vm331, 0.0
      %392 = vst.msk [vmem:[#allocation3 + $0xe8] sm:$0x1f] %vm334, 0.0
      %393 = vst.msk [vmem:[#allocation4] sm:$0xff] %vm331, 0.0
      %vm394 = vcmask 256000
      %395 = vst.msk [vmem:[#allocation4 + $0x8] sm:$0x7] %vm394, 0.0
      %396 = vst.msk [vmem:[#allocation4 + $0x10] sm:$0xff] %vm331, 0.0
      %397 = vst.msk [vmem:[#allocation4 + $0x18] sm:$0x7] %vm394, 0.0
      %398 = vst.msk [vmem:[#allocation4 + $0x20] sm:$0xff] %vm331, 0.0
      %399 = vst.msk [vmem:[#allocation4 + $0x28] sm:$0x7] %vm394, 0.0
      %400 = vst.msk [vmem:[#allocation4 + $0x30] sm:$0xff] %vm331, 0.0
      %401 = vst.msk [vmem:[#allocation4 + $0x38] sm:$0x7] %vm394, 0.0
      %402 = vst.msk [vmem:[#allocation4 + $0x40] sm:$0xff] %vm331, 0.0
      %403 = vst.msk [vmem:[#allocation4 + $0x48] sm:$0x7] %vm394, 0.0
      %404 = vst.msk [vmem:[#allocation4 + $0x50] sm:$0xff] %vm331, 0.0
      %405 = vst.msk [vmem:[#allocation4 + $0x58] sm:$0x7] %vm394, 0.0
      %406 = vst.msk [vmem:[#allocation5] sm:$0xff] %vm331, 0.0
      %407 = vst.msk [vmem:[#allocation5 + $0x8] sm:$0x7] %vm394, 0.0
      %408 = vst.msk [vmem:[#allocation5 + $0x10] sm:$0xff] %vm331, 0.0
      %409 = vst.msk [vmem:[#allocation5 + $0x18] sm:$0x7] %vm394, 0.0
      %410 = vst.msk [vmem:[#allocation5 + $0x20] sm:$0xff] %vm331, 0.0
      %411 = vst.msk [vmem:[#allocation5 + $0x28] sm:$0x7] %vm394, 0.0
      %412 = vst.msk [vmem:[#allocation5 + $0x30] sm:$0xff] %vm331, 0.0
      %413 = vst.msk [vmem:[#allocation5 + $0x38] sm:$0x7] %vm394, 0.0
      %414 = vst.msk [vmem:[#allocation5 + $0x40] sm:$0xff] %vm331, 0.0
      %415 = vst.msk [vmem:[#allocation5 + $0x48] sm:$0x7] %vm394, 0.0
      %416 = vst.msk [vmem:[#allocation5 + $0x50] sm:$0xff] %vm331, 0.0
      %417 = vst.msk [vmem:[#allocation5 + $0x58] sm:$0x7] %vm394, 0.0
      %v418 = vlaneseq
      %v419 = vshrl.u32 %v418, 7
      %v420 = vadd.s32 %v419, 8
      %v421 = vadd.s32 %v419, 16
      %v422 = vlaneseq
      %v423 = vand.u32 %v422, 127
      %v424 = vmul.u32 %v419, 2
      %v425 = vmul.u32 %v420, 2
      %v426 = vmul.u32 %v421, 2
      %v427 = vsub.s32 %v424, 1
      %v428 = vsub.s32 %v425, 1
      %v429 = vsub.s32 %v426, 1
      %vm430 = vcmp.eq.s32.totalorder %v423, %v427
      %vm431 = vcmp.eq.s32.totalorder %v423, %v428
      %vm432 = vcmp.eq.s32.totalorder %v423, %v429
      %v433 = vsel %vm430, 1, 0
      %v434 = vsel %vm431, 1, 0
      %v435 = vsel %vm432, 1, 0
      %v436 = vcvt.s32.f32 %v433
      %v437 = vcvt.s32.f32 %v434
      %v438 = vcvt.s32.f32 %v435
      %vm439 = vcmp.eq.s32.totalorder %v423, %v424
      %vm440 = vcmp.eq.s32.totalorder %v423, %v425
      %vm441 = vcmp.eq.s32.totalorder %v423, %v426
      %v442 = vsel %vm439, 1, 0
      %v443 = vsel %vm440, 1, 0
      %v444 = vsel %vm441, 1, 0
      %v445 = vcvt.s32.f32 %v442
      %v446 = vcvt.s32.f32 %v443
      %v447 = vcvt.s32.f32 %v444
      %v448 = vld [vmem:[%s327] sm:$0xff]
      %v449 = vld [vmem:[%s327 + $0x8] sm:$0xff]
      %v450 = vld [vmem:[%s327 + $0x10] sm:$0xff]
      %v451 = vld [vmem:[%s327 + $0x18] sm:$0xff]
      %v452 = vld [vmem:[%s327 + $0x20] sm:$0xff]
      %v453 = vld [vmem:[%s327 + $0x28] sm:$0xff]
      %v454 = vld [vmem:[%s327 + $0x30] sm:$0xff]
      %v455 = vld [vmem:[%s327 + $0x38] sm:$0xff]
      %v456 = vld [vmem:[%s327 + $0x40] sm:$0xff]
      %v457 = vld [vmem:[%s327 + $0x48] sm:$0xff]
      %v458 = vld [vmem:[%s327 + $0x50] sm:$0xff]
      %v459 = vld [vmem:[%s327 + $0x58] sm:$0xff]
      %v460 = vld [vmem:[%s327 + $0x60] sm:$0xff]
      %v461 = vld [vmem:[%s327 + $0x68] sm:$0xff]
      %v462 = vld [vmem:[%s327 + $0x70] sm:$0xff]
      %v463 = vld [vmem:[%s327 + $0x78] sm:$0xff]
      %v464 = vld [vmem:[%s327 + $0x80] sm:$0xff]
      %v465 = vld [vmem:[%s327 + $0x88] sm:$0xff]
      %v466 = vld [vmem:[%s327 + $0x90] sm:$0xff]
      %v467 = vld [vmem:[%s327 + $0x98] sm:$0xff]
      %v468 = vld [vmem:[%s327 + $0xa0] sm:$0xff]
      %v469 = vld [vmem:[%s327 + $0xa8] sm:$0xff]
      %v470 = vld [vmem:[%s327 + $0xb0] sm:$0xff]
      %v471 = vld [vmem:[%s327 + $0xb8] sm:$0xff]
      %v472 = vld [vmem:[%s327 + $0xc0] sm:$0xff]
      %v473 = vld [vmem:[%s327 + $0xc8] sm:$0xff]
      %v474 = vld [vmem:[%s327 + $0xd0] sm:$0xff]
      %v475 = vld [vmem:[%s327 + $0xd8] sm:$0xff]
      %v476 = vld [vmem:[%s327 + $0xe0] sm:$0xff]
      %v477 = vld [vmem:[%s327 + $0xe8] sm:$0xff]
      %v478 = vld [vmem:[%s327 + $0xf0] sm:$0xff]
      %v479 = vld [vmem:[%s327 + $0xf8] sm:$0xff]
      %v480 = vld [vmem:[%s327 + $0x100] sm:$0xff]
      %v481 = vld [vmem:[%s327 + $0x108] sm:$0xff]
      %v482 = vld [vmem:[%s327 + $0x110] sm:$0xff]
      %v483 = vld [vmem:[%s327 + $0x118] sm:$0xff]
      %v484 = vld [vmem:[%s327 + $0x120] sm:$0xff]
      %v485 = vld [vmem:[%s327 + $0x128] sm:$0xff]
      %v486 = vld [vmem:[%s327 + $0x130] sm:$0xff]
      %v487 = vld [vmem:[%s327 + $0x138] sm:$0xff]
      %v488 = vld [vmem:[%s1] sm:$0xff]
      %v489 = vld [vmem:[%s1 + $0x8] sm:$0x1]
      %v490 = vld [vmem:[%s2] sm:$0x1]
      %v492 = vlaneseq
      %v493 = vshrl.u32 %v492, 7
      %v494 = vsub.s32 0, %v493
      %v495 = vrot.slane %v490, %v494
      %vm497 = vcmask 72704
      %v499 = vsel %vm497, %v448, 0
      %v502 = vsel %vm497, %v449, 0
      %v505 = vsel %vm497, %v450, 0
      %v508 = vsel %vm497, %v451, 0
      %v511 = vsel %vm497, %v452, 0
      %v514 = vsel %vm497, %v453, 0
      %v517 = vsel %vm497, %v454, 0
      %v520 = vsel %vm497, %v455, 0
      %v523 = vsel %vm497, %v456, 0
      %v526 = vsel %vm497, %v457, 0
      %v529 = vsel %vm497, %v458, 0
      %v532 = vsel %vm497, %v459, 0
      %v535 = vsel %vm497, %v460, 0
      %v538 = vsel %vm497, %v461, 0
      %v541 = vsel %vm497, %v462, 0
      %v544 = vsel %vm497, %v463, 0
      %v547 = vsel %vm497, %v464, 0
      %v550 = vsel %vm497, %v465, 0
      %v553 = vsel %vm497, %v466, 0
      %v556 = vsel %vm497, %v467, 0
      %v559 = vsel %vm497, %v468, 0
      %v562 = vsel %vm497, %v469, 0
      %v565 = vsel %vm497, %v470, 0
      %v568 = vsel %vm497, %v471, 0
      %v571 = vsel %vm497, %v472, 0
      %v574 = vsel %vm497, %v473, 0
      %v577 = vsel %vm497, %v474, 0
      %v580 = vsel %vm497, %v475, 0
      %v583 = vsel %vm497, %v476, 0
      %v586 = vsel %vm497, %v477, 0
      %v589 = vsel %vm497, %v478, 0
      %v592 = vsel %vm497, %v479, 0
      %v595 = vsel %vm497, %v480, 0
      %v598 = vsel %vm497, %v481, 0
      %v601 = vsel %vm497, %v482, 0
      %v604 = vsel %vm497, %v483, 0
      %v607 = vsel %vm497, %v484, 0
      %v610 = vsel %vm497, %v485, 0
      %v613 = vsel %vm497, %v486, 0
      %v616 = vsel %vm497, %v487, 0
      %vm618 = vcmask 1040384
      %v620 = vsel %vm618, %v489, 0
      %622 = vmatprep.subr.mxu0 0.0
      %623 = vmatpush1.msra.mxu0 %v488
      %624 = vmatprep.subr.mxu0 0.0
      %625 = vmatpush1.msra.mxu0 %v620
      %626 = vmatprep.subr.mxu0 0.0
      %627 = vmatpush1.msra.mxu0 0.0
      %628 = vmatprep.subr.mxu0 0.0
      %629 = vmatpush1.msra.mxu0 0.0
      %630 = vmatprep.subr.mxu0 0.0
      %631 = vmatpush1.msra.mxu0 0.0
      %632 = vmatprep.subr.mxu0 0.0
      %633 = vmatpush1.msra.mxu0 0.0
      %634 = vmatprep.subr.mxu0 0.0
      %635 = vmatpush1.msra.mxu0 0.0
      %636 = vmatprep.subr.mxu0 0.0
      %637 = vmatpush1.msra.mxu0 0.0
      %638 = vmatprep.subr.mxu0 0.0
      %639 = vmatpush1.msra.mxu0 0.0
      %640 = vmatprep.subr.mxu0 0.0
      %641 = vmatpush1.msra.mxu0 0.0
      %642 = vmatprep.subr.mxu0 0.0
      %643 = vmatpush1.msra.mxu0 0.0
      %644 = vmatprep.subr.mxu0 0.0
      %645 = vmatpush1.msra.mxu0 0.0
      %646 = vmatprep.subr.mxu0 0.0
      %647 = vmatpush1.msra.mxu0 0.0
      %648 = vmatprep.subr.mxu0 0.0
      %649 = vmatpush1.msra.mxu0 0.0
      %650 = vmatprep.subr.mxu0 0.0
      %651 = vmatpush1.msra.mxu0 0.0
      %652 = vmatprep.subr.mxu0 0.0
      %653 = vmatpush1.msra.mxu0 0.0
      %654 = vmatprep.subr.mxu0 0.0
      %655 = vmatpush1.msra.mxu0 0.0
      %656 = vmatprep.subr.mxu0 0.0
      %657 = vmatpush1.msra.mxu0 0.0
      %658 = vmatprep.subr.mxu0 0.0
      %659 = vmatpush1.msra.mxu0 0.0
      %660 = vmatprep.subr.mxu0 0.0
      %661 = vmatpush1.msra.mxu0 0.0
      %662 = vmatprep.subr.mxu0 0.0
      %663 = vmatpush1.msra.mxu0 0.0
      %664 = vmatprep.subr.mxu0 0.0
      %665 = vmatpush1.msra.mxu0 0.0
      %666 = vmatprep.subr.mxu0 0.0
      %667 = vmatpush1.msra.mxu0 0.0
      %668 = vmatprep.subr.mxu0 0.0
      %669 = vmatpush1.msra.mxu0 0.0
      %670 = vmatprep.subr.mxu0 0.0
      %671 = vmatpush1.msra.mxu0 0.0
      %672 = vmatprep.subr.mxu0 0.0
      %673 = vmatpush1.msra.mxu0 0.0
      %674 = vmatprep.subr.mxu0 0.0
      %675 = vmatpush1.msra.mxu0 0.0
      %676 = vmatprep.subr.mxu0 0.0
      %677 = vmatpush1.msra.mxu0 0.0
      %678 = vmatprep.subr.mxu0 0.0
      %679 = vmatpush1.msra.mxu0 0.0
      %680 = vmatprep.subr.mxu0 0.0
      %681 = vmatpush1.msra.mxu0 0.0
      %682 = vmatprep.subr.mxu0 0.0
      %683 = vmatpush1.msra.mxu0 0.0
      %684 = vmatprep.subr.mxu0 0.0
      %685 = vmatpush1.msra.mxu0 0.0
      %686 = vmatprep.mubr.f32.mxu0 0.0
      %687 = vmatmul.mubr.f32.gmra.mrb[0].mxu0 %v499
      %v688 = vpop.f32.mrb[0].mxu0
      %v689 = vadd.f32 %v495, %v688
      %v690 = vpop.f32.mrb[0].mxu0
      %691 = vmatprep.mubr.f32.mxu0 0.0
      %692 = vmatmul.mubr.f32.gmra.mrb[0].mxu0 %v502
      %v693 = vpop.f32.mrb[0].mxu0
      %v694 = vadd.f32 %v495, %v693
      %v695 = vpop.f32.mrb[0].mxu0
      %696 = vmatprep.mubr.f32.mxu0 0.0
      %697 = vmatmul.mubr.f32.gmra.mrb[0].mxu0 %v505
      %v698 = vpop.f32.mrb[0].mxu0
      %v699 = vadd.f32 %v495, %v698
      %v700 = vpop.f32.mrb[0].mxu0
      %701 = vmatprep.mubr.f32.mxu0 0.0
      %702 = vmatmul.mubr.f32.gmra.mrb[0].mxu0 %v508
      %v703 = vpop.f32.mrb[0].mxu0
      %v704 = vadd.f32 %v495, %v703
      %v705 = vpop.f32.mrb[0].mxu0
      %706 = vmatprep.mubr.f32.mxu0 0.0
      %707 = vmatmul.mubr.f32.gmra.mrb[0].mxu0 %v511
      %v708 = vpop.f32.mrb[0].mxu0
      %v709 = vadd.f32 %v495, %v708
      %v710 = vpop.f32.mrb[0].mxu0
      %711 = vmatprep.mubr.f32.mxu0 0.0
      %712 = vmatmul.mubr.f32.gmra.mrb[0].mxu0 %v514
      %v713 = vpop.f32.mrb[0].mxu0
      %v714 = vadd.f32 %v495, %v713
      %v715 = vpop.f32.mrb[0].mxu0
      %716 = vmatprep.mubr.f32.mxu0 0.0
      %717 = vmatmul.mubr.f32.gmra.mrb[0].mxu0 %v517
      %v718 = vpop.f32.mrb[0].mxu0
      %v719 = vadd.f32 %v495, %v718
      %v720 = vpop.f32.mrb[0].mxu0
      %721 = vmatprep.mubr.f32.mxu0 0.0
      %722 = vmatmul.mubr.f32.gmra.mrb[0].mxu0 %v520
      %v723 = vpop.f32.mrb[0].mxu0
      %v724 = vadd.f32 %v495, %v723
      %v725 = vpop.f32.mrb[0].mxu0
      %726 = vmatprep.mubr.f32.mxu0 0.0
      %727 = vmatmul.mubr.f32.gmra.mrb[0].mxu0 %v523
      %v728 = vpop.f32.mrb[0].mxu0
      %v729 = vadd.f32 %v495, %v728
      %v730 = vpop.f32.mrb[0].mxu0
      %731 = vmatprep.mubr.f32.mxu0 0.0
      %732 = vmatmul.mubr.f32.gmra.mrb[0].mxu0 %v526
      %v733 = vpop.f32.mrb[0].mxu0
      %v734 = vadd.f32 %v495, %v733
      %v735 = vpop.f32.mrb[0].mxu0
      %736 = vmatprep.mubr.f32.mxu0 0.0
      %737 = vmatmul.mubr.f32.gmra.mrb[0].mxu0 %v529
      %v738 = vpop.f32.mrb[0].mxu0
      %v739 = vadd.f32 %v495, %v738
      %v740 = vpop.f32.mrb[0].mxu0
      %741 = vmatprep.mubr.f32.mxu0 0.0
      %742 = vmatmul.mubr.f32.gmra.mrb[0].mxu0 %v532
      %v743 = vpop.f32.mrb[0].mxu0
      %v744 = vadd.f32 %v495, %v743
      %v745 = vpop.f32.mrb[0].mxu0
      %746 = vmatprep.mubr.f32.mxu0 0.0
      %747 = vmatmul.mubr.f32.gmra.mrb[0].mxu0 %v535
      %v748 = vpop.f32.mrb[0].mxu0
      %v749 = vadd.f32 %v495, %v748
      %v750 = vpop.f32.mrb[0].mxu0
      %751 = vmatprep.mubr.f32.mxu0 0.0
      %752 = vmatmul.mubr.f32.gmra.mrb[0].mxu0 %v538
      %v753 = vpop.f32.mrb[0].mxu0
      %v754 = vadd.f32 %v495, %v753
      %v755 = vpop.f32.mrb[0].mxu0
      %756 = vmatprep.mubr.f32.mxu0 0.0
      %757 = vmatmul.mubr.f32.gmra.mrb[0].mxu0 %v541
      %v758 = vpop.f32.mrb[0].mxu0
      %v759 = vadd.f32 %v495, %v758
      %v760 = vpop.f32.mrb[0].mxu0
      %761 = vmatprep.mubr.f32.mxu0 0.0
      %762 = vmatmul.mubr.f32.gmra.mrb[0].mxu0 %v544
      %v763 = vpop.f32.mrb[0].mxu0
      %v764 = vadd.f32 %v495, %v763
      %v765 = vpop.f32.mrb[0].mxu0
      %766 = vmatprep.mubr.f32.mxu0 0.0
      %767 = vmatmul.mubr.f32.gmra.mrb[0].mxu0 %v547
      %v768 = vpop.f32.mrb[0].mxu0
      %v769 = vadd.f32 %v495, %v768
      %v770 = vpop.f32.mrb[0].mxu0
      %771 = vmatprep.mubr.f32.mxu0 0.0
      %772 = vmatmul.mubr.f32.gmra.mrb[0].mxu0 %v550
      %v773 = vpop.f32.mrb[0].mxu0
      %v774 = vadd.f32 %v495, %v773
      %v775 = vpop.f32.mrb[0].mxu0
      %776 = vmatprep.mubr.f32.mxu0 0.0
      %777 = vmatmul.mubr.f32.gmra.mrb[0].mxu0 %v553
      %v778 = vpop.f32.mrb[0].mxu0
      %v779 = vadd.f32 %v495, %v778
      %v780 = vpop.f32.mrb[0].mxu0
      %781 = vmatprep.mubr.f32.mxu0 0.0
      %782 = vmatmul.mubr.f32.gmra.mrb[0].mxu0 %v556
      %v783 = vpop.f32.mrb[0].mxu0
      %v784 = vadd.f32 %v495, %v783
      %v785 = vpop.f32.mrb[0].mxu0
      %786 = vmatprep.mubr.f32.mxu0 0.0
      %787 = vmatmul.mubr.f32.gmra.mrb[0].mxu0 %v559
      %v788 = vpop.f32.mrb[0].mxu0
      %v789 = vadd.f32 %v495, %v788
      %v790 = vpop.f32.mrb[0].mxu0
      %791 = vmatprep.mubr.f32.mxu0 0.0
      %792 = vmatmul.mubr.f32.gmra.mrb[0].mxu0 %v562
      %v793 = vpop.f32.mrb[0].mxu0
      %v794 = vadd.f32 %v495, %v793
      %v795 = vpop.f32.mrb[0].mxu0
      %796 = vmatprep.mubr.f32.mxu0 0.0
      %797 = vmatmul.mubr.f32.gmra.mrb[0].mxu0 %v565
      %v798 = vpop.f32.mrb[0].mxu0
      %v799 = vadd.f32 %v495, %v798
      %v800 = vpop.f32.mrb[0].mxu0
      %801 = vmatprep.mubr.f32.mxu0 0.0
      %802 = vmatmul.mubr.f32.gmra.mrb[0].mxu0 %v568
      %v803 = vpop.f32.mrb[0].mxu0
      %v804 = vadd.f32 %v495, %v803
      %v805 = vpop.f32.mrb[0].mxu0
      %806 = vmatprep.mubr.f32.mxu0 0.0
      %807 = vmatmul.mubr.f32.gmra.mrb[0].mxu0 %v571
      %v808 = vpop.f32.mrb[0].mxu0
      %v809 = vadd.f32 %v495, %v808
      %v810 = vpop.f32.mrb[0].mxu0
      %811 = vmatprep.mubr.f32.mxu0 0.0
      %812 = vmatmul.mubr.f32.gmra.mrb[0].mxu0 %v574
      %v813 = vpop.f32.mrb[0].mxu0
      %v814 = vadd.f32 %v495, %v813
      %v815 = vpop.f32.mrb[0].mxu0
      %816 = vmatprep.mubr.f32.mxu0 0.0
      %817 = vmatmul.mubr.f32.gmra.mrb[0].mxu0 %v577
      %v818 = vpop.f32.mrb[0].mxu0
      %v819 = vadd.f32 %v495, %v818
      %v820 = vpop.f32.mrb[0].mxu0
      %821 = vmatprep.mubr.f32.mxu0 0.0
      %822 = vmatmul.mubr.f32.gmra.mrb[0].mxu0 %v580
      %v823 = vpop.f32.mrb[0].mxu0
      %v824 = vadd.f32 %v495, %v823
      %v825 = vpop.f32.mrb[0].mxu0
      %826 = vmatprep.mubr.f32.mxu0 0.0
      %827 = vmatmul.mubr.f32.gmra.mrb[0].mxu0 %v583
      %v828 = vpop.f32.mrb[0].mxu0
      %v829 = vadd.f32 %v495, %v828
      %v830 = vpop.f32.mrb[0].mxu0
      %831 = vmatprep.mubr.f32.mxu0 0.0
      %832 = vmatmul.mubr.f32.gmra.mrb[0].mxu0 %v586
      %v833 = vpop.f32.mrb[0].mxu0
      %v834 = vadd.f32 %v495, %v833
      %v835 = vpop.f32.mrb[0].mxu0
      %836 = vmatprep.mubr.f32.mxu0 0.0
      %837 = vmatmul.mubr.f32.gmra.mrb[0].mxu0 %v589
      %v838 = vpop.f32.mrb[0].mxu0
      %v839 = vadd.f32 %v495, %v838
      %v840 = vpop.f32.mrb[0].mxu0
      %841 = vmatprep.mubr.f32.mxu0 0.0
      %842 = vmatmul.mubr.f32.gmra.mrb[0].mxu0 %v592
      %v843 = vpop.f32.mrb[0].mxu0
      %v844 = vadd.f32 %v495, %v843
      %v845 = vpop.f32.mrb[0].mxu0
      %846 = vmatprep.mubr.f32.mxu0 0.0
      %847 = vmatmul.mubr.f32.gmra.mrb[0].mxu0 %v595
      %v848 = vpop.f32.mrb[0].mxu0
      %v849 = vadd.f32 %v495, %v848
      %v850 = vpop.f32.mrb[0].mxu0
      %851 = vmatprep.mubr.f32.mxu0 0.0
      %852 = vmatmul.mubr.f32.gmra.mrb[0].mxu0 %v598
      %v853 = vpop.f32.mrb[0].mxu0
      %v854 = vadd.f32 %v495, %v853
      %v855 = vpop.f32.mrb[0].mxu0
      %856 = vmatprep.mubr.f32.mxu0 0.0
      %857 = vmatmul.mubr.f32.gmra.mrb[0].mxu0 %v601
      %v858 = vpop.f32.mrb[0].mxu0
      %v859 = vadd.f32 %v495, %v858
      %v860 = vpop.f32.mrb[0].mxu0
      %861 = vmatprep.mubr.f32.mxu0 0.0
      %862 = vmatmul.mubr.f32.gmra.mrb[0].mxu0 %v604
      %v863 = vpop.f32.mrb[0].mxu0
      %v864 = vadd.f32 %v495, %v863
      %v865 = vpop.f32.mrb[0].mxu0
      %866 = vmatprep.mubr.f32.mxu0 0.0
      %867 = vmatmul.mubr.f32.gmra.mrb[0].mxu0 %v607
      %v868 = vpop.f32.mrb[0].mxu0
      %v869 = vadd.f32 %v495, %v868
      %v870 = vpop.f32.mrb[0].mxu0
      %871 = vmatprep.mubr.f32.mxu0 0.0
      %872 = vmatmul.mubr.f32.gmra.mrb[0].mxu0 %v610
      %v873 = vpop.f32.mrb[0].mxu0
      %v874 = vadd.f32 %v495, %v873
      %v875 = vpop.f32.mrb[0].mxu0
      %876 = vmatprep.mubr.f32.mxu0 0.0
      %877 = vmatmul.mubr.f32.gmra.mrb[0].mxu0 %v613
      %v878 = vpop.f32.mrb[0].mxu0
      %v879 = vadd.f32 %v495, %v878
      %v880 = vpop.f32.mrb[0].mxu0
      %881 = vmatprep.mubr.f32.mxu0 0.0
      %882 = vmatmul.mubr.f32.gmra.mrb[0].mxu0 %v616
      %v883 = vpop.f32.mrb[0].mxu0
      %v884 = vadd.f32 %v495, %v883
      %v885 = vpop.f32.mrb[0].mxu0
      %886 = vdwg.mxu0
      %vm887 = vcmp.ge.f32.partialorder %v689, 0.0
      %vm888 = vcmp.ge.f32.partialorder %v694, 0.0
      %vm889 = vcmp.ge.f32.partialorder %v699, 0.0
      %vm890 = vcmp.ge.f32.partialorder %v704, 0.0
      %vm891 = vcmp.ge.f32.partialorder %v709, 0.0
      %vm892 = vcmp.ge.f32.partialorder %v714, 0.0
      %vm893 = vcmp.ge.f32.partialorder %v719, 0.0
      %vm894 = vcmp.ge.f32.partialorder %v724, 0.0
      %vm895 = vcmp.ge.f32.partialorder %v729, 0.0
      %vm896 = vcmp.ge.f32.partialorder %v734, 0.0
      %vm897 = vcmp.ge.f32.partialorder %v739, 0.0
      %vm898 = vcmp.ge.f32.partialorder %v744, 0.0
      %vm899 = vcmp.ge.f32.partialorder %v749, 0.0
      %vm900 = vcmp.ge.f32.partialorder %v754, 0.0
      %vm901 = vcmp.ge.f32.partialorder %v759, 0.0
      %vm902 = vcmp.ge.f32.partialorder %v764, 0.0
      %vm903 = vcmp.ge.f32.partialorder %v769, 0.0
      %vm904 = vcmp.ge.f32.partialorder %v774, 0.0
      %vm905 = vcmp.ge.f32.partialorder %v779, 0.0
      %vm906 = vcmp.ge.f32.partialorder %v784, 0.0
      %vm907 = vcmp.ge.f32.partialorder %v789, 0.0
      %vm908 = vcmp.ge.f32.partialorder %v794, 0.0
      %vm909 = vcmp.ge.f32.partialorder %v799, 0.0
      %vm910 = vcmp.ge.f32.partialorder %v804, 0.0
      %vm911 = vcmp.ge.f32.partialorder %v809, 0.0
      %vm912 = vcmp.ge.f32.partialorder %v814, 0.0
      %vm913 = vcmp.ge.f32.partialorder %v819, 0.0
      %vm914 = vcmp.ge.f32.partialorder %v824, 0.0
      %vm915 = vcmp.ge.f32.partialorder %v829, 0.0
      %vm916 = vcmp.ge.f32.partialorder %v834, 0.0
      %vm917 = vcmp.ge.f32.partialorder %v839, 0.0
      %vm918 = vcmp.ge.f32.partialorder %v844, 0.0
      %vm919 = vcmp.ge.f32.partialorder %v849, 0.0
      %vm920 = vcmp.ge.f32.partialorder %v854, 0.0
      %vm921 = vcmp.ge.f32.partialorder %v859, 0.0
      %vm922 = vcmp.ge.f32.partialorder %v864, 0.0
      %vm923 = vcmp.ge.f32.partialorder %v869, 0.0
      %vm924 = vcmp.ge.f32.partialorder %v874, 0.0
      %vm925 = vcmp.ge.f32.partialorder %v879, 0.0
      %vm926 = vcmp.ge.f32.partialorder %v884, 0.0
      %v927 = vmul.f32 %v689, 0.2
      %v928 = vmul.f32 %v694, 0.2
      %v929 = vmul.f32 %v699, 0.2
      %v930 = vmul.f32 %v704, 0.2
      %v931 = vmul.f32 %v709, 0.2
      %v932 = vmul.f32 %v714, 0.2
      %v933 = vmul.f32 %v719, 0.2
      %v934 = vmul.f32 %v724, 0.2
      %v935 = vmul.f32 %v729, 0.2
      %v936 = vmul.f32 %v734, 0.2
      %v937 = vmul.f32 %v739, 0.2
      %v938 = vmul.f32 %v744, 0.2
      %v939 = vmul.f32 %v749, 0.2
      %v940 = vmul.f32 %v754, 0.2
      %v941 = vmul.f32 %v759, 0.2
      %v942 = vmul.f32 %v764, 0.2
      %v943 = vmul.f32 %v769, 0.2
      %v944 = vmul.f32 %v774, 0.2
      %v945 = vmul.f32 %v779, 0.2
      %v946 = vmul.f32 %v784, 0.2
      %v947 = vmul.f32 %v789, 0.2
      %v948 = vmul.f32 %v794, 0.2
      %v949 = vmul.f32 %v799, 0.2
      %v950 = vmul.f32 %v804, 0.2
      %v951 = vmul.f32 %v809, 0.2
      %v952 = vmul.f32 %v814, 0.2
      %v953 = vmul.f32 %v819, 0.2
      %v954 = vmul.f32 %v824, 0.2
      %v955 = vmul.f32 %v829, 0.2
      %v956 = vmul.f32 %v834, 0.2
      %v957 = vmul.f32 %v839, 0.2
      %v958 = vmul.f32 %v844, 0.2
      %v959 = vmul.f32 %v849, 0.2
      %v960 = vmul.f32 %v854, 0.2
      %v961 = vmul.f32 %v859, 0.2
      %v962 = vmul.f32 %v864, 0.2
      %v963 = vmul.f32 %v869, 0.2
      %v964 = vmul.f32 %v874, 0.2
      %v965 = vmul.f32 %v879, 0.2
      %v966 = vmul.f32 %v884, 0.2
      %v967 = vsel %vm887, %v689, %v927
      %v968 = vsel %vm888, %v694, %v928
      %v969 = vsel %vm889, %v699, %v929
      %v970 = vsel %vm890, %v704, %v930
      %v971 = vsel %vm891, %v709, %v931
      %v972 = vsel %vm892, %v714, %v932
      %v973 = vsel %vm893, %v719, %v933
      %v974 = vsel %vm894, %v724, %v934
      %v975 = vsel %vm895, %v729, %v935
      %v976 = vsel %vm896, %v734, %v936
      %v977 = vsel %vm897, %v739, %v937
      %v978 = vsel %vm898, %v744, %v938
      %v979 = vsel %vm899, %v749, %v939
      %v980 = vsel %vm900, %v754, %v940
      %v981 = vsel %vm901, %v759, %v941
      %v982 = vsel %vm902, %v764, %v942
      %v983 = vsel %vm903, %v769, %v943
      %v984 = vsel %vm904, %v774, %v944
      %v985 = vsel %vm905, %v779, %v945
      %v986 = vsel %vm906, %v784, %v946
      %v987 = vsel %vm907, %v789, %v947
      %v988 = vsel %vm908, %v794, %v948
      %v989 = vsel %vm909, %v799, %v949
      %v990 = vsel %vm910, %v804, %v950
      %v991 = vsel %vm911, %v809, %v951
      %v992 = vsel %vm912, %v814, %v952
      %v993 = vsel %vm913, %v819, %v953
      %v994 = vsel %vm914, %v824, %v954
      %v995 = vsel %vm915, %v829, %v955
      %v996 = vsel %vm916, %v834, %v956
      %v997 = vsel %vm917, %v839, %v957
      %v998 = vsel %vm918, %v844, %v958
      %v999 = vsel %vm919, %v849, %v959
      %v1000 = vsel %vm920, %v854, %v960
      %v1001 = vsel %vm921, %v859, %v961
      %v1002 = vsel %vm922, %v864, %v962
      %v1003 = vsel %vm923, %v869, %v963
      %v1004 = vsel %vm924, %v874, %v964
      %v1005 = vsel %vm925, %v879, %v965
      %v1006 = vsel %vm926, %v884, %v966
      %vm1007 = vcmask 326656
      %v1009 = vsel %vm1007, %v436, 0
      %v1012 = vsel %vm1007, %v437, 0
      %v1015 = vsel %vm1007, %v438, 0
      %1017 = vmatprep.subr.mxu0 0.0
      %1018 = vmatpush1.msra.mxu0 %v967
      %1019 = vmatprep.subr.mxu0 0.0
      %1020 = vmatpush1.msra.mxu0 %v968
      %1021 = vmatprep.subr.mxu0 0.0
      %1022 = vmatpush1.msra.mxu0 %v969
      %1023 = vmatprep.subr.mxu0 0.0
      %1024 = vmatpush1.msra.mxu0 %v970
      %1025 = vmatprep.subr.mxu0 0.0
      %1026 = vmatpush1.msra.mxu0 %v971
      %1027 = vmatprep.subr.mxu0 0.0
      %1028 = vmatpush1.msra.mxu0 0.0
      %1029 = vmatprep.subr.mxu0 0.0
      %1030 = vmatpush1.msra.mxu0 0.0
      %1031 = vmatprep.subr.mxu0 0.0
      %1032 = vmatpush1.msra.mxu0 0.0
      %1033 = vmatprep.subr.mxu0 0.0
      %1034 = vmatpush1.msra.mxu0 0.0
      %1035 = vmatprep.subr.mxu0 0.0
      %1036 = vmatpush1.msra.mxu0 0.0
      %1037 = vmatprep.subr.mxu0 0.0
      %1038 = vmatpush1.msra.mxu0 0.0
      %1039 = vmatprep.subr.mxu0 0.0
      %1040 = vmatpush1.msra.mxu0 0.0
      %1041 = vmatprep.subr.mxu0 0.0
      %1042 = vmatpush1.msra.mxu0 0.0
      %1043 = vmatprep.subr.mxu0 0.0
      %1044 = vmatpush1.msra.mxu0 0.0
      %1045 = vmatprep.subr.mxu0 0.0
      %1046 = vmatpush1.msra.mxu0 0.0
      %1047 = vmatprep.subr.mxu0 0.0
      %1048 = vmatpush1.msra.mxu0 0.0
      %1049 = vmatprep.subr.mxu0 0.0
      %1050 = vmatpush1.msra.mxu0 0.0
      %1051 = vmatprep.subr.mxu0 0.0
      %1052 = vmatpush1.msra.mxu0 0.0
      %1053 = vmatprep.subr.mxu0 0.0
      %1054 = vmatpush1.msra.mxu0 0.0
      %1055 = vmatprep.subr.mxu0 0.0
      %1056 = vmatpush1.msra.mxu0 0.0
      %1057 = vmatprep.subr.mxu0 0.0
      %1058 = vmatpush1.msra.mxu0 0.0
      %1059 = vmatprep.subr.mxu0 0.0
      %1060 = vmatpush1.msra.mxu0 0.0
      %1061 = vmatprep.subr.mxu0 0.0
      %1062 = vmatpush1.msra.mxu0 0.0
      %1063 = vmatprep.subr.mxu0 0.0
      %1064 = vmatpush1.msra.mxu0 0.0
      %1065 = vmatprep.subr.mxu0 0.0
      %1066 = vmatpush1.msra.mxu0 0.0
      %1067 = vmatprep.subr.mxu0 0.0
      %1068 = vmatpush1.msra.mxu0 0.0
      %1069 = vmatprep.subr.mxu0 0.0
      %1070 = vmatpush1.msra.mxu0 0.0
      %1071 = vmatprep.subr.mxu0 0.0
      %1072 = vmatpush1.msra.mxu0 0.0
      %1073 = vmatprep.subr.mxu0 0.0
      %1074 = vmatpush1.msra.mxu0 0.0
      %1075 = vmatprep.subr.mxu0 0.0
      %1076 = vmatpush1.msra.mxu0 0.0
      %1077 = vmatprep.subr.mxu0 0.0
      %1078 = vmatpush1.msra.mxu0 0.0
      %1079 = vmatprep.subr.mxu0 0.0
      %1080 = vmatpush1.msra.mxu0 0.0
      %1081 = vmatprep.mubr.f32.mxu0 0.0
      %1082 = vmatmul.mubr.f32.gmra.mrb[0].mxu0 %v1009
      %v1083 = vpop.f32.mrb[0].mxu0
      %v1084 = vadd.f32 0.0, %v1083
      %v1085 = vpop.f32.mrb[0].mxu0
      %1086 = vmatprep.mubr.f32.mxu0 0.0
      %1087 = vmatmul.mubr.f32.gmra.mrb[0].mxu0 %v1012
      %v1088 = vpop.f32.mrb[0].mxu0
      %v1089 = vadd.f32 0.0, %v1088
      %v1090 = vpop.f32.mrb[0].mxu0
      %1091 = vmatprep.mubr.f32.mxu0 0.0
      %1092 = vmatmul.mubr.f32.gmra.mrb[0].mxu0 %v1015
      %v1093 = vpop.f32.mrb[0].mxu0
      %v1094 = vadd.f32 0.0, %v1093
      %v1095 = vpop.f32.mrb[0].mxu0
      %1096 = vdwg.mxu0
      %s1097 = scalar_lea.vmem [#allocation2], 24
      %1098 = vst.msk [vmem:[%s1097] sm:$0xff] %vm331, %v1084
      %1099 = vst.msk [vmem:[%s1097 + $0x8] sm:$0xff] %vm331, %v1089
      %1100 = vst.msk [vmem:[%s1097 + $0x10] sm:$0x1f] %vm334, %v1094
      %v1102 = vsel %vm1007, %v445, 0
      %v1105 = vsel %vm1007, %v446, 0
      %v1108 = vsel %vm1007, %v447, 0
      %1110 = vmatprep.subr.mxu0 0.0
      %1111 = vmatpush1.msra.mxu0 %v967
      %1112 = vmatprep.subr.mxu0 0.0
      %1113 = vmatpush1.msra.mxu0 %v968
      %1114 = vmatprep.subr.mxu0 0.0
      %1115 = vmatpush1.msra.mxu0 %v969
      %1116 = vmatprep.subr.mxu0 0.0
      %1117 = vmatpush1.msra.mxu0 %v970
      %1118 = vmatprep.subr.mxu0 0.0
      %1119 = vmatpush1.msra.mxu0 %v971
      %1120 = vmatprep.subr.mxu0 0.0
      %1121 = vmatpush1.msra.mxu0 0.0
      %1122 = vmatprep.subr.mxu0 0.0
      %1123 = vmatpush1.msra.mxu0 0.0
      %1124 = vmatprep.subr.mxu0 0.0
      %1125 = vmatpush1.msra.mxu0 0.0
      %1126 = vmatprep.subr.mxu0 0.0
      %1127 = vmatpush1.msra.mxu0 0.0
      %1128 = vmatprep.subr.mxu0 0.0
      %1129 = vmatpush1.msra.mxu0 0.0
      %1130 = vmatprep.subr.mxu0 0.0
      %1131 = vmatpush1.msra.mxu0 0.0
      %1132 = vmatprep.subr.mxu0 0.0
      %1133 = vmatpush1.msra.mxu0 0.0
      %1134 = vmatprep.subr.mxu0 0.0
      %1135 = vmatpush1.msra.mxu0 0.0
      %1136 = vmatprep.subr.mxu0 0.0
      %1137 = vmatpush1.msra.mxu0 0.0
      %1138 = vmatprep.subr.mxu0 0.0
      %1139 = vmatpush1.msra.mxu0 0.0
      %1140 = vmatprep.subr.mxu0 0.0
      %1141 = vmatpush1.msra.mxu0 0.0
      %1142 = vmatprep.subr.mxu0 0.0
      %1143 = vmatpush1.msra.mxu0 0.0
      %1144 = vmatprep.subr.mxu0 0.0
      %1145 = vmatpush1.msra.mxu0 0.0
      %1146 = vmatprep.subr.mxu0 0.0
      %1147 = vmatpush1.msra.mxu0 0.0
      %1148 = vmatprep.subr.mxu0 0.0
      %1149 = vmatpush1.msra.mxu0 0.0
      %1150 = vmatprep.subr.mxu0 0.0
      %1151 = vmatpush1.msra.mxu0 0.0
      %1152 = vmatprep.subr.mxu0 0.0
      %1153 = vmatpush1.msra.mxu0 0.0
      %1154 = vmatprep.subr.mxu0 0.0
      %1155 = vmatpush1.msra.mxu0 0.0
      %1156 = vmatprep.subr.mxu0 0.0
      %1157 = vmatpush1.msra.mxu0 0.0
      %1158 = vmatprep.subr.mxu0 0.0
      %1159 = vmatpush1.msra.mxu0 0.0
      %1160 = vmatprep.subr.mxu0 0.0
      %1161 = vmatpush1.msra.mxu0 0.0
      %1162 = vmatprep.subr.mxu0 0.0
      %1163 = vmatpush1.msra.mxu0 0.0
      %1164 = vmatprep.subr.mxu0 0.0
      %1165 = vmatpush1.msra.mxu0 0.0
      %1166 = vmatprep.subr.mxu0 0.0
      %1167 = vmatpush1.msra.mxu0 0.0
      %1168 = vmatprep.subr.mxu0 0.0
      %1169 = vmatpush1.msra.mxu0 0.0
      %1170 = vmatprep.subr.mxu0 0.0
      %1171 = vmatpush1.msra.mxu0 0.0
      %1172 = vmatprep.subr.mxu0 0.0
      %1173 = vmatpush1.msra.mxu0 0.0
      %1174 = vmatprep.mubr.f32.mxu0 0.0
      %1175 = vmatmul.mubr.f32.gmra.mrb[0].mxu0 %v1102
      %v1176 = vpop.f32.mrb[0].mxu0
      %v1177 = vadd.f32 0.0, %v1176
      %v1178 = vpop.f32.mrb[0].mxu0
      %1179 = vmatprep.mubr.f32.mxu0 0.0
      %1180 = vmatmul.mubr.f32.gmra.mrb[0].mxu0 %v1105
      %v1181 = vpop.f32.mrb[0].mxu0
      %v1182 = vadd.f32 0.0, %v1181
      %v1183 = vpop.f32.mrb[0].mxu0
      %1184 = vmatprep.mubr.f32.mxu0 0.0
      %1185 = vmatmul.mubr.f32.gmra.mrb[0].mxu0 %v1108
      %v1186 = vpop.f32.mrb[0].mxu0
      %v1187 = vadd.f32 0.0, %v1186
      %v1188 = vpop.f32.mrb[0].mxu0
      %1189 = vdwg.mxu0
      %s1190 = scalar_lea.vmem [#allocation3], 24
      %1191 = vst.msk [vmem:[%s1190] sm:$0xff] %vm331, %v1177
      %1192 = vst.msk [vmem:[%s1190 + $0x8] sm:$0xff] %vm331, %v1182
      %1193 = vst.msk [vmem:[%s1190 + $0x10] sm:$0x1f] %vm334, %v1187
      %1194 = vmatprep.subr.mxu0 0.0
      %1195 = vmatpush1.msra.mxu0 %v972
      %1196 = vmatprep.subr.mxu0 0.0
      %1197 = vmatpush1.msra.mxu0 %v973
      %1198 = vmatprep.subr.mxu0 0.0
      %1199 = vmatpush1.msra.mxu0 %v974
      %1200 = vmatprep.subr.mxu0 0.0
      %1201 = vmatpush1.msra.mxu0 %v975
      %1202 = vmatprep.subr.mxu0 0.0
      %1203 = vmatpush1.msra.mxu0 %v976
      %1204 = vmatprep.subr.mxu0 0.0
      %1205 = vmatpush1.msra.mxu0 0.0
      %1206 = vmatprep.subr.mxu0 0.0
      %1207 = vmatpush1.msra.mxu0 0.0
      %1208 = vmatprep.subr.mxu0 0.0
      %1209 = vmatpush1.msra.mxu0 0.0
      %1210 = vmatprep.subr.mxu0 0.0
      %1211 = vmatpush1.msra.mxu0 0.0
      %1212 = vmatprep.subr.mxu0 0.0
      %1213 = vmatpush1.msra.mxu0 0.0
      %1214 = vmatprep.subr.mxu0 0.0
      %1215 = vmatpush1.msra.mxu0 0.0
      %1216 = vmatprep.subr.mxu0 0.0
      %1217 = vmatpush1.msra.mxu0 0.0
      %1218 = vmatprep.subr.mxu0 0.0
      %1219 = vmatpush1.msra.mxu0 0.0
      %1220 = vmatprep.subr.mxu0 0.0
      %1221 = vmatpush1.msra.mxu0 0.0
      %1222 = vmatprep.subr.mxu0 0.0
      %1223 = vmatpush1.msra.mxu0 0.0
      %1224 = vmatprep.subr.mxu0 0.0
      %1225 = vmatpush1.msra.mxu0 0.0
      %1226 = vmatprep.subr.mxu0 0.0
      %1227 = vmatpush1.msra.mxu0 0.0
      %1228 = vmatprep.subr.mxu0 0.0
      %1229 = vmatpush1.msra.mxu0 0.0
      %1230 = vmatprep.subr.mxu0 0.0
      %1231 = vmatpush1.msra.mxu0 0.0
      %1232 = vmatprep.subr.mxu0 0.0
      %1233 = vmatpush1.msra.mxu0 0.0
      %1234 = vmatprep.subr.mxu0 0.0
      %1235 = vmatpush1.msra.mxu0 0.0
      %1236 = vmatprep.subr.mxu0 0.0
      %1237 = vmatpush1.msra.mxu0 0.0
      %1238 = vmatprep.subr.mxu0 0.0
      %1239 = vmatpush1.msra.mxu0 0.0
      %1240 = vmatprep.subr.mxu0 0.0
      %1241 = vmatpush1.msra.mxu0 0.0
      %1242 = vmatprep.subr.mxu0 0.0
      %1243 = vmatpush1.msra.mxu0 0.0
      %1244 = vmatprep.subr.mxu0 0.0
      %1245 = vmatpush1.msra.mxu0 0.0
      %1246 = vmatprep.subr.mxu0 0.0
      %1247 = vmatpush1.msra.mxu0 0.0
      %1248 = vmatprep.subr.mxu0 0.0
      %1249 = vmatpush1.msra.mxu0 0.0
      %1250 = vmatprep.subr.mxu0 0.0
      %1251 = vmatpush1.msra.mxu0 0.0
      %1252 = vmatprep.subr.mxu0 0.0
      %1253 = vmatpush1.msra.mxu0 0.0
      %1254 = vmatprep.subr.mxu0 0.0
      %1255 = vmatpush1.msra.mxu0 0.0
      %1256 = vmatprep.subr.mxu0 0.0
      %1257 = vmatpush1.msra.mxu0 0.0
      %1258 = vmatprep.mubr.f32.mxu0 0.0
      %1259 = vmatmul.mubr.f32.gmra.mrb[0].mxu0 %v1009
      %v1260 = vpop.f32.mrb[0].mxu0
      %v1261 = vadd.f32 0.0, %v1260
      %v1262 = vpop.f32.mrb[0].mxu0
      %1263 = vmatprep.mubr.f32.mxu0 0.0
      %1264 = vmatmul.mubr.f32.gmra.mrb[0].mxu0 %v1012
      %v1265 = vpop.f32.mrb[0].mxu0
      %v1266 = vadd.f32 0.0, %v1265
      %v1267 = vpop.f32.mrb[0].mxu0
      %1268 = vmatprep.mubr.f32.mxu0 0.0
      %1269 = vmatmul.mubr.f32.gmra.mrb[0].mxu0 %v1015
      %v1270 = vpop.f32.mrb[0].mxu0
      %v1271 = vadd.f32 0.0, %v1270
      %v1272 = vpop.f32.mrb[0].mxu0
      %1273 = vdwg.mxu0
      %s1274 = scalar_lea.vmem [#allocation2], 48
      %1275 = vst.msk [vmem:[%s1274] sm:$0xff] %vm331, %v1261
      %1276 = vst.msk [vmem:[%s1274 + $0x8] sm:$0xff] %vm331, %v1266
      %1277 = vst.msk [vmem:[%s1274 + $0x10] sm:$0x1f] %vm334, %v1271
      %1278 = vmatprep.subr.mxu0 0.0
      %1279 = vmatpush1.msra.mxu0 %v972
      %1280 = vmatprep.subr.mxu0 0.0
      %1281 = vmatpush1.msra.mxu0 %v973
      %1282 = vmatprep.subr.mxu0 0.0
      %1283 = vmatpush1.msra.mxu0 %v974
      %1284 = vmatprep.subr.mxu0 0.0
      %1285 = vmatpush1.msra.mxu0 %v975
      %1286 = vmatprep.subr.mxu0 0.0
      %1287 = vmatpush1.msra.mxu0 %v976
      %1288 = vmatprep.subr.mxu0 0.0
      %1289 = vmatpush1.msra.mxu0 0.0
      %1290 = vmatprep.subr.mxu0 0.0
      %1291 = vmatpush1.msra.mxu0 0.0
      %1292 = vmatprep.subr.mxu0 0.0
      %1293 = vmatpush1.msra.mxu0 0.0
      %1294 = vmatprep.subr.mxu0 0.0
      %1295 = vmatpush1.msra.mxu0 0.0
      %1296 = vmatprep.subr.mxu0 0.0
      %1297 = vmatpush1.msra.mxu0 0.0
      %1298 = vmatprep.subr.mxu0 0.0
      %1299 = vmatpush1.msra.mxu0 0.0
      %1300 = vmatprep.subr.mxu0 0.0
      %1301 = vmatpush1.msra.mxu0 0.0
      %1302 = vmatprep.subr.mxu0 0.0
      %1303 = vmatpush1.msra.mxu0 0.0
      %1304 = vmatprep.subr.mxu0 0.0
      %1305 = vmatpush1.msra.mxu0 0.0
      %1306 = vmatprep.subr.mxu0 0.0
      %1307 = vmatpush1.msra.mxu0 0.0
      %1308 = vmatprep.subr.mxu0 0.0
      %1309 = vmatpush1.msra.mxu0 0.0
      %1310 = vmatprep.subr.mxu0 0.0
      %1311 = vmatpush1.msra.mxu0 0.0
      %1312 = vmatprep.subr.mxu0 0.0
      %1313 = vmatpush1.msra.mxu0 0.0
      %1314 = vmatprep.subr.mxu0 0.0
      %1315 = vmatpush1.msra.mxu0 0.0
      %1316 = vmatprep.subr.mxu0 0.0
      %1317 = vmatpush1.msra.mxu0 0.0
      %1318 = vmatprep.subr.mxu0 0.0
      %1319 = vmatpush1.msra.mxu0 0.0
      %1320 = vmatprep.subr.mxu0 0.0
      %1321 = vmatpush1.msra.mxu0 0.0
      %1322 = vmatprep.subr.mxu0 0.0
      %1323 = vmatpush1.msra.mxu0 0.0
      %1324 = vmatprep.subr.mxu0 0.0
      %1325 = vmatpush1.msra.mxu0 0.0
      %1326 = vmatprep.subr.mxu0 0.0
      %1327 = vmatpush1.msra.mxu0 0.0
      %1328 = vmatprep.subr.mxu0 0.0
      %1329 = vmatpush1.msra.mxu0 0.0
      %1330 = vmatprep.subr.mxu0 0.0
      %1331 = vmatpush1.msra.mxu0 0.0
      %1332 = vmatprep.subr.mxu0 0.0
      %1333 = vmatpush1.msra.mxu0 0.0
      %1334 = vmatprep.subr.mxu0 0.0
      %1335 = vmatpush1.msra.mxu0 0.0
      %1336 = vmatprep.subr.mxu0 0.0
      %1337 = vmatpush1.msra.mxu0 0.0
      %1338 = vmatprep.subr.mxu0 0.0
      %1339 = vmatpush1.msra.mxu0 0.0
      %1340 = vmatprep.subr.mxu0 0.0
      %1341 = vmatpush1.msra.mxu0 0.0
      %1342 = vmatprep.mubr.f32.mxu0 0.0
      %1343 = vmatmul.mubr.f32.gmra.mrb[0].mxu0 %v1102
      %v1344 = vpop.f32.mrb[0].mxu0
      %v1345 = vadd.f32 0.0, %v1344
      %v1346 = vpop.f32.mrb[0].mxu0
      %1347 = vmatprep.mubr.f32.mxu0 0.0
      %1348 = vmatmul.mubr.f32.gmra.mrb[0].mxu0 %v1105
      %v1349 = vpop.f32.mrb[0].mxu0
      %v1350 = vadd.f32 0.0, %v1349
      %v1351 = vpop.f32.mrb[0].mxu0
      %1352 = vmatprep.mubr.f32.mxu0 0.0
      %1353 = vmatmul.mubr.f32.gmra.mrb[0].mxu0 %v1108
      %v1354 = vpop.f32.mrb[0].mxu0
      %v1355 = vadd.f32 0.0, %v1354
      %v1356 = vpop.f32.mrb[0].mxu0
      %1357 = vdwg.mxu0
      %s1358 = scalar_lea.vmem [#allocation3], 48
      %1359 = vst.msk [vmem:[%s1358] sm:$0xff] %vm331, %v1345
      %1360 = vst.msk [vmem:[%s1358 + $0x8] sm:$0xff] %vm331, %v1350
      %1361 = vst.msk [vmem:[%s1358 + $0x10] sm:$0x1f] %vm334, %v1355
      %1362 = vmatprep.subr.mxu0 0.0
      %1363 = vmatpush1.msra.mxu0 %v977
      %1364 = vmatprep.subr.mxu0 0.0
      %1365 = vmatpush1.msra.mxu0 %v978
      %1366 = vmatprep.subr.mxu0 0.0
      %1367 = vmatpush1.msra.mxu0 %v979
      %1368 = vmatprep.subr.mxu0 0.0
      %1369 = vmatpush1.msra.mxu0 %v980
      %1370 = vmatprep.subr.mxu0 0.0
      %1371 = vmatpush1.msra.mxu0 %v981
      %1372 = vmatprep.subr.mxu0 0.0
      %1373 = vmatpush1.msra.mxu0 0.0
      %1374 = vmatprep.subr.mxu0 0.0
      %1375 = vmatpush1.msra.mxu0 0.0
      %1376 = vmatprep.subr.mxu0 0.0
      %1377 = vmatpush1.msra.mxu0 0.0
      %1378 = vmatprep.subr.mxu0 0.0
      %1379 = vmatpush1.msra.mxu0 0.0
      %1380 = vmatprep.subr.mxu0 0.0
      %1381 = vmatpush1.msra.mxu0 0.0
      %1382 = vmatprep.subr.mxu0 0.0
      %1383 = vmatpush1.msra.mxu0 0.0
      %1384 = vmatprep.subr.mxu0 0.0
      %1385 = vmatpush1.msra.mxu0 0.0
      %1386 = vmatprep.subr.mxu0 0.0
      %1387 = vmatpush1.msra.mxu0 0.0
      %1388 = vmatprep.subr.mxu0 0.0
      %1389 = vmatpush1.msra.mxu0 0.0
      %1390 = vmatprep.subr.mxu0 0.0
      %1391 = vmatpush1.msra.mxu0 0.0
      %1392 = vmatprep.subr.mxu0 0.0
      %1393 = vmatpush1.msra.mxu0 0.0
      %1394 = vmatprep.subr.mxu0 0.0
      %1395 = vmatpush1.msra.mxu0 0.0
      %1396 = vmatprep.subr.mxu0 0.0
      %1397 = vmatpush1.msra.mxu0 0.0
      %1398 = vmatprep.subr.mxu0 0.0
      %1399 = vmatpush1.msra.mxu0 0.0
      %1400 = vmatprep.subr.mxu0 0.0
      %1401 = vmatpush1.msra.mxu0 0.0
      %1402 = vmatprep.subr.mxu0 0.0
      %1403 = vmatpush1.msra.mxu0 0.0
      %1404 = vmatprep.subr.mxu0 0.0
      %1405 = vmatpush1.msra.mxu0 0.0
      %1406 = vmatprep.subr.mxu0 0.0
      %1407 = vmatpush1.msra.mxu0 0.0
      %1408 = vmatprep.subr.mxu0 0.0
      %1409 = vmatpush1.msra.mxu0 0.0
      %1410 = vmatprep.subr.mxu0 0.0
      %1411 = vmatpush1.msra.mxu0 0.0
      %1412 = vmatprep.subr.mxu0 0.0
      %1413 = vmatpush1.msra.mxu0 0.0
      %1414 = vmatprep.subr.mxu0 0.0
      %1415 = vmatpush1.msra.mxu0 0.0
      %1416 = vmatprep.subr.mxu0 0.0
      %1417 = vmatpush1.msra.mxu0 0.0
      %1418 = vmatprep.subr.mxu0 0.0
      %1419 = vmatpush1.msra.mxu0 0.0
      %1420 = vmatprep.subr.mxu0 0.0
      %1421 = vmatpush1.msra.mxu0 0.0
      %1422 = vmatprep.subr.mxu0 0.0
      %1423 = vmatpush1.msra.mxu0 0.0
      %1424 = vmatprep.subr.mxu0 0.0
      %1425 = vmatpush1.msra.mxu0 0.0
      %1426 = vmatprep.mubr.f32.mxu0 0.0
      %1427 = vmatmul.mubr.f32.gmra.mrb[0].mxu0 %v1009
      %v1428 = vpop.f32.mrb[0].mxu0
      %v1429 = vadd.f32 0.0, %v1428
      %v1430 = vpop.f32.mrb[0].mxu0
      %1431 = vmatprep.mubr.f32.mxu0 0.0
      %1432 = vmatmul.mubr.f32.gmra.mrb[0].mxu0 %v1012
      %v1433 = vpop.f32.mrb[0].mxu0
      %v1434 = vadd.f32 0.0, %v1433
      %v1435 = vpop.f32.mrb[0].mxu0
      %1436 = vmatprep.mubr.f32.mxu0 0.0
      %1437 = vmatmul.mubr.f32.gmra.mrb[0].mxu0 %v1015
      %v1438 = vpop.f32.mrb[0].mxu0
      %v1439 = vadd.f32 0.0, %v1438
      %v1440 = vpop.f32.mrb[0].mxu0
      %1441 = vdwg.mxu0
      %s1442 = scalar_lea.vmem [#allocation2], 72
      %1443 = vst.msk [vmem:[%s1442] sm:$0xff] %vm331, %v1429
      %1444 = vst.msk [vmem:[%s1442 + $0x8] sm:$0xff] %vm331, %v1434
      %1445 = vst.msk [vmem:[%s1442 + $0x10] sm:$0x1f] %vm334, %v1439
      %1446 = vmatprep.subr.mxu0 0.0
      %1447 = vmatpush1.msra.mxu0 %v977
      %1448 = vmatprep.subr.mxu0 0.0
      %1449 = vmatpush1.msra.mxu0 %v978
      %1450 = vmatprep.subr.mxu0 0.0
      %1451 = vmatpush1.msra.mxu0 %v979
      %1452 = vmatprep.subr.mxu0 0.0
      %1453 = vmatpush1.msra.mxu0 %v980
      %1454 = vmatprep.subr.mxu0 0.0
      %1455 = vmatpush1.msra.mxu0 %v981
      %1456 = vmatprep.subr.mxu0 0.0
      %1457 = vmatpush1.msra.mxu0 0.0
      %1458 = vmatprep.subr.mxu0 0.0
      %1459 = vmatpush1.msra.mxu0 0.0
      %1460 = vmatprep.subr.mxu0 0.0
      %1461 = vmatpush1.msra.mxu0 0.0
      %1462 = vmatprep.subr.mxu0 0.0
      %1463 = vmatpush1.msra.mxu0 0.0
      %1464 = vmatprep.subr.mxu0 0.0
      %1465 = vmatpush1.msra.mxu0 0.0
      %1466 = vmatprep.subr.mxu0 0.0
      %1467 = vmatpush1.msra.mxu0 0.0
      %1468 = vmatprep.subr.mxu0 0.0
      %1469 = vmatpush1.msra.mxu0 0.0
      %1470 = vmatprep.subr.mxu0 0.0
      %1471 = vmatpush1.msra.mxu0 0.0
      %1472 = vmatprep.subr.mxu0 0.0
      %1473 = vmatpush1.msra.mxu0 0.0
      %1474 = vmatprep.subr.mxu0 0.0
      %1475 = vmatpush1.msra.mxu0 0.0
      %1476 = vmatprep.subr.mxu0 0.0
      %1477 = vmatpush1.msra.mxu0 0.0
      %1478 = vmatprep.subr.mxu0 0.0
      %1479 = vmatpush1.msra.mxu0 0.0
      %1480 = vmatprep.subr.mxu0 0.0
      %1481 = vmatpush1.msra.mxu0 0.0
      %1482 = vmatprep.subr.mxu0 0.0
      %1483 = vmatpush1.msra.mxu0 0.0
      %1484 = vmatprep.subr.mxu0 0.0
      %1485 = vmatpush1.msra.mxu0 0.0
      %1486 = vmatprep.subr.mxu0 0.0
      %1487 = vmatpush1.msra.mxu0 0.0
      %1488 = vmatprep.subr.mxu0 0.0
      %1489 = vmatpush1.msra.mxu0 0.0
      %1490 = vmatprep.subr.mxu0 0.0
      %1491 = vmatpush1.msra.mxu0 0.0
      %1492 = vmatprep.subr.mxu0 0.0
      %1493 = vmatpush1.msra.mxu0 0.0
      %1494 = vmatprep.subr.mxu0 0.0
      %1495 = vmatpush1.msra.mxu0 0.0
      %1496 = vmatprep.subr.mxu0 0.0
      %1497 = vmatpush1.msra.mxu0 0.0
      %1498 = vmatprep.subr.mxu0 0.0
      %1499 = vmatpush1.msra.mxu0 0.0
      %1500 = vmatprep.subr.mxu0 0.0
      %1501 = vmatpush1.msra.mxu0 0.0
      %1502 = vmatprep.subr.mxu0 0.0
      %1503 = vmatpush1.msra.mxu0 0.0
      %1504 = vmatprep.subr.mxu0 0.0
      %1505 = vmatpush1.msra.mxu0 0.0
      %1506 = vmatprep.subr.mxu0 0.0
      %1507 = vmatpush1.msra.mxu0 0.0
      %1508 = vmatprep.subr.mxu0 0.0
      %1509 = vmatpush1.msra.mxu0 0.0
      %1510 = vmatprep.mubr.f32.mxu0 0.0
      %1511 = vmatmul.mubr.f32.gmra.mrb[0].mxu0 %v1102
      %v1512 = vpop.f32.mrb[0].mxu0
      %v1513 = vadd.f32 0.0, %v1512
      %v1514 = vpop.f32.mrb[0].mxu0
      %1515 = vmatprep.mubr.f32.mxu0 0.0
      %1516 = vmatmul.mubr.f32.gmra.mrb[0].mxu0 %v1105
      %v1517 = vpop.f32.mrb[0].mxu0
      %v1518 = vadd.f32 0.0, %v1517
      %v1519 = vpop.f32.mrb[0].mxu0
      %1520 = vmatprep.mubr.f32.mxu0 0.0
      %1521 = vmatmul.mubr.f32.gmra.mrb[0].mxu0 %v1108
      %v1522 = vpop.f32.mrb[0].mxu0
      %v1523 = vadd.f32 0.0, %v1522
      %v1524 = vpop.f32.mrb[0].mxu0
      %1525 = vdwg.mxu0
      %s1526 = scalar_lea.vmem [#allocation3], 72
      %1527 = vst.msk [vmem:[%s1526] sm:$0xff] %vm331, %v1513
      %1528 = vst.msk [vmem:[%s1526 + $0x8] sm:$0xff] %vm331, %v1518
      %1529 = vst.msk [vmem:[%s1526 + $0x10] sm:$0x1f] %vm334, %v1523
      %1530 = vmatprep.subr.mxu0 0.0
      %1531 = vmatpush1.msra.mxu0 %v982
      %1532 = vmatprep.subr.mxu0 0.0
      %1533 = vmatpush1.msra.mxu0 %v983
      %1534 = vmatprep.subr.mxu0 0.0
      %1535 = vmatpush1.msra.mxu0 %v984
      %1536 = vmatprep.subr.mxu0 0.0
      %1537 = vmatpush1.msra.mxu0 %v985
      %1538 = vmatprep.subr.mxu0 0.0
      %1539 = vmatpush1.msra.mxu0 %v986
      %1540 = vmatprep.subr.mxu0 0.0
      %1541 = vmatpush1.msra.mxu0 0.0
      %1542 = vmatprep.subr.mxu0 0.0
      %1543 = vmatpush1.msra.mxu0 0.0
      %1544 = vmatprep.subr.mxu0 0.0
      %1545 = vmatpush1.msra.mxu0 0.0
      %1546 = vmatprep.subr.mxu0 0.0
      %1547 = vmatpush1.msra.mxu0 0.0
      %1548 = vmatprep.subr.mxu0 0.0
      %1549 = vmatpush1.msra.mxu0 0.0
      %1550 = vmatprep.subr.mxu0 0.0
      %1551 = vmatpush1.msra.mxu0 0.0
      %1552 = vmatprep.subr.mxu0 0.0
      %1553 = vmatpush1.msra.mxu0 0.0
      %1554 = vmatprep.subr.mxu0 0.0
      %1555 = vmatpush1.msra.mxu0 0.0
      %1556 = vmatprep.subr.mxu0 0.0
      %1557 = vmatpush1.msra.mxu0 0.0
      %1558 = vmatprep.subr.mxu0 0.0
      %1559 = vmatpush1.msra.mxu0 0.0
      %1560 = vmatprep.subr.mxu0 0.0
      %1561 = vmatpush1.msra.mxu0 0.0
      %1562 = vmatprep.subr.mxu0 0.0
      %1563 = vmatpush1.msra.mxu0 0.0
      %1564 = vmatprep.subr.mxu0 0.0
      %1565 = vmatpush1.msra.mxu0 0.0
      %1566 = vmatprep.subr.mxu0 0.0
      %1567 = vmatpush1.msra.mxu0 0.0
      %1568 = vmatprep.subr.mxu0 0.0
      %1569 = vmatpush1.msra.mxu0 0.0
      %1570 = vmatprep.subr.mxu0 0.0
      %1571 = vmatpush1.msra.mxu0 0.0
      %1572 = vmatprep.subr.mxu0 0.0
      %1573 = vmatpush1.msra.mxu0 0.0
      %1574 = vmatprep.subr.mxu0 0.0
      %1575 = vmatpush1.msra.mxu0 0.0
      %1576 = vmatprep.subr.mxu0 0.0
      %1577 = vmatpush1.msra.mxu0 0.0
      %1578 = vmatprep.subr.mxu0 0.0
      %1579 = vmatpush1.msra.mxu0 0.0
      %1580 = vmatprep.subr.mxu0 0.0
      %1581 = vmatpush1.msra.mxu0 0.0
      %1582 = vmatprep.subr.mxu0 0.0
      %1583 = vmatpush1.msra.mxu0 0.0
      %1584 = vmatprep.subr.mxu0 0.0
      %1585 = vmatpush1.msra.mxu0 0.0
      %1586 = vmatprep.subr.mxu0 0.0
      %1587 = vmatpush1.msra.mxu0 0.0
      %1588 = vmatprep.subr.mxu0 0.0
      %1589 = vmatpush1.msra.mxu0 0.0
      %1590 = vmatprep.subr.mxu0 0.0
      %1591 = vmatpush1.msra.mxu0 0.0
      %1592 = vmatprep.subr.mxu0 0.0
      %1593 = vmatpush1.msra.mxu0 0.0
      %1594 = vmatprep.mubr.f32.mxu0 0.0
      %1595 = vmatmul.mubr.f32.gmra.mrb[0].mxu0 %v1009
      %v1596 = vpop.f32.mrb[0].mxu0
      %v1597 = vadd.f32 0.0, %v1596
      %v1598 = vpop.f32.mrb[0].mxu0
      %1599 = vmatprep.mubr.f32.mxu0 0.0
      %1600 = vmatmul.mubr.f32.gmra.mrb[0].mxu0 %v1012
      %v1601 = vpop.f32.mrb[0].mxu0
      %v1602 = vadd.f32 0.0, %v1601
      %v1603 = vpop.f32.mrb[0].mxu0
      %1604 = vmatprep.mubr.f32.mxu0 0.0
      %1605 = vmatmul.mubr.f32.gmra.mrb[0].mxu0 %v1015
      %v1606 = vpop.f32.mrb[0].mxu0
      %v1607 = vadd.f32 0.0, %v1606
      %v1608 = vpop.f32.mrb[0].mxu0
      %1609 = vdwg.mxu0
      %s1610 = scalar_lea.vmem [#allocation2], 96
      %1611 = vst.msk [vmem:[%s1610] sm:$0xff] %vm331, %v1597
      %1612 = vst.msk [vmem:[%s1610 + $0x8] sm:$0xff] %vm331, %v1602
      %1613 = vst.msk [vmem:[%s1610 + $0x10] sm:$0x1f] %vm334, %v1607
      %1614 = vmatprep.subr.mxu0 0.0
      %1615 = vmatpush1.msra.mxu0 %v982
      %1616 = vmatprep.subr.mxu0 0.0
      %1617 = vmatpush1.msra.mxu0 %v983
      %1618 = vmatprep.subr.mxu0 0.0
      %1619 = vmatpush1.msra.mxu0 %v984
      %1620 = vmatprep.subr.mxu0 0.0
      %1621 = vmatpush1.msra.mxu0 %v985
      %1622 = vmatprep.subr.mxu0 0.0
      %1623 = vmatpush1.msra.mxu0 %v986
      %1624 = vmatprep.subr.mxu0 0.0
      %1625 = vmatpush1.msra.mxu0 0.0
      %1626 = vmatprep.subr.mxu0 0.0
      %1627 = vmatpush1.msra.mxu0 0.0
      %1628 = vmatprep.subr.mxu0 0.0
      %1629 = vmatpush1.msra.mxu0 0.0
      %1630 = vmatprep.subr.mxu0 0.0
      %1631 = vmatpush1.msra.mxu0 0.0
      %1632 = vmatprep.subr.mxu0 0.0
      %1633 = vmatpush1.msra.mxu0 0.0
      %1634 = vmatprep.subr.mxu0 0.0
      %1635 = vmatpush1.msra.mxu0 0.0
      %1636 = vmatprep.subr.mxu0 0.0
      %1637 = vmatpush1.msra.mxu0 0.0
      %1638 = vmatprep.subr.mxu0 0.0
      %1639 = vmatpush1.msra.mxu0 0.0
      %1640 = vmatprep.subr.mxu0 0.0
      %1641 = vmatpush1.msra.mxu0 0.0
      %1642 = vmatprep.subr.mxu0 0.0
      %1643 = vmatpush1.msra.mxu0 0.0
      %1644 = vmatprep.subr.mxu0 0.0
      %1645 = vmatpush1.msra.mxu0 0.0
      %1646 = vmatprep.subr.mxu0 0.0
      %1647 = vmatpush1.msra.mxu0 0.0
      %1648 = vmatprep.subr.mxu0 0.0
      %1649 = vmatpush1.msra.mxu0 0.0
      %1650 = vmatprep.subr.mxu0 0.0
      %1651 = vmatpush1.msra.mxu0 0.0
      %1652 = vmatprep.subr.mxu0 0.0
      %1653 = vmatpush1.msra.mxu0 0.0
      %1654 = vmatprep.subr.mxu0 0.0
      %1655 = vmatpush1.msra.mxu0 0.0
      %1656 = vmatprep.subr.mxu0 0.0
      %1657 = vmatpush1.msra.mxu0 0.0
      %1658 = vmatprep.subr.mxu0 0.0
      %1659 = vmatpush1.msra.mxu0 0.0
      %1660 = vmatprep.subr.mxu0 0.0
      %1661 = vmatpush1.msra.mxu0 0.0
      %1662 = vmatprep.subr.mxu0 0.0
      %1663 = vmatpush1.msra.mxu0 0.0
      %1664 = vmatprep.subr.mxu0 0.0
      %1665 = vmatpush1.msra.mxu0 0.0
      %1666 = vmatprep.subr.mxu0 0.0
      %1667 = vmatpush1.msra.mxu0 0.0
      %1668 = vmatprep.subr.mxu0 0.0
      %1669 = vmatpush1.msra.mxu0 0.0
      %1670 = vmatprep.subr.mxu0 0.0
      %1671 = vmatpush1.msra.mxu0 0.0
      %1672 = vmatprep.subr.mxu0 0.0
      %1673 = vmatpush1.msra.mxu0 0.0
      %1674 = vmatprep.subr.mxu0 0.0
      %1675 = vmatpush1.msra.mxu0 0.0
      %1676 = vmatprep.subr.mxu0 0.0
      %1677 = vmatpush1.msra.mxu0 0.0
      %1678 = vmatprep.mubr.f32.mxu0 0.0
      %1679 = vmatmul.mubr.f32.gmra.mrb[0].mxu0 %v1102
      %v1680 = vpop.f32.mrb[0].mxu0
      %v1681 = vadd.f32 0.0, %v1680
      %v1682 = vpop.f32.mrb[0].mxu0
      %1683 = vmatprep.mubr.f32.mxu0 0.0
      %1684 = vmatmul.mubr.f32.gmra.mrb[0].mxu0 %v1105
      %v1685 = vpop.f32.mrb[0].mxu0
      %v1686 = vadd.f32 0.0, %v1685
      %v1687 = vpop.f32.mrb[0].mxu0
      %1688 = vmatprep.mubr.f32.mxu0 0.0
      %1689 = vmatmul.mubr.f32.gmra.mrb[0].mxu0 %v1108
      %v1690 = vpop.f32.mrb[0].mxu0
      %v1691 = vadd.f32 0.0, %v1690
      %v1692 = vpop.f32.mrb[0].mxu0
      %1693 = vdwg.mxu0
      %s1694 = scalar_lea.vmem [#allocation3], 96
      %1695 = vst.msk [vmem:[%s1694] sm:$0xff] %vm331, %v1681
      %1696 = vst.msk [vmem:[%s1694 + $0x8] sm:$0xff] %vm331, %v1686
      %1697 = vst.msk [vmem:[%s1694 + $0x10] sm:$0x1f] %vm334, %v1691
      %1698 = vmatprep.subr.mxu0 0.0
      %1699 = vmatpush1.msra.mxu0 %v987
      %1700 = vmatprep.subr.mxu0 0.0
      %1701 = vmatpush1.msra.mxu0 %v988
      %1702 = vmatprep.subr.mxu0 0.0
      %1703 = vmatpush1.msra.mxu0 %v989
      %1704 = vmatprep.subr.mxu0 0.0
      %1705 = vmatpush1.msra.mxu0 %v990
      %1706 = vmatprep.subr.mxu0 0.0
      %1707 = vmatpush1.msra.mxu0 %v991
      %1708 = vmatprep.subr.mxu0 0.0
      %1709 = vmatpush1.msra.mxu0 0.0
      %1710 = vmatprep.subr.mxu0 0.0
      %1711 = vmatpush1.msra.mxu0 0.0
      %1712 = vmatprep.subr.mxu0 0.0
      %1713 = vmatpush1.msra.mxu0 0.0
      %1714 = vmatprep.subr.mxu0 0.0
      %1715 = vmatpush1.msra.mxu0 0.0
      %1716 = vmatprep.subr.mxu0 0.0
      %1717 = vmatpush1.msra.mxu0 0.0
      %1718 = vmatprep.subr.mxu0 0.0
      %1719 = vmatpush1.msra.mxu0 0.0
      %1720 = vmatprep.subr.mxu0 0.0
      %1721 = vmatpush1.msra.mxu0 0.0
      %1722 = vmatprep.subr.mxu0 0.0
      %1723 = vmatpush1.msra.mxu0 0.0
      %1724 = vmatprep.subr.mxu0 0.0
      %1725 = vmatpush1.msra.mxu0 0.0
      %1726 = vmatprep.subr.mxu0 0.0
      %1727 = vmatpush1.msra.mxu0 0.0
      %1728 = vmatprep.subr.mxu0 0.0
      %1729 = vmatpush1.msra.mxu0 0.0
      %1730 = vmatprep.subr.mxu0 0.0
      %1731 = vmatpush1.msra.mxu0 0.0
      %1732 = vmatprep.subr.mxu0 0.0
      %1733 = vmatpush1.msra.mxu0 0.0
      %1734 = vmatprep.subr.mxu0 0.0
      %1735 = vmatpush1.msra.mxu0 0.0
      %1736 = vmatprep.subr.mxu0 0.0
      %1737 = vmatpush1.msra.mxu0 0.0
      %1738 = vmatprep.subr.mxu0 0.0
      %1739 = vmatpush1.msra.mxu0 0.0
      %1740 = vmatprep.subr.mxu0 0.0
      %1741 = vmatpush1.msra.mxu0 0.0
      %1742 = vmatprep.subr.mxu0 0.0
      %1743 = vmatpush1.msra.mxu0 0.0
      %1744 = vmatprep.subr.mxu0 0.0
      %1745 = vmatpush1.msra.mxu0 0.0
      %1746 = vmatprep.subr.mxu0 0.0
      %1747 = vmatpush1.msra.mxu0 0.0
      %1748 = vmatprep.subr.mxu0 0.0
      %1749 = vmatpush1.msra.mxu0 0.0
      %1750 = vmatprep.subr.mxu0 0.0
      %1751 = vmatpush1.msra.mxu0 0.0
      %1752 = vmatprep.subr.mxu0 0.0
      %1753 = vmatpush1.msra.mxu0 0.0
      %1754 = vmatprep.subr.mxu0 0.0
      %1755 = vmatpush1.msra.mxu0 0.0
      %1756 = vmatprep.subr.mxu0 0.0
      %1757 = vmatpush1.msra.mxu0 0.0
      %1758 = vmatprep.subr.mxu0 0.0
      %1759 = vmatpush1.msra.mxu0 0.0
      %1760 = vmatprep.subr.mxu0 0.0
      %1761 = vmatpush1.msra.mxu0 0.0
      %1762 = vmatprep.mubr.f32.mxu0 0.0
      %1763 = vmatmul.mubr.f32.gmra.mrb[0].mxu0 %v1009
      %v1764 = vpop.f32.mrb[0].mxu0
      %v1765 = vadd.f32 0.0, %v1764
      %v1766 = vpop.f32.mrb[0].mxu0
      %1767 = vmatprep.mubr.f32.mxu0 0.0
      %1768 = vmatmul.mubr.f32.gmra.mrb[0].mxu0 %v1012
      %v1769 = vpop.f32.mrb[0].mxu0
      %v1770 = vadd.f32 0.0, %v1769
      %v1771 = vpop.f32.mrb[0].mxu0
      %1772 = vmatprep.mubr.f32.mxu0 0.0
      %1773 = vmatmul.mubr.f32.gmra.mrb[0].mxu0 %v1015
      %v1774 = vpop.f32.mrb[0].mxu0
      %v1775 = vadd.f32 0.0, %v1774
      %v1776 = vpop.f32.mrb[0].mxu0
      %1777 = vdwg.mxu0
      %s1778 = scalar_lea.vmem [#allocation2], 120
      %1779 = vst.msk [vmem:[%s1778] sm:$0xff] %vm331, %v1765
      %1780 = vst.msk [vmem:[%s1778 + $0x8] sm:$0xff] %vm331, %v1770
      %1781 = vst.msk [vmem:[%s1778 + $0x10] sm:$0x1f] %vm334, %v1775
      %1782 = vmatprep.subr.mxu0 0.0
      %1783 = vmatpush1.msra.mxu0 %v987
      %1784 = vmatprep.subr.mxu0 0.0
      %1785 = vmatpush1.msra.mxu0 %v988
      %1786 = vmatprep.subr.mxu0 0.0
      %1787 = vmatpush1.msra.mxu0 %v989
      %1788 = vmatprep.subr.mxu0 0.0
      %1789 = vmatpush1.msra.mxu0 %v990
      %1790 = vmatprep.subr.mxu0 0.0
      %1791 = vmatpush1.msra.mxu0 %v991
      %1792 = vmatprep.subr.mxu0 0.0
      %1793 = vmatpush1.msra.mxu0 0.0
      %1794 = vmatprep.subr.mxu0 0.0
      %1795 = vmatpush1.msra.mxu0 0.0
      %1796 = vmatprep.subr.mxu0 0.0
      %1797 = vmatpush1.msra.mxu0 0.0
      %1798 = vmatprep.subr.mxu0 0.0
      %1799 = vmatpush1.msra.mxu0 0.0
      %1800 = vmatprep.subr.mxu0 0.0
      %1801 = vmatpush1.msra.mxu0 0.0
      %1802 = vmatprep.subr.mxu0 0.0
      %1803 = vmatpush1.msra.mxu0 0.0
      %1804 = vmatprep.subr.mxu0 0.0
      %1805 = vmatpush1.msra.mxu0 0.0
      %1806 = vmatprep.subr.mxu0 0.0
      %1807 = vmatpush1.msra.mxu0 0.0
      %1808 = vmatprep.subr.mxu0 0.0
      %1809 = vmatpush1.msra.mxu0 0.0
      %1810 = vmatprep.subr.mxu0 0.0
      %1811 = vmatpush1.msra.mxu0 0.0
      %1812 = vmatprep.subr.mxu0 0.0
      %1813 = vmatpush1.msra.mxu0 0.0
      %1814 = vmatprep.subr.mxu0 0.0
      %1815 = vmatpush1.msra.mxu0 0.0
      %1816 = vmatprep.subr.mxu0 0.0
      %1817 = vmatpush1.msra.mxu0 0.0
      %1818 = vmatprep.subr.mxu0 0.0
      %1819 = vmatpush1.msra.mxu0 0.0
      %1820 = vmatprep.subr.mxu0 0.0
      %1821 = vmatpush1.msra.mxu0 0.0
      %1822 = vmatprep.subr.mxu0 0.0
      %1823 = vmatpush1.msra.mxu0 0.0
      %1824 = vmatprep.subr.mxu0 0.0
      %1825 = vmatpush1.msra.mxu0 0.0
      %1826 = vmatprep.subr.mxu0 0.0
      %1827 = vmatpush1.msra.mxu0 0.0
      %1828 = vmatprep.subr.mxu0 0.0
      %1829 = vmatpush1.msra.mxu0 0.0
      %1830 = vmatprep.subr.mxu0 0.0
      %1831 = vmatpush1.msra.mxu0 0.0
      %1832 = vmatprep.subr.mxu0 0.0
      %1833 = vmatpush1.msra.mxu0 0.0
      %1834 = vmatprep.subr.mxu0 0.0
      %1835 = vmatpush1.msra.mxu0 0.0
      %1836 = vmatprep.subr.mxu0 0.0
      %1837 = vmatpush1.msra.mxu0 0.0
      %1838 = vmatprep.subr.mxu0 0.0
      %1839 = vmatpush1.msra.mxu0 0.0
      %1840 = vmatprep.subr.mxu0 0.0
      %1841 = vmatpush1.msra.mxu0 0.0
      %1842 = vmatprep.subr.mxu0 0.0
      %1843 = vmatpush1.msra.mxu0 0.0
      %1844 = vmatprep.subr.mxu0 0.0
      %1845 = vmatpush1.msra.mxu0 0.0
      %1846 = vmatprep.mubr.f32.mxu0 0.0
      %1847 = vmatmul.mubr.f32.gmra.mrb[0].mxu0 %v1102
      %v1848 = vpop.f32.mrb[0].mxu0
      %v1849 = vadd.f32 0.0, %v1848
      %v1850 = vpop.f32.mrb[0].mxu0
      %1851 = vmatprep.mubr.f32.mxu0 0.0
      %1852 = vmatmul.mubr.f32.gmra.mrb[0].mxu0 %v1105
      %v1853 = vpop.f32.mrb[0].mxu0
      %v1854 = vadd.f32 0.0, %v1853
      %v1855 = vpop.f32.mrb[0].mxu0
      %1856 = vmatprep.mubr.f32.mxu0 0.0
      %1857 = vmatmul.mubr.f32.gmra.mrb[0].mxu0 %v1108
      %v1858 = vpop.f32.mrb[0].mxu0
      %v1859 = vadd.f32 0.0, %v1858
      %v1860 = vpop.f32.mrb[0].mxu0
      %1861 = vdwg.mxu0
      %s1862 = scalar_lea.vmem [#allocation3], 120
      %1863 = vst.msk [vmem:[%s1862] sm:$0xff] %vm331, %v1849
      %1864 = vst.msk [vmem:[%s1862 + $0x8] sm:$0xff] %vm331, %v1854
      %1865 = vst.msk [vmem:[%s1862 + $0x10] sm:$0x1f] %vm334, %v1859
      %1866 = vmatprep.subr.mxu0 0.0
      %1867 = vmatpush1.msra.mxu0 %v992
      %1868 = vmatprep.subr.mxu0 0.0
      %1869 = vmatpush1.msra.mxu0 %v993
      %1870 = vmatprep.subr.mxu0 0.0
      %1871 = vmatpush1.msra.mxu0 %v994
      %1872 = vmatprep.subr.mxu0 0.0
      %1873 = vmatpush1.msra.mxu0 %v995
      %1874 = vmatprep.subr.mxu0 0.0
      %1875 = vmatpush1.msra.mxu0 %v996
      %1876 = vmatprep.subr.mxu0 0.0
      %1877 = vmatpush1.msra.mxu0 0.0
      %1878 = vmatprep.subr.mxu0 0.0
      %1879 = vmatpush1.msra.mxu0 0.0
      %1880 = vmatprep.subr.mxu0 0.0
      %1881 = vmatpush1.msra.mxu0 0.0
      %1882 = vmatprep.subr.mxu0 0.0
      %1883 = vmatpush1.msra.mxu0 0.0
      %1884 = vmatprep.subr.mxu0 0.0
      %1885 = vmatpush1.msra.mxu0 0.0
      %1886 = vmatprep.subr.mxu0 0.0
      %1887 = vmatpush1.msra.mxu0 0.0
      %1888 = vmatprep.subr.mxu0 0.0
      %1889 = vmatpush1.msra.mxu0 0.0
      %1890 = vmatprep.subr.mxu0 0.0
      %1891 = vmatpush1.msra.mxu0 0.0
      %1892 = vmatprep.subr.mxu0 0.0
      %1893 = vmatpush1.msra.mxu0 0.0
      %1894 = vmatprep.subr.mxu0 0.0
      %1895 = vmatpush1.msra.mxu0 0.0
      %1896 = vmatprep.subr.mxu0 0.0
      %1897 = vmatpush1.msra.mxu0 0.0
      %1898 = vmatprep.subr.mxu0 0.0
      %1899 = vmatpush1.msra.mxu0 0.0
      %1900 = vmatprep.subr.mxu0 0.0
      %1901 = vmatpush1.msra.mxu0 0.0
      %1902 = vmatprep.subr.mxu0 0.0
      %1903 = vmatpush1.msra.mxu0 0.0
      %1904 = vmatprep.subr.mxu0 0.0
      %1905 = vmatpush1.msra.mxu0 0.0
      %1906 = vmatprep.subr.mxu0 0.0
      %1907 = vmatpush1.msra.mxu0 0.0
      %1908 = vmatprep.subr.mxu0 0.0
      %1909 = vmatpush1.msra.mxu0 0.0
      %1910 = vmatprep.subr.mxu0 0.0
      %1911 = vmatpush1.msra.mxu0 0.0
      %1912 = vmatprep.subr.mxu0 0.0
      %1913 = vmatpush1.msra.mxu0 0.0
      %1914 = vmatprep.subr.mxu0 0.0
      %1915 = vmatpush1.msra.mxu0 0.0
      %1916 = vmatprep.subr.mxu0 0.0
      %1917 = vmatpush1.msra.mxu0 0.0
      %1918 = vmatprep.subr.mxu0 0.0
      %1919 = vmatpush1.msra.mxu0 0.0
      %1920 = vmatprep.subr.mxu0 0.0
      %1921 = vmatpush1.msra.mxu0 0.0
      %1922 = vmatprep.subr.mxu0 0.0
      %1923 = vmatpush1.msra.mxu0 0.0
      %1924 = vmatprep.subr.mxu0 0.0
      %1925 = vmatpush1.msra.mxu0 0.0
      %1926 = vmatprep.subr.mxu0 0.0
      %1927 = vmatpush1.msra.mxu0 0.0
      %1928 = vmatprep.subr.mxu0 0.0
      %1929 = vmatpush1.msra.mxu0 0.0
      %1930 = vmatprep.mubr.f32.mxu0 0.0
      %1931 = vmatmul.mubr.f32.gmra.mrb[0].mxu0 %v1009
      %v1932 = vpop.f32.mrb[0].mxu0
      %v1933 = vadd.f32 0.0, %v1932
      %v1934 = vpop.f32.mrb[0].mxu0
      %1935 = vmatprep.mubr.f32.mxu0 0.0
      %1936 = vmatmul.mubr.f32.gmra.mrb[0].mxu0 %v1012
      %v1937 = vpop.f32.mrb[0].mxu0
      %v1938 = vadd.f32 0.0, %v1937
      %v1939 = vpop.f32.mrb[0].mxu0
      %1940 = vmatprep.mubr.f32.mxu0 0.0
      %1941 = vmatmul.mubr.f32.gmra.mrb[0].mxu0 %v1015
      %v1942 = vpop.f32.mrb[0].mxu0
      %v1943 = vadd.f32 0.0, %v1942
      %v1944 = vpop.f32.mrb[0].mxu0
      %1945 = vdwg.mxu0
      %s1946 = scalar_lea.vmem [#allocation2], 144
      %1947 = vst.msk [vmem:[%s1946] sm:$0xff] %vm331, %v1933
      %1948 = vst.msk [vmem:[%s1946 + $0x8] sm:$0xff] %vm331, %v1938
      %1949 = vst.msk [vmem:[%s1946 + $0x10] sm:$0x1f] %vm334, %v1943
      %1950 = vmatprep.subr.mxu0 0.0
      %1951 = vmatpush1.msra.mxu0 %v992
      %1952 = vmatprep.subr.mxu0 0.0
      %1953 = vmatpush1.msra.mxu0 %v993
      %1954 = vmatprep.subr.mxu0 0.0
      %1955 = vmatpush1.msra.mxu0 %v994
      %1956 = vmatprep.subr.mxu0 0.0
      %1957 = vmatpush1.msra.mxu0 %v995
      %1958 = vmatprep.subr.mxu0 0.0
      %1959 = vmatpush1.msra.mxu0 %v996
      %1960 = vmatprep.subr.mxu0 0.0
      %1961 = vmatpush1.msra.mxu0 0.0
      %1962 = vmatprep.subr.mxu0 0.0
      %1963 = vmatpush1.msra.mxu0 0.0
      %1964 = vmatprep.subr.mxu0 0.0
      %1965 = vmatpush1.msra.mxu0 0.0
      %1966 = vmatprep.subr.mxu0 0.0
      %1967 = vmatpush1.msra.mxu0 0.0
      %1968 = vmatprep.subr.mxu0 0.0
      %1969 = vmatpush1.msra.mxu0 0.0
      %1970 = vmatprep.subr.mxu0 0.0
      %1971 = vmatpush1.msra.mxu0 0.0
      %1972 = vmatprep.subr.mxu0 0.0
      %1973 = vmatpush1.msra.mxu0 0.0
      %1974 = vmatprep.subr.mxu0 0.0
      %1975 = vmatpush1.msra.mxu0 0.0
      %1976 = vmatprep.subr.mxu0 0.0
      %1977 = vmatpush1.msra.mxu0 0.0
      %1978 = vmatprep.subr.mxu0 0.0
      %1979 = vmatpush1.msra.mxu0 0.0
      %1980 = vmatprep.subr.mxu0 0.0
      %1981 = vmatpush1.msra.mxu0 0.0
      %1982 = vmatprep.subr.mxu0 0.0
      %1983 = vmatpush1.msra.mxu0 0.0
      %1984 = vmatprep.subr.mxu0 0.0
      %1985 = vmatpush1.msra.mxu0 0.0
      %1986 = vmatprep.subr.mxu0 0.0
      %1987 = vmatpush1.msra.mxu0 0.0
      %1988 = vmatprep.subr.mxu0 0.0
      %1989 = vmatpush1.msra.mxu0 0.0
      %1990 = vmatprep.subr.mxu0 0.0
      %1991 = vmatpush1.msra.mxu0 0.0
      %1992 = vmatprep.subr.mxu0 0.0
      %1993 = vmatpush1.msra.mxu0 0.0
      %1994 = vmatprep.subr.mxu0 0.0
      %1995 = vmatpush1.msra.mxu0 0.0
      %1996 = vmatprep.subr.mxu0 0.0
      %1997 = vmatpush1.msra.mxu0 0.0
      %1998 = vmatprep.subr.mxu0 0.0
      %1999 = vmatpush1.msra.mxu0 0.0
      %2000 = vmatprep.subr.mxu0 0.0
      %2001 = vmatpush1.msra.mxu0 0.0
      %2002 = vmatprep.subr.mxu0 0.0
      %2003 = vmatpush1.msra.mxu0 0.0
      %2004 = vmatprep.subr.mxu0 0.0
      %2005 = vmatpush1.msra.mxu0 0.0
      %2006 = vmatprep.subr.mxu0 0.0
      %2007 = vmatpush1.msra.mxu0 0.0
      %2008 = vmatprep.subr.mxu0 0.0
      %2009 = vmatpush1.msra.mxu0 0.0
      %2010 = vmatprep.subr.mxu0 0.0
      %2011 = vmatpush1.msra.mxu0 0.0
      %2012 = vmatprep.subr.mxu0 0.0
      %2013 = vmatpush1.msra.mxu0 0.0
      %2014 = vmatprep.mubr.f32.mxu0 0.0
      %2015 = vmatmul.mubr.f32.gmra.mrb[0].mxu0 %v1102
      %v2016 = vpop.f32.mrb[0].mxu0
      %v2017 = vadd.f32 0.0, %v2016
      %v2018 = vpop.f32.mrb[0].mxu0
      %2019 = vmatprep.mubr.f32.mxu0 0.0
      %2020 = vmatmul.mubr.f32.gmra.mrb[0].mxu0 %v1105
      %v2021 = vpop.f32.mrb[0].mxu0
      %v2022 = vadd.f32 0.0, %v2021
      %v2023 = vpop.f32.mrb[0].mxu0
      %2024 = vmatprep.mubr.f32.mxu0 0.0
      %2025 = vmatmul.mubr.f32.gmra.mrb[0].mxu0 %v1108
      %v2026 = vpop.f32.mrb[0].mxu0
      %v2027 = vadd.f32 0.0, %v2026
      %v2028 = vpop.f32.mrb[0].mxu0
      %2029 = vdwg.mxu0
      %s2030 = scalar_lea.vmem [#allocation3], 144
      %2031 = vst.msk [vmem:[%s2030] sm:$0xff] %vm331, %v2017
      %2032 = vst.msk [vmem:[%s2030 + $0x8] sm:$0xff] %vm331, %v2022
      %2033 = vst.msk [vmem:[%s2030 + $0x10] sm:$0x1f] %vm334, %v2027
      %2034 = vmatprep.subr.mxu0 0.0
      %2035 = vmatpush1.msra.mxu0 %v997
      %2036 = vmatprep.subr.mxu0 0.0
      %2037 = vmatpush1.msra.mxu0 %v998
      %2038 = vmatprep.subr.mxu0 0.0
      %2039 = vmatpush1.msra.mxu0 %v999
      %2040 = vmatprep.subr.mxu0 0.0
      %2041 = vmatpush1.msra.mxu0 %v1000
      %2042 = vmatprep.subr.mxu0 0.0
      %2043 = vmatpush1.msra.mxu0 %v1001
      %2044 = vmatprep.subr.mxu0 0.0
      %2045 = vmatpush1.msra.mxu0 0.0
      %2046 = vmatprep.subr.mxu0 0.0
      %2047 = vmatpush1.msra.mxu0 0.0
      %2048 = vmatprep.subr.mxu0 0.0
      %2049 = vmatpush1.msra.mxu0 0.0
      %2050 = vmatprep.subr.mxu0 0.0
      %2051 = vmatpush1.msra.mxu0 0.0
      %2052 = vmatprep.subr.mxu0 0.0
      %2053 = vmatpush1.msra.mxu0 0.0
      %2054 = vmatprep.subr.mxu0 0.0
      %2055 = vmatpush1.msra.mxu0 0.0
      %2056 = vmatprep.subr.mxu0 0.0
      %2057 = vmatpush1.msra.mxu0 0.0
      %2058 = vmatprep.subr.mxu0 0.0
      %2059 = vmatpush1.msra.mxu0 0.0
      %2060 = vmatprep.subr.mxu0 0.0
      %2061 = vmatpush1.msra.mxu0 0.0
      %2062 = vmatprep.subr.mxu0 0.0
      %2063 = vmatpush1.msra.mxu0 0.0
      %2064 = vmatprep.subr.mxu0 0.0
      %2065 = vmatpush1.msra.mxu0 0.0
      %2066 = vmatprep.subr.mxu0 0.0
      %2067 = vmatpush1.msra.mxu0 0.0
      %2068 = vmatprep.subr.mxu0 0.0
      %2069 = vmatpush1.msra.mxu0 0.0
      %2070 = vmatprep.subr.mxu0 0.0
      %2071 = vmatpush1.msra.mxu0 0.0
      %2072 = vmatprep.subr.mxu0 0.0
      %2073 = vmatpush1.msra.mxu0 0.0
      %2074 = vmatprep.subr.mxu0 0.0
      %2075 = vmatpush1.msra.mxu0 0.0
      %2076 = vmatprep.subr.mxu0 0.0
      %2077 = vmatpush1.msra.mxu0 0.0
      %2078 = vmatprep.subr.mxu0 0.0
      %2079 = vmatpush1.msra.mxu0 0.0
      %2080 = vmatprep.subr.mxu0 0.0
      %2081 = vmatpush1.msra.mxu0 0.0
      %2082 = vmatprep.subr.mxu0 0.0
      %2083 = vmatpush1.msra.mxu0 0.0
      %2084 = vmatprep.subr.mxu0 0.0
      %2085 = vmatpush1.msra.mxu0 0.0
      %2086 = vmatprep.subr.mxu0 0.0
      %2087 = vmatpush1.msra.mxu0 0.0
      %2088 = vmatprep.subr.mxu0 0.0
      %2089 = vmatpush1.msra.mxu0 0.0
      %2090 = vmatprep.subr.mxu0 0.0
      %2091 = vmatpush1.msra.mxu0 0.0
      %2092 = vmatprep.subr.mxu0 0.0
      %2093 = vmatpush1.msra.mxu0 0.0
      %2094 = vmatprep.subr.mxu0 0.0
      %2095 = vmatpush1.msra.mxu0 0.0
      %2096 = vmatprep.subr.mxu0 0.0
      %2097 = vmatpush1.msra.mxu0 0.0
      %2098 = vmatprep.mubr.f32.mxu0 0.0
      %2099 = vmatmul.mubr.f32.gmra.mrb[0].mxu0 %v1009
      %v2100 = vpop.f32.mrb[0].mxu0
      %v2101 = vadd.f32 0.0, %v2100
      %v2102 = vpop.f32.mrb[0].mxu0
      %2103 = vmatprep.mubr.f32.mxu0 0.0
      %2104 = vmatmul.mubr.f32.gmra.mrb[0].mxu0 %v1012
      %v2105 = vpop.f32.mrb[0].mxu0
      %v2106 = vadd.f32 0.0, %v2105
      %v2107 = vpop.f32.mrb[0].mxu0
      %2108 = vmatprep.mubr.f32.mxu0 0.0
      %2109 = vmatmul.mubr.f32.gmra.mrb[0].mxu0 %v1015
      %v2110 = vpop.f32.mrb[0].mxu0
      %v2111 = vadd.f32 0.0, %v2110
      %v2112 = vpop.f32.mrb[0].mxu0
      %2113 = vdwg.mxu0
      %s2114 = scalar_lea.vmem [#allocation2], 168
      %2115 = vst.msk [vmem:[%s2114] sm:$0xff] %vm331, %v2101
      %2116 = vst.msk [vmem:[%s2114 + $0x8] sm:$0xff] %vm331, %v2106
      %2117 = vst.msk [vmem:[%s2114 + $0x10] sm:$0x1f] %vm334, %v2111
      %2118 = vmatprep.subr.mxu0 0.0
      %2119 = vmatpush1.msra.mxu0 %v997
      %2120 = vmatprep.subr.mxu0 0.0
      %2121 = vmatpush1.msra.mxu0 %v998
      %2122 = vmatprep.subr.mxu0 0.0
      %2123 = vmatpush1.msra.mxu0 %v999
      %2124 = vmatprep.subr.mxu0 0.0
      %2125 = vmatpush1.msra.mxu0 %v1000
      %2126 = vmatprep.subr.mxu0 0.0
      %2127 = vmatpush1.msra.mxu0 %v1001
      %2128 = vmatprep.subr.mxu0 0.0
      %2129 = vmatpush1.msra.mxu0 0.0
      %2130 = vmatprep.subr.mxu0 0.0
      %2131 = vmatpush1.msra.mxu0 0.0
      %2132 = vmatprep.subr.mxu0 0.0
      %2133 = vmatpush1.msra.mxu0 0.0
      %2134 = vmatprep.subr.mxu0 0.0
      %2135 = vmatpush1.msra.mxu0 0.0
      %2136 = vmatprep.subr.mxu0 0.0
      %2137 = vmatpush1.msra.mxu0 0.0
      %2138 = vmatprep.subr.mxu0 0.0
      %2139 = vmatpush1.msra.mxu0 0.0
      %2140 = vmatprep.subr.mxu0 0.0
      %2141 = vmatpush1.msra.mxu0 0.0
      %2142 = vmatprep.subr.mxu0 0.0
      %2143 = vmatpush1.msra.mxu0 0.0
      %2144 = vmatprep.subr.mxu0 0.0
      %2145 = vmatpush1.msra.mxu0 0.0
      %2146 = vmatprep.subr.mxu0 0.0
      %2147 = vmatpush1.msra.mxu0 0.0
      %2148 = vmatprep.subr.mxu0 0.0
      %2149 = vmatpush1.msra.mxu0 0.0
      %2150 = vmatprep.subr.mxu0 0.0
      %2151 = vmatpush1.msra.mxu0 0.0
      %2152 = vmatprep.subr.mxu0 0.0
      %2153 = vmatpush1.msra.mxu0 0.0
      %2154 = vmatprep.subr.mxu0 0.0
      %2155 = vmatpush1.msra.mxu0 0.0
      %2156 = vmatprep.subr.mxu0 0.0
      %2157 = vmatpush1.msra.mxu0 0.0
      %2158 = vmatprep.subr.mxu0 0.0
      %2159 = vmatpush1.msra.mxu0 0.0
      %2160 = vmatprep.subr.mxu0 0.0
      %2161 = vmatpush1.msra.mxu0 0.0
      %2162 = vmatprep.subr.mxu0 0.0
      %2163 = vmatpush1.msra.mxu0 0.0
      %2164 = vmatprep.subr.mxu0 0.0
      %2165 = vmatpush1.msra.mxu0 0.0
      %2166 = vmatprep.subr.mxu0 0.0
      %2167 = vmatpush1.msra.mxu0 0.0
      %2168 = vmatprep.subr.mxu0 0.0
      %2169 = vmatpush1.msra.mxu0 0.0
      %2170 = vmatprep.subr.mxu0 0.0
      %2171 = vmatpush1.msra.mxu0 0.0
      %2172 = vmatprep.subr.mxu0 0.0
      %2173 = vmatpush1.msra.mxu0 0.0
      %2174 = vmatprep.subr.mxu0 0.0
      %2175 = vmatpush1.msra.mxu0 0.0
      %2176 = vmatprep.subr.mxu0 0.0
      %2177 = vmatpush1.msra.mxu0 0.0
      %2178 = vmatprep.subr.mxu0 0.0
      %2179 = vmatpush1.msra.mxu0 0.0
      %2180 = vmatprep.subr.mxu0 0.0
      %2181 = vmatpush1.msra.mxu0 0.0
      %2182 = vmatprep.mubr.f32.mxu0 0.0
      %2183 = vmatmul.mubr.f32.gmra.mrb[0].mxu0 %v1102
      %v2184 = vpop.f32.mrb[0].mxu0
      %v2185 = vadd.f32 0.0, %v2184
      %v2186 = vpop.f32.mrb[0].mxu0
      %2187 = vmatprep.mubr.f32.mxu0 0.0
      %2188 = vmatmul.mubr.f32.gmra.mrb[0].mxu0 %v1105
      %v2189 = vpop.f32.mrb[0].mxu0
      %v2190 = vadd.f32 0.0, %v2189
      %v2191 = vpop.f32.mrb[0].mxu0
      %2192 = vmatprep.mubr.f32.mxu0 0.0
      %2193 = vmatmul.mubr.f32.gmra.mrb[0].mxu0 %v1108
      %v2194 = vpop.f32.mrb[0].mxu0
      %v2195 = vadd.f32 0.0, %v2194
      %v2196 = vpop.f32.mrb[0].mxu0
      %2197 = vdwg.mxu0
      %s2198 = scalar_lea.vmem [#allocation3], 168
      %2199 = vst.msk [vmem:[%s2198] sm:$0xff] %vm331, %v2185
      %2200 = vst.msk [vmem:[%s2198 + $0x8] sm:$0xff] %vm331, %v2190
      %2201 = vst.msk [vmem:[%s2198 + $0x10] sm:$0x1f] %vm334, %v2195
      %2202 = vmatprep.subr.mxu0 0.0
      %2203 = vmatpush1.msra.mxu0 %v1002
      %2204 = vmatprep.subr.mxu0 0.0
      %2205 = vmatpush1.msra.mxu0 %v1003
      %2206 = vmatprep.subr.mxu0 0.0
      %2207 = vmatpush1.msra.mxu0 %v1004
      %2208 = vmatprep.subr.mxu0 0.0
      %2209 = vmatpush1.msra.mxu0 %v1005
      %2210 = vmatprep.subr.mxu0 0.0
      %2211 = vmatpush1.msra.mxu0 %v1006
      %2212 = vmatprep.subr.mxu0 0.0
      %2213 = vmatpush1.msra.mxu0 0.0
      %2214 = vmatprep.subr.mxu0 0.0
      %2215 = vmatpush1.msra.mxu0 0.0
      %2216 = vmatprep.subr.mxu0 0.0
      %2217 = vmatpush1.msra.mxu0 0.0
      %2218 = vmatprep.subr.mxu0 0.0
      %2219 = vmatpush1.msra.mxu0 0.0
      %2220 = vmatprep.subr.mxu0 0.0
      %2221 = vmatpush1.msra.mxu0 0.0
      %2222 = vmatprep.subr.mxu0 0.0
      %2223 = vmatpush1.msra.mxu0 0.0
      %2224 = vmatprep.subr.mxu0 0.0
      %2225 = vmatpush1.msra.mxu0 0.0
      %2226 = vmatprep.subr.mxu0 0.0
      %2227 = vmatpush1.msra.mxu0 0.0
      %2228 = vmatprep.subr.mxu0 0.0
      %2229 = vmatpush1.msra.mxu0 0.0
      %2230 = vmatprep.subr.mxu0 0.0
      %2231 = vmatpush1.msra.mxu0 0.0
      %2232 = vmatprep.subr.mxu0 0.0
      %2233 = vmatpush1.msra.mxu0 0.0
      %2234 = vmatprep.subr.mxu0 0.0
      %2235 = vmatpush1.msra.mxu0 0.0
      %2236 = vmatprep.subr.mxu0 0.0
      %2237 = vmatpush1.msra.mxu0 0.0
      %2238 = vmatprep.subr.mxu0 0.0
      %2239 = vmatpush1.msra.mxu0 0.0
      %2240 = vmatprep.subr.mxu0 0.0
      %2241 = vmatpush1.msra.mxu0 0.0
      %2242 = vmatprep.subr.mxu0 0.0
      %2243 = vmatpush1.msra.mxu0 0.0
      %2244 = vmatprep.subr.mxu0 0.0
      %2245 = vmatpush1.msra.mxu0 0.0
      %2246 = vmatprep.subr.mxu0 0.0
      %2247 = vmatpush1.msra.mxu0 0.0
      %2248 = vmatprep.subr.mxu0 0.0
      %2249 = vmatpush1.msra.mxu0 0.0
      %2250 = vmatprep.subr.mxu0 0.0
      %2251 = vmatpush1.msra.mxu0 0.0
      %2252 = vmatprep.subr.mxu0 0.0
      %2253 = vmatpush1.msra.mxu0 0.0
      %2254 = vmatprep.subr.mxu0 0.0
      %2255 = vmatpush1.msra.mxu0 0.0
      %2256 = vmatprep.subr.mxu0 0.0
      %2257 = vmatpush1.msra.mxu0 0.0
      %2258 = vmatprep.subr.mxu0 0.0
      %2259 = vmatpush1.msra.mxu0 0.0
      %2260 = vmatprep.subr.mxu0 0.0
      %2261 = vmatpush1.msra.mxu0 0.0
      %2262 = vmatprep.subr.mxu0 0.0
      %2263 = vmatpush1.msra.mxu0 0.0
      %2264 = vmatprep.subr.mxu0 0.0
      %2265 = vmatpush1.msra.mxu0 0.0
      %2266 = vmatprep.mubr.f32.mxu0 0.0
      %2267 = vmatmul.mubr.f32.gmra.mrb[0].mxu0 %v1009
      %v2268 = vpop.f32.mrb[0].mxu0
      %v2269 = vadd.f32 0.0, %v2268
      %v2270 = vpop.f32.mrb[0].mxu0
      %2271 = vmatprep.mubr.f32.mxu0 0.0
      %2272 = vmatmul.mubr.f32.gmra.mrb[0].mxu0 %v1012
      %v2273 = vpop.f32.mrb[0].mxu0
      %v2274 = vadd.f32 0.0, %v2273
      %v2275 = vpop.f32.mrb[0].mxu0
      %2276 = vmatprep.mubr.f32.mxu0 0.0
      %2277 = vmatmul.mubr.f32.gmra.mrb[0].mxu0 %v1015
      %v2278 = vpop.f32.mrb[0].mxu0
      %v2279 = vadd.f32 0.0, %v2278
      %v2280 = vpop.f32.mrb[0].mxu0
      %2281 = vdwg.mxu0
      %s2282 = scalar_lea.vmem [#allocation2], 192
      %2283 = vst.msk [vmem:[%s2282] sm:$0xff] %vm331, %v2269
      %2284 = vst.msk [vmem:[%s2282 + $0x8] sm:$0xff] %vm331, %v2274
      %2285 = vst.msk [vmem:[%s2282 + $0x10] sm:$0x1f] %vm334, %v2279
      %2286 = vmatprep.subr.mxu0 0.0
      %2287 = vmatpush1.msra.mxu0 %v1002
      %2288 = vmatprep.subr.mxu0 0.0
      %2289 = vmatpush1.msra.mxu0 %v1003
      %2290 = vmatprep.subr.mxu0 0.0
      %2291 = vmatpush1.msra.mxu0 %v1004
      %2292 = vmatprep.subr.mxu0 0.0
      %2293 = vmatpush1.msra.mxu0 %v1005
      %2294 = vmatprep.subr.mxu0 0.0
      %2295 = vmatpush1.msra.mxu0 %v1006
      %2296 = vmatprep.subr.mxu0 0.0
      %2297 = vmatpush1.msra.mxu0 0.0
      %2298 = vmatprep.subr.mxu0 0.0
      %2299 = vmatpush1.msra.mxu0 0.0
      %2300 = vmatprep.subr.mxu0 0.0
      %2301 = vmatpush1.msra.mxu0 0.0
      %2302 = vmatprep.subr.mxu0 0.0
      %2303 = vmatpush1.msra.mxu0 0.0
      %2304 = vmatprep.subr.mxu0 0.0
      %2305 = vmatpush1.msra.mxu0 0.0
      %2306 = vmatprep.subr.mxu0 0.0
      %2307 = vmatpush1.msra.mxu0 0.0
      %2308 = vmatprep.subr.mxu0 0.0
      %2309 = vmatpush1.msra.mxu0 0.0
      %2310 = vmatprep.subr.mxu0 0.0
      %2311 = vmatpush1.msra.mxu0 0.0
      %2312 = vmatprep.subr.mxu0 0.0
      %2313 = vmatpush1.msra.mxu0 0.0
      %2314 = vmatprep.subr.mxu0 0.0
      %2315 = vmatpush1.msra.mxu0 0.0
      %2316 = vmatprep.subr.mxu0 0.0
      %2317 = vmatpush1.msra.mxu0 0.0
      %2318 = vmatprep.subr.mxu0 0.0
      %2319 = vmatpush1.msra.mxu0 0.0
      %2320 = vmatprep.subr.mxu0 0.0
      %2321 = vmatpush1.msra.mxu0 0.0
      %2322 = vmatprep.subr.mxu0 0.0
      %2323 = vmatpush1.msra.mxu0 0.0
      %2324 = vmatprep.subr.mxu0 0.0
      %2325 = vmatpush1.msra.mxu0 0.0
      %2326 = vmatprep.subr.mxu0 0.0
      %2327 = vmatpush1.msra.mxu0 0.0
      %2328 = vmatprep.subr.mxu0 0.0
      %2329 = vmatpush1.msra.mxu0 0.0
      %2330 = vmatprep.subr.mxu0 0.0
      %2331 = vmatpush1.msra.mxu0 0.0
      %2332 = vmatprep.subr.mxu0 0.0
      %2333 = vmatpush1.msra.mxu0 0.0
      %2334 = vmatprep.subr.mxu0 0.0
      %2335 = vmatpush1.msra.mxu0 0.0
      %2336 = vmatprep.subr.mxu0 0.0
      %2337 = vmatpush1.msra.mxu0 0.0
      %2338 = vmatprep.subr.mxu0 0.0
      %2339 = vmatpush1.msra.mxu0 0.0
      %2340 = vmatprep.subr.mxu0 0.0
      %2341 = vmatpush1.msra.mxu0 0.0
      %2342 = vmatprep.subr.mxu0 0.0
      %2343 = vmatpush1.msra.mxu0 0.0
      %2344 = vmatprep.subr.mxu0 0.0
      %2345 = vmatpush1.msra.mxu0 0.0
      %2346 = vmatprep.subr.mxu0 0.0
      %2347 = vmatpush1.msra.mxu0 0.0
      %2348 = vmatprep.subr.mxu0 0.0
      %2349 = vmatpush1.msra.mxu0 0.0
      %2350 = vmatprep.mubr.f32.mxu0 0.0
      %2351 = vmatmul.mubr.f32.gmra.mrb[0].mxu0 %v1102
      %v2352 = vpop.f32.mrb[0].mxu0
      %v2353 = vadd.f32 0.0, %v2352
      %v2354 = vpop.f32.mrb[0].mxu0
      %2355 = vmatprep.mubr.f32.mxu0 0.0
      %2356 = vmatmul.mubr.f32.gmra.mrb[0].mxu0 %v1105
      %v2357 = vpop.f32.mrb[0].mxu0
      %v2358 = vadd.f32 0.0, %v2357
      %v2359 = vpop.f32.mrb[0].mxu0
      %2360 = vmatprep.mubr.f32.mxu0 0.0
      %2361 = vmatmul.mubr.f32.gmra.mrb[0].mxu0 %v1108
      %v2362 = vpop.f32.mrb[0].mxu0
      %v2363 = vadd.f32 0.0, %v2362
      %v2364 = vpop.f32.mrb[0].mxu0
      %2365 = vdwg.mxu0
      %s2366 = scalar_lea.vmem [#allocation3], 192
      %2367 = vst.msk [vmem:[%s2366] sm:$0xff] %vm331, %v2353
      %2368 = vst.msk [vmem:[%s2366 + $0x8] sm:$0xff] %vm331, %v2358
      %2369 = vst.msk [vmem:[%s2366 + $0x10] sm:$0x1f] %vm334, %v2363
      %v2370 = vld [vmem:[#allocation2] sm:$0xff]
      %v2371 = vld [vmem:[#allocation2 + $0x8] sm:$0xff]
      %v2372 = vld [vmem:[#allocation2 + $0x10] sm:$0xf]
      %v2373 = vld [vmem:[#allocation3] sm:$0xff]
      %v2374 = vld [vmem:[#allocation3 + $0x8] sm:$0xff]
      %v2375 = vld [vmem:[#allocation3 + $0x10] sm:$0xf]
      %v2376 = vld [vmem:[#allocation2 + $0x1] sm:$0xff]
      %v2377 = vld [vmem:[#allocation2 + $0x9] sm:$0xff]
      %v2378 = vld [vmem:[#allocation2 + $0x11] sm:$0xf]
      %v2379 = vld [vmem:[%s1097] sm:$0xff]
      %v2380 = vld [vmem:[%s1097 + $0x8] sm:$0xff]
      %v2381 = vld [vmem:[%s1097 + $0x10] sm:$0xf]
      %v2382 = vld [vmem:[%s1190] sm:$0xff]
      %v2383 = vld [vmem:[%s1190 + $0x8] sm:$0xff]
      %v2384 = vld [vmem:[%s1190 + $0x10] sm:$0xf]
      %v2385 = vld [vmem:[%s1097 + $0x1] sm:$0xff]
      %v2386 = vld [vmem:[%s1097 + $0x9] sm:$0xff]
      %v2387 = vld [vmem:[%s1097 + $0x11] sm:$0xf]
      %v2388 = vld [vmem:[%s1274] sm:$0xff]
      %v2389 = vld [vmem:[%s1274 + $0x8] sm:$0xff]
      %v2390 = vld [vmem:[%s1274 + $0x10] sm:$0xf]
      %v2391 = vld [vmem:[%s1358] sm:$0xff]
      %v2392 = vld [vmem:[%s1358 + $0x8] sm:$0xff]
      %v2393 = vld [vmem:[%s1358 + $0x10] sm:$0xf]
      %v2394 = vld [vmem:[%s1274 + $0x1] sm:$0xff]
      %v2395 = vld [vmem:[%s1274 + $0x9] sm:$0xff]
      %v2396 = vld [vmem:[%s1274 + $0x11] sm:$0xf]
      %2400 = vrot.lane.b32.xlu0 %v2373, 32
      %v2401 = vpop.permute.xlu0 %2400
      %2402 = vrot.lane.b32.xlu0 %v2374, 32
      %v2403 = vpop.permute.xlu0 %2402
      %2404 = vrot.lane.b32.xlu0 %v2375, 32
      %v2405 = vpop.permute.xlu0 %2404
      %2412 = vrot.lane.b32.xlu0 %v2376, 64
      %v2413 = vpop.permute.xlu0 %2412
      %2414 = vrot.lane.b32.xlu0 %v2377, 64
      %v2415 = vpop.permute.xlu0 %2414
      %2416 = vrot.lane.b32.xlu0 %v2378, 64
      %v2417 = vpop.permute.xlu0 %2416
      %2424 = vrot.lane.b32.xlu0 %v2379, 96
      %v2425 = vpop.permute.xlu0 %2424
      %2426 = vrot.lane.b32.xlu0 %v2380, 96
      %v2427 = vpop.permute.xlu0 %2426
      %2428 = vrot.lane.b32.xlu0 %v2381, 96
      %v2429 = vpop.permute.xlu0 %2428
      %2436 = vrot.lane.b32.xlu0 %v2385, 32
      %v2437 = vpop.permute.xlu0 %2436
      %2438 = vrot.lane.b32.xlu0 %v2386, 32
      %v2439 = vpop.permute.xlu0 %2438
      %2440 = vrot.lane.b32.xlu0 %v2387, 32
      %v2441 = vpop.permute.xlu0 %2440
      %2448 = vrot.lane.b32.xlu0 %v2388, 64
      %v2449 = vpop.permute.xlu0 %2448
      %2450 = vrot.lane.b32.xlu0 %v2389, 64
      %v2451 = vpop.permute.xlu0 %2450
      %2452 = vrot.lane.b32.xlu0 %v2390, 64
      %v2453 = vpop.permute.xlu0 %2452
      %2460 = vrot.lane.b32.xlu0 %v2391, 96
      %v2461 = vpop.permute.xlu0 %2460
      %2462 = vrot.lane.b32.xlu0 %v2392, 96
      %v2463 = vpop.permute.xlu0 %2462
      %2464 = vrot.lane.b32.xlu0 %v2393, 96
      %v2465 = vpop.permute.xlu0 %2464
      %v2469 = vsel %vm331, %v2370, %v2401
      %v2470 = vsel %vm331, %v2371, %v2403
      %v2471 = vsel %vm331, %v2372, %v2405
      %vm2472 = vcmask 523264
      %v2473 = vsel %vm2472, %v2469, %v2413
      %v2474 = vsel %vm2472, %v2470, %v2415
      %v2475 = vsel %vm2472, %v2471, %v2417
      %vm2476 = vcmask 785408
      %v2477 = vsel %vm2476, %v2473, %v2425
      %v2478 = vsel %vm2476, %v2474, %v2427
      %v2479 = vsel %vm2476, %v2475, %v2429
      %v2480 = vsel %vm331, %v2382, %v2437
      %v2481 = vsel %vm331, %v2383, %v2439
      %v2482 = vsel %vm331, %v2384, %v2441
      %v2483 = vsel %vm2472, %v2480, %v2449
      %v2484 = vsel %vm2472, %v2481, %v2451
      %v2485 = vsel %vm2472, %v2482, %v2453
      %v2486 = vsel %vm2476, %v2483, %v2461
      %v2487 = vsel %vm2476, %v2484, %v2463
      %v2488 = vsel %vm2476, %v2485, %v2465
      %v2489 = vld [vmem:[%s3] sm:$0xff]
      %v2490 = vld [vmem:[%s3 + $0x8] sm:$0xff]
      %v2491 = vld [vmem:[%s3 + $0x10] sm:$0xff]
      %v2492 = vld [vmem:[%s3 + $0x18] sm:$0xff]
      %v2493 = vld [vmem:[%s3 + $0x20] sm:$0xff]
      %v2494 = vld [vmem:[%s3 + $0x28] sm:$0xff]
      %v2495 = vld [vmem:[%s3 + $0x30] sm:$0xff]
      %v2496 = vld [vmem:[%s3 + $0x38] sm:$0xff]
      %v2497 = vld [vmem:[%s3 + $0x40] sm:$0xff]
      %v2498 = vld [vmem:[%s3 + $0x48] sm:$0xff]
      %v2499 = vld [vmem:[%s3 + $0x50] sm:$0xff]
      %v2500 = vld [vmem:[%s3 + $0x58] sm:$0xff]
      %v2501 = vld [vmem:[%s3 + $0x60] sm:$0xff]
      %v2502 = vld [vmem:[%s3 + $0x68] sm:$0xff]
      %v2503 = vld [vmem:[%s3 + $0x70] sm:$0xff]
      %v2504 = vld [vmem:[%s3 + $0x78] sm:$0xff]
      %v2505 = vld [vmem:[%s3 + $0x80] sm:$0xff]
      %v2506 = vld [vmem:[%s3 + $0x88] sm:$0xff]
      %v2507 = vld [vmem:[%s3 + $0x90] sm:$0xff]
      %v2508 = vld [vmem:[%s3 + $0x98] sm:$0xff]
      %v2509 = vld [vmem:[%s3 + $0xa0] sm:$0xff]
      %v2510 = vld [vmem:[%s3 + $0xa8] sm:$0xff]
      %v2511 = vld [vmem:[%s3 + $0xb0] sm:$0xff]
      %v2512 = vld [vmem:[%s3 + $0xb8] sm:$0xff]
      %v2513 = vld [vmem:[%s3 + $0xc0] sm:$0xff]
      %v2514 = vld [vmem:[%s3 + $0xc8] sm:$0xff]
      %v2515 = vld [vmem:[%s3 + $0xd0] sm:$0xff]
      %v2516 = vld [vmem:[%s3 + $0xd8] sm:$0xff]
      %v2517 = vld [vmem:[%s3 + $0xe0] sm:$0xff]
      %v2518 = vld [vmem:[%s3 + $0xe8] sm:$0xff]
      %v2519 = vld [vmem:[%s3 + $0xf0] sm:$0xff]
      %v2520 = vld [vmem:[%s3 + $0xf8] sm:$0xff]
      %v2521 = vld [vmem:[%s3 + $0x100] sm:$0xff]
      %v2522 = vld [vmem:[%s3 + $0x108] sm:$0xff]
      %v2523 = vld [vmem:[%s3 + $0x110] sm:$0xff]
      %v2524 = vld [vmem:[%s3 + $0x118] sm:$0xff]
      %v2525 = vld [vmem:[%s4] sm:$0x1]
      %v2527 = vlaneseq
      %v2528 = vshrl.u32 %v2527, 7
      %v2529 = vsub.s32 0, %v2528
      %v2530 = vrot.slane %v2525, %v2529
      %v2533 = vsel %vm331, %v2394, 0
      %v2536 = vsel %vm331, %v2395, 0
      %v2539 = vsel %vm331, %v2396, 0
      %2541 = vmatprep.subr.mxu0 0.0
      %2542 = vmatpush1.msra.mxu0 %v2489
      %2543 = vmatprep.subr.mxu0 0.0
      %2544 = vmatpush1.msra.mxu0 %v2490
      %2545 = vmatprep.subr.mxu0 0.0
      %2546 = vmatpush1.msra.mxu0 %v2491
      %2547 = vmatprep.subr.mxu0 0.0
      %2548 = vmatpush1.msra.mxu0 %v2492
      %2549 = vmatprep.subr.mxu0 0.0
      %2550 = vmatpush1.msra.mxu0 %v2493
      %2551 = vmatprep.subr.mxu0 0.0
      %2552 = vmatpush1.msra.mxu0 %v2494
      %2553 = vmatprep.subr.mxu0 0.0
      %2554 = vmatpush1.msra.mxu0 %v2495
      %2555 = vmatprep.subr.mxu0 0.0
      %2556 = vmatpush1.msra.mxu0 %v2496
      %2557 = vmatprep.subr.mxu0 0.0
      %2558 = vmatpush1.msra.mxu0 %v2497
      %2559 = vmatprep.subr.mxu0 0.0
      %2560 = vmatpush1.msra.mxu0 %v2498
      %2561 = vmatprep.subr.mxu0 0.0
      %2562 = vmatpush1.msra.mxu0 %v2499
      %2563 = vmatprep.subr.mxu0 0.0
      %2564 = vmatpush1.msra.mxu0 %v2500
      %2565 = vmatprep.subr.mxu0 0.0
      %2566 = vmatpush1.msra.mxu0 %v2501
      %2567 = vmatprep.subr.mxu0 0.0
      %2568 = vmatpush1.msra.mxu0 %v2502
      %2569 = vmatprep.subr.mxu0 0.0
      %2570 = vmatpush1.msra.mxu0 %v2503
      %2571 = vmatprep.subr.mxu0 0.0
      %2572 = vmatpush1.msra.mxu0 %v2504
      %2573 = vmatprep.subr.mxu0 0.0
      %2574 = vmatpush1.msra.mxu0 %v2505
      %2575 = vmatprep.subr.mxu0 0.0
      %2576 = vmatpush1.msra.mxu0 %v2506
      %2577 = vmatprep.subr.mxu0 0.0
      %2578 = vmatpush1.msra.mxu0 %v2507
      %2579 = vmatprep.subr.mxu0 0.0
      %2580 = vmatpush1.msra.mxu0 %v2508
      %2581 = vmatprep.subr.mxu0 0.0
      %2582 = vmatpush1.msra.mxu0 %v2509
      %2583 = vmatprep.subr.mxu0 0.0
      %2584 = vmatpush1.msra.mxu0 %v2510
      %2585 = vmatprep.subr.mxu0 0.0
      %2586 = vmatpush1.msra.mxu0 %v2511
      %2587 = vmatprep.subr.mxu0 0.0
      %2588 = vmatpush1.msra.mxu0 %v2512
      %2589 = vmatprep.subr.mxu0 0.0
      %2590 = vmatpush1.msra.mxu0 %v2513
      %2591 = vmatprep.subr.mxu0 0.0
      %2592 = vmatpush1.msra.mxu0 %v2514
      %2593 = vmatprep.subr.mxu0 0.0
      %2594 = vmatpush1.msra.mxu0 %v2515
      %2595 = vmatprep.subr.mxu0 0.0
      %2596 = vmatpush1.msra.mxu0 %v2516
      %2597 = vmatprep.subr.mxu0 0.0
      %2598 = vmatpush1.msra.mxu0 %v2517
      %2599 = vmatprep.subr.mxu0 0.0
      %2600 = vmatpush1.msra.mxu0 %v2518
      %2601 = vmatprep.subr.mxu0 0.0
      %2602 = vmatpush1.msra.mxu0 %v2519
      %2603 = vmatprep.subr.mxu0 0.0
      %2604 = vmatpush1.msra.mxu0 %v2520
      %2605 = vmatprep.mubr.f32.mxu0 %v2486
      %2606 = vmatmul.mubr.f32.gmra.mrb[0].mxu0 %v2477
      %v2607 = vpop.f32.mrb[0].mxu0
      %v2608 = vadd.f32 %v2530, %v2607
      %v2609 = vpop.f32.mrb[0].mxu0
      %2610 = vmatprep.mubr.f32.mxu0 %v2487
      %2611 = vmatmul.mubr.f32.gmra.mrb[0].mxu0 %v2478
      %v2612 = vpop.f32.mrb[0].mxu0
      %v2613 = vadd.f32 %v2530, %v2612
      %v2614 = vpop.f32.mrb[0].mxu0
      %2615 = vmatprep.mubr.f32.mxu0 %v2488
      %2616 = vmatmul.mubr.f32.gmra.mrb[0].mxu0 %v2479
      %v2617 = vpop.f32.mrb[0].mxu0
      %v2618 = vadd.f32 %v2530, %v2617
      %v2619 = vpop.f32.mrb[0].mxu0
      %2620 = vdwg.mxu0
      %2621 = vmatprep.subr.mxu0 0.0
      %2622 = vmatpush1.msra.mxu0 %v2521
      %2623 = vmatprep.subr.mxu0 0.0
      %2624 = vmatpush1.msra.mxu0 %v2522
      %2625 = vmatprep.subr.mxu0 0.0
      %2626 = vmatpush1.msra.mxu0 %v2523
      %2627 = vmatprep.subr.mxu0 0.0
      %2628 = vmatpush1.msra.mxu0 %v2524
      %2629 = vmatprep.subr.mxu0 0.0
      %2630 = vmatpush1.msra.mxu0 0.0
      %2631 = vmatprep.subr.mxu0 0.0
      %2632 = vmatpush1.msra.mxu0 0.0
      %2633 = vmatprep.subr.mxu0 0.0
      %2634 = vmatpush1.msra.mxu0 0.0
      %2635 = vmatprep.subr.mxu0 0.0
      %2636 = vmatpush1.msra.mxu0 0.0
      %2637 = vmatprep.subr.mxu0 0.0
      %2638 = vmatpush1.msra.mxu0 0.0
      %2639 = vmatprep.subr.mxu0 0.0
      %2640 = vmatpush1.msra.mxu0 0.0
      %2641 = vmatprep.subr.mxu0 0.0
      %2642 = vmatpush1.msra.mxu0 0.0
      %2643 = vmatprep.subr.mxu0 0.0
      %2644 = vmatpush1.msra.mxu0 0.0
      %2645 = vmatprep.subr.mxu0 0.0
      %2646 = vmatpush1.msra.mxu0 0.0
      %2647 = vmatprep.subr.mxu0 0.0
      %2648 = vmatpush1.msra.mxu0 0.0
      %2649 = vmatprep.subr.mxu0 0.0
      %2650 = vmatpush1.msra.mxu0 0.0
      %2651 = vmatprep.subr.mxu0 0.0
      %2652 = vmatpush1.msra.mxu0 0.0
      %2653 = vmatprep.subr.mxu0 0.0
      %2654 = vmatpush1.msra.mxu0 0.0
      %2655 = vmatprep.subr.mxu0 0.0
      %2656 = vmatpush1.msra.mxu0 0.0
      %2657 = vmatprep.subr.mxu0 0.0
      %2658 = vmatpush1.msra.mxu0 0.0
      %2659 = vmatprep.subr.mxu0 0.0
      %2660 = vmatpush1.msra.mxu0 0.0
      %2661 = vmatprep.subr.mxu0 0.0
      %2662 = vmatpush1.msra.mxu0 0.0
      %2663 = vmatprep.subr.mxu0 0.0
      %2664 = vmatpush1.msra.mxu0 0.0
      %2665 = vmatprep.subr.mxu0 0.0
      %2666 = vmatpush1.msra.mxu0 0.0
      %2667 = vmatprep.subr.mxu0 0.0
      %2668 = vmatpush1.msra.mxu0 0.0
      %2669 = vmatprep.subr.mxu0 0.0
      %2670 = vmatpush1.msra.mxu0 0.0
      %2671 = vmatprep.subr.mxu0 0.0
      %2672 = vmatpush1.msra.mxu0 0.0
      %2673 = vmatprep.subr.mxu0 0.0
      %2674 = vmatpush1.msra.mxu0 0.0
      %2675 = vmatprep.subr.mxu0 0.0
      %2676 = vmatpush1.msra.mxu0 0.0
      %2677 = vmatprep.subr.mxu0 0.0
      %2678 = vmatpush1.msra.mxu0 0.0
      %2679 = vmatprep.subr.mxu0 0.0
      %2680 = vmatpush1.msra.mxu0 0.0
      %2681 = vmatprep.subr.mxu0 0.0
      %2682 = vmatpush1.msra.mxu0 0.0
      %2683 = vmatprep.subr.mxu0 0.0
      %2684 = vmatpush1.msra.mxu0 0.0
      %2685 = vmatprep.mubr.f32.mxu0 0.0
      %2686 = vmatmul.mubr.f32.gmra.mrb[0].mxu0 %v2533
      %v2687 = vpop.f32.mrb[0].mxu0
      %v2688 = vadd.f32 %v2608, %v2687
      %v2689 = vpop.f32.mrb[0].mxu0
      %2690 = vmatprep.mubr.f32.mxu0 0.0
      %2691 = vmatmul.mubr.f32.gmra.mrb[0].mxu0 %v2536
      %v2692 = vpop.f32.mrb[0].mxu0
      %v2693 = vadd.f32 %v2613, %v2692
      %v2694 = vpop.f32.mrb[0].mxu0
      %2695 = vmatprep.mubr.f32.mxu0 0.0
      %2696 = vmatmul.mubr.f32.gmra.mrb[0].mxu0 %v2539
      %v2697 = vpop.f32.mrb[0].mxu0
      %v2698 = vadd.f32 %v2618, %v2697
      %v2699 = vpop.f32.mrb[0].mxu0
      %2700 = vdwg.mxu0
      %vm2701 = vcmp.ge.f32.partialorder %v2688, 0.0
      %vm2702 = vcmp.ge.f32.partialorder %v2693, 0.0
      %vm2703 = vcmp.ge.f32.partialorder %v2698, 0.0
      %v2704 = vmul.f32 %v2688, 0.2
      %v2705 = vmul.f32 %v2693, 0.2
      %v2706 = vmul.f32 %v2698, 0.2
      %v2707 = vsel %vm2701, %v2688, %v2704
      %v2708 = vsel %vm2702, %v2693, %v2705
      %v2709 = vsel %vm2703, %v2698, %v2706
      %vm2710 = vcmask 162816
      %v2711 = vsel %vm2710, %v436, 0
      %v2713 = vsel %vm2710, %v437, 0
      %vm2715 = vcmask 1043456
      %v2717 = vsel %vm2715, %v2709, 0
      %2719 = vmatprep.subr.mxu0 0.0
      %2720 = vmatpush1.msra.mxu0 %v2707
      %2721 = vmatprep.subr.mxu0 0.0
      %2722 = vmatpush1.msra.mxu0 %v2708
      %2723 = vmatprep.subr.mxu0 0.0
      %2724 = vmatpush1.msra.mxu0 %v2717
      %2725 = vmatprep.subr.mxu0 0.0
      %2726 = vmatpush1.msra.mxu0 0.0
      %2727 = vmatprep.subr.mxu0 0.0
      %2728 = vmatpush1.msra.mxu0 0.0
      %2729 = vmatprep.subr.mxu0 0.0
      %2730 = vmatpush1.msra.mxu0 0.0
      %2731 = vmatprep.subr.mxu0 0.0
      %2732 = vmatpush1.msra.mxu0 0.0
      %2733 = vmatprep.subr.mxu0 0.0
      %2734 = vmatpush1.msra.mxu0 0.0
      %2735 = vmatprep.subr.mxu0 0.0
      %2736 = vmatpush1.msra.mxu0 0.0
      %2737 = vmatprep.subr.mxu0 0.0
      %2738 = vmatpush1.msra.mxu0 0.0
      %2739 = vmatprep.subr.mxu0 0.0
      %2740 = vmatpush1.msra.mxu0 0.0
      %2741 = vmatprep.subr.mxu0 0.0
      %2742 = vmatpush1.msra.mxu0 0.0
      %2743 = vmatprep.subr.mxu0 0.0
      %2744 = vmatpush1.msra.mxu0 0.0
      %2745 = vmatprep.subr.mxu0 0.0
      %2746 = vmatpush1.msra.mxu0 0.0
      %2747 = vmatprep.subr.mxu0 0.0
      %2748 = vmatpush1.msra.mxu0 0.0
      %2749 = vmatprep.subr.mxu0 0.0
      %2750 = vmatpush1.msra.mxu0 0.0
      %2751 = vmatprep.subr.mxu0 0.0
      %2752 = vmatpush1.msra.mxu0 0.0
      %2753 = vmatprep.subr.mxu0 0.0
      %2754 = vmatpush1.msra.mxu0 0.0
      %2755 = vmatprep.subr.mxu0 0.0
      %2756 = vmatpush1.msra.mxu0 0.0
      %2757 = vmatprep.subr.mxu0 0.0
      %2758 = vmatpush1.msra.mxu0 0.0
      %2759 = vmatprep.subr.mxu0 0.0
      %2760 = vmatpush1.msra.mxu0 0.0
      %2761 = vmatprep.subr.mxu0 0.0
      %2762 = vmatpush1.msra.mxu0 0.0
      %2763 = vmatprep.subr.mxu0 0.0
      %2764 = vmatpush1.msra.mxu0 0.0
      %2765 = vmatprep.subr.mxu0 0.0
      %2766 = vmatpush1.msra.mxu0 0.0
      %2767 = vmatprep.subr.mxu0 0.0
      %2768 = vmatpush1.msra.mxu0 0.0
      %2769 = vmatprep.subr.mxu0 0.0
      %2770 = vmatpush1.msra.mxu0 0.0
      %2771 = vmatprep.subr.mxu0 0.0
      %2772 = vmatpush1.msra.mxu0 0.0
      %2773 = vmatprep.subr.mxu0 0.0
      %2774 = vmatpush1.msra.mxu0 0.0
      %2775 = vmatprep.subr.mxu0 0.0
      %2776 = vmatpush1.msra.mxu0 0.0
      %2777 = vmatprep.subr.mxu0 0.0
      %2778 = vmatpush1.msra.mxu0 0.0
      %2779 = vmatprep.subr.mxu0 0.0
      %2780 = vmatpush1.msra.mxu0 0.0
      %2781 = vmatprep.subr.mxu0 0.0
      %2782 = vmatpush1.msra.mxu0 0.0
      %2783 = vmatprep.mubr.f32.mxu0 0.0
      %2784 = vmatmul.mubr.f32.gmra.mrb[0].mxu0 %v2711
      %v2785 = vpop.f32.mrb[0].mxu0
      %v2786 = vadd.f32 0.0, %v2785
      %v2787 = vpop.f32.mrb[0].mxu0
      %2788 = vmatprep.mubr.f32.mxu0 0.0
      %2789 = vmatmul.mubr.f32.gmra.mrb[0].mxu0 %v2713
      %v2790 = vpop.f32.mrb[0].mxu0
      %v2791 = vadd.f32 0.0, %v2790
      %v2792 = vpop.f32.mrb[0].mxu0
      %2793 = vdwg.mxu0
      %s2794 = scalar_lea.vmem [#allocation4], 16
      %2795 = vst.msk [vmem:[%s2794] sm:$0xff] %vm331, %v2786
      %2796 = vst.msk [vmem:[%s2794 + $0x8] sm:$0x7] %vm394, %v2791
      %v2797 = vsel %vm2710, %v445, 0
      %v2799 = vsel %vm2710, %v446, 0
      %2801 = vmatprep.subr.mxu0 0.0
      %2802 = vmatpush1.msra.mxu0 %v2707
      %2803 = vmatprep.subr.mxu0 0.0
      %2804 = vmatpush1.msra.mxu0 %v2708
      %2805 = vmatprep.subr.mxu0 0.0
      %2806 = vmatpush1.msra.mxu0 %v2717
      %2807 = vmatprep.subr.mxu0 0.0
      %2808 = vmatpush1.msra.mxu0 0.0
      %2809 = vmatprep.subr.mxu0 0.0
      %2810 = vmatpush1.msra.mxu0 0.0
      %2811 = vmatprep.subr.mxu0 0.0
      %2812 = vmatpush1.msra.mxu0 0.0
      %2813 = vmatprep.subr.mxu0 0.0
      %2814 = vmatpush1.msra.mxu0 0.0
      %2815 = vmatprep.subr.mxu0 0.0
      %2816 = vmatpush1.msra.mxu0 0.0
      %2817 = vmatprep.subr.mxu0 0.0
      %2818 = vmatpush1.msra.mxu0 0.0
      %2819 = vmatprep.subr.mxu0 0.0
      %2820 = vmatpush1.msra.mxu0 0.0
      %2821 = vmatprep.subr.mxu0 0.0
      %2822 = vmatpush1.msra.mxu0 0.0
      %2823 = vmatprep.subr.mxu0 0.0
      %2824 = vmatpush1.msra.mxu0 0.0
      %2825 = vmatprep.subr.mxu0 0.0
      %2826 = vmatpush1.msra.mxu0 0.0
      %2827 = vmatprep.subr.mxu0 0.0
      %2828 = vmatpush1.msra.mxu0 0.0
      %2829 = vmatprep.subr.mxu0 0.0
      %2830 = vmatpush1.msra.mxu0 0.0
      %2831 = vmatprep.subr.mxu0 0.0
      %2832 = vmatpush1.msra.mxu0 0.0
      %2833 = vmatprep.subr.mxu0 0.0
      %2834 = vmatpush1.msra.mxu0 0.0
      %2835 = vmatprep.subr.mxu0 0.0
      %2836 = vmatpush1.msra.mxu0 0.0
      %2837 = vmatprep.subr.mxu0 0.0
      %2838 = vmatpush1.msra.mxu0 0.0
      %2839 = vmatprep.subr.mxu0 0.0
      %2840 = vmatpush1.msra.mxu0 0.0
      %2841 = vmatprep.subr.mxu0 0.0
      %2842 = vmatpush1.msra.mxu0 0.0
      %2843 = vmatprep.subr.mxu0 0.0
      %2844 = vmatpush1.msra.mxu0 0.0
      %2845 = vmatprep.subr.mxu0 0.0
      %2846 = vmatpush1.msra.mxu0 0.0
      %2847 = vmatprep.subr.mxu0 0.0
      %2848 = vmatpush1.msra.mxu0 0.0
      %2849 = vmatprep.subr.mxu0 0.0
      %2850 = vmatpush1.msra.mxu0 0.0
      %2851 = vmatprep.subr.mxu0 0.0
      %2852 = vmatpush1.msra.mxu0 0.0
      %2853 = vmatprep.subr.mxu0 0.0
      %2854 = vmatpush1.msra.mxu0 0.0
      %2855 = vmatprep.subr.mxu0 0.0
      %2856 = vmatpush1.msra.mxu0 0.0
      %2857 = vmatprep.subr.mxu0 0.0
      %2858 = vmatpush1.msra.mxu0 0.0
      %2859 = vmatprep.subr.mxu0 0.0
      %2860 = vmatpush1.msra.mxu0 0.0
      %2861 = vmatprep.subr.mxu0 0.0
      %2862 = vmatpush1.msra.mxu0 0.0
      %2863 = vmatprep.subr.mxu0 0.0
      %2864 = vmatpush1.msra.mxu0 0.0
      %2865 = vmatprep.mubr.f32.mxu0 0.0
      %2866 = vmatmul.mubr.f32.gmra.mrb[0].mxu0 %v2797
      %v2867 = vpop.f32.mrb[0].mxu0
      %v2868 = vadd.f32 0.0, %v2867
      %v2869 = vpop.f32.mrb[0].mxu0
      %2870 = vmatprep.mubr.f32.mxu0 0.0
      %2871 = vmatmul.mubr.f32.gmra.mrb[0].mxu0 %v2799
      %v2872 = vpop.f32.mrb[0].mxu0
      %v2873 = vadd.f32 0.0, %v2872
      %v2874 = vpop.f32.mrb[0].mxu0
      %2875 = vdwg.mxu0
      %s2876 = scalar_lea.vmem [#allocation5], 16
      %2877 = vst.msk [vmem:[%s2876] sm:$0xff] %vm331, %v2868
      %2878 = vst.msk [vmem:[%s2876 + $0x8] sm:$0x7] %vm394, %v2873
      %v2879 = vld [vmem:[%s1274] sm:$0xff]
      %v2880 = vld [vmem:[%s1274 + $0x8] sm:$0xff]
      %v2881 = vld [vmem:[%s1274 + $0x10] sm:$0xf]
      %v2882 = vld [vmem:[%s1358] sm:$0xff]
      %v2883 = vld [vmem:[%s1358 + $0x8] sm:$0xff]
      %v2884 = vld [vmem:[%s1358 + $0x10] sm:$0xf]
      %v2885 = vld [vmem:[%s1274 + $0x1] sm:$0xff]
      %v2886 = vld [vmem:[%s1274 + $0x9] sm:$0xff]
      %v2887 = vld [vmem:[%s1274 + $0x11] sm:$0xf]
      %v2888 = vld [vmem:[%s1442] sm:$0xff]
      %v2889 = vld [vmem:[%s1442 + $0x8] sm:$0xff]
      %v2890 = vld [vmem:[%s1442 + $0x10] sm:$0xf]
      %v2891 = vld [vmem:[%s1526] sm:$0xff]
      %v2892 = vld [vmem:[%s1526 + $0x8] sm:$0xff]
      %v2893 = vld [vmem:[%s1526 + $0x10] sm:$0xf]
      %v2894 = vld [vmem:[%s1442 + $0x1] sm:$0xff]
      %v2895 = vld [vmem:[%s1442 + $0x9] sm:$0xff]
      %v2896 = vld [vmem:[%s1442 + $0x11] sm:$0xf]
      %v2897 = vld [vmem:[%s1610] sm:$0xff]
      %v2898 = vld [vmem:[%s1610 + $0x8] sm:$0xff]
      %v2899 = vld [vmem:[%s1610 + $0x10] sm:$0xf]
      %v2900 = vld [vmem:[%s1694] sm:$0xff]
      %v2901 = vld [vmem:[%s1694 + $0x8] sm:$0xff]
      %v2902 = vld [vmem:[%s1694 + $0x10] sm:$0xf]
      %v2903 = vld [vmem:[%s1610 + $0x1] sm:$0xff]
      %v2904 = vld [vmem:[%s1610 + $0x9] sm:$0xff]
      %v2905 = vld [vmem:[%s1610 + $0x11] sm:$0xf]
      %2909 = vrot.lane.b32.xlu0 %v2882, 32
      %v2910 = vpop.permute.xlu0 %2909
      %2911 = vrot.lane.b32.xlu0 %v2883, 32
      %v2912 = vpop.permute.xlu0 %2911
      %2913 = vrot.lane.b32.xlu0 %v2884, 32
      %v2914 = vpop.permute.xlu0 %2913
      %2921 = vrot.lane.b32.xlu0 %v2885, 64
      %v2922 = vpop.permute.xlu0 %2921
      %2923 = vrot.lane.b32.xlu0 %v2886, 64
      %v2924 = vpop.permute.xlu0 %2923
      %2925 = vrot.lane.b32.xlu0 %v2887, 64
      %v2926 = vpop.permute.xlu0 %2925
      %2933 = vrot.lane.b32.xlu0 %v2888, 96
      %v2934 = vpop.permute.xlu0 %2933
      %2935 = vrot.lane.b32.xlu0 %v2889, 96
      %v2936 = vpop.permute.xlu0 %2935
      %2937 = vrot.lane.b32.xlu0 %v2890, 96
      %v2938 = vpop.permute.xlu0 %2937
      %2945 = vrot.lane.b32.xlu0 %v2894, 32
      %v2946 = vpop.permute.xlu0 %2945
      %2947 = vrot.lane.b32.xlu0 %v2895, 32
      %v2948 = vpop.permute.xlu0 %2947
      %2949 = vrot.lane.b32.xlu0 %v2896, 32
      %v2950 = vpop.permute.xlu0 %2949
      %2957 = vrot.lane.b32.xlu0 %v2897, 64
      %v2958 = vpop.permute.xlu0 %2957
      %2959 = vrot.lane.b32.xlu0 %v2898, 64
      %v2960 = vpop.permute.xlu0 %2959
      %2961 = vrot.lane.b32.xlu0 %v2899, 64
      %v2962 = vpop.permute.xlu0 %2961
      %2969 = vrot.lane.b32.xlu0 %v2900, 96
      %v2970 = vpop.permute.xlu0 %2969
      %2971 = vrot.lane.b32.xlu0 %v2901, 96
      %v2972 = vpop.permute.xlu0 %2971
      %2973 = vrot.lane.b32.xlu0 %v2902, 96
      %v2974 = vpop.permute.xlu0 %2973
      %v2978 = vsel %vm331, %v2879, %v2910
      %v2979 = vsel %vm331, %v2880, %v2912
      %v2980 = vsel %vm331, %v2881, %v2914
      %v2981 = vsel %vm2472, %v2978, %v2922
      %v2982 = vsel %vm2472, %v2979, %v2924
      %v2983 = vsel %vm2472, %v2980, %v2926
      %v2984 = vsel %vm2476, %v2981, %v2934
      %v2985 = vsel %vm2476, %v2982, %v2936
      %v2986 = vsel %vm2476, %v2983, %v2938
      %v2987 = vsel %vm331, %v2891, %v2946
      %v2988 = vsel %vm331, %v2892, %v2948
      %v2989 = vsel %vm331, %v2893, %v2950
      %v2990 = vsel %vm2472, %v2987, %v2958
      %v2991 = vsel %vm2472, %v2988, %v2960
      %v2992 = vsel %vm2472, %v2989, %v2962
      %v2993 = vsel %vm2476, %v2990, %v2970
      %v2994 = vsel %vm2476, %v2991, %v2972
      %v2995 = vsel %vm2476, %v2992, %v2974
      %v2996 = vld [vmem:[%s3] sm:$0xff]
      %v2997 = vld [vmem:[%s3 + $0x8] sm:$0xff]
      %v2998 = vld [vmem:[%s3 + $0x10] sm:$0xff]
      %v2999 = vld [vmem:[%s3 + $0x18] sm:$0xff]
      %v3000 = vld [vmem:[%s3 + $0x20] sm:$0xff]
      %v3001 = vld [vmem:[%s3 + $0x28] sm:$0xff]
      %v3002 = vld [vmem:[%s3 + $0x30] sm:$0xff]
      %v3003 = vld [vmem:[%s3 + $0x38] sm:$0xff]
      %v3004 = vld [vmem:[%s3 + $0x40] sm:$0xff]
      %v3005 = vld [vmem:[%s3 + $0x48] sm:$0xff]
      %v3006 = vld [vmem:[%s3 + $0x50] sm:$0xff]
      %v3007 = vld [vmem:[%s3 + $0x58] sm:$0xff]
      %v3008 = vld [vmem:[%s3 + $0x60] sm:$0xff]
      %v3009 = vld [vmem:[%s3 + $0x68] sm:$0xff]
      %v3010 = vld [vmem:[%s3 + $0x70] sm:$0xff]
      %v3011 = vld [vmem:[%s3 + $0x78] sm:$0xff]
      %v3012 = vld [vmem:[%s3 + $0x80] sm:$0xff]
      %v3013 = vld [vmem:[%s3 + $0x88] sm:$0xff]
      %v3014 = vld [vmem:[%s3 + $0x90] sm:$0xff]
      %v3015 = vld [vmem:[%s3 + $0x98] sm:$0xff]
      %v3016 = vld [vmem:[%s3 + $0xa0] sm:$0xff]
      %v3017 = vld [vmem:[%s3 + $0xa8] sm:$0xff]
      %v3018 = vld [vmem:[%s3 + $0xb0] sm:$0xff]
      %v3019 = vld [vmem:[%s3 + $0xb8] sm:$0xff]
      %v3020 = vld [vmem:[%s3 + $0xc0] sm:$0xff]
      %v3021 = vld [vmem:[%s3 + $0xc8] sm:$0xff]
      %v3022 = vld [vmem:[%s3 + $0xd0] sm:$0xff]
      %v3023 = vld [vmem:[%s3 + $0xd8] sm:$0xff]
      %v3024 = vld [vmem:[%s3 + $0xe0] sm:$0xff]
      %v3025 = vld [vmem:[%s3 + $0xe8] sm:$0xff]
      %v3026 = vld [vmem:[%s3 + $0xf0] sm:$0xff]
      %v3027 = vld [vmem:[%s3 + $0xf8] sm:$0xff]
      %v3028 = vld [vmem:[%s3 + $0x100] sm:$0xff]
      %v3029 = vld [vmem:[%s3 + $0x108] sm:$0xff]
      %v3030 = vld [vmem:[%s3 + $0x110] sm:$0xff]
      %v3031 = vld [vmem:[%s3 + $0x118] sm:$0xff]
      %v3032 = vld [vmem:[%s4] sm:$0x1]
      %v3034 = vlaneseq
      %v3035 = vshrl.u32 %v3034, 7
      %v3036 = vsub.s32 0, %v3035
      %v3037 = vrot.slane %v3032, %v3036
      %v3040 = vsel %vm331, %v2903, 0
      %v3043 = vsel %vm331, %v2904, 0
      %v3046 = vsel %vm331, %v2905, 0
      %3048 = vmatprep.subr.mxu0 0.0
      %3049 = vmatpush1.msra.mxu0 %v2996
      %3050 = vmatprep.subr.mxu0 0.0
      %3051 = vmatpush1.msra.mxu0 %v2997
      %3052 = vmatprep.subr.mxu0 0.0
      %3053 = vmatpush1.msra.mxu0 %v2998
      %3054 = vmatprep.subr.mxu0 0.0
      %3055 = vmatpush1.msra.mxu0 %v2999
      %3056 = vmatprep.subr.mxu0 0.0
      %3057 = vmatpush1.msra.mxu0 %v3000
      %3058 = vmatprep.subr.mxu0 0.0
      %3059 = vmatpush1.msra.mxu0 %v3001
      %3060 = vmatprep.subr.mxu0 0.0
      %3061 = vmatpush1.msra.mxu0 %v3002
      %3062 = vmatprep.subr.mxu0 0.0
      %3063 = vmatpush1.msra.mxu0 %v3003
      %3064 = vmatprep.subr.mxu0 0.0
      %3065 = vmatpush1.msra.mxu0 %v3004
      %3066 = vmatprep.subr.mxu0 0.0
      %3067 = vmatpush1.msra.mxu0 %v3005
      %3068 = vmatprep.subr.mxu0 0.0
      %3069 = vmatpush1.msra.mxu0 %v3006
      %3070 = vmatprep.subr.mxu0 0.0
      %3071 = vmatpush1.msra.mxu0 %v3007
      %3072 = vmatprep.subr.mxu0 0.0
      %3073 = vmatpush1.msra.mxu0 %v3008
      %3074 = vmatprep.subr.mxu0 0.0
      %3075 = vmatpush1.msra.mxu0 %v3009
      %3076 = vmatprep.subr.mxu0 0.0
      %3077 = vmatpush1.msra.mxu0 %v3010
      %3078 = vmatprep.subr.mxu0 0.0
      %3079 = vmatpush1.msra.mxu0 %v3011
      %3080 = vmatprep.subr.mxu0 0.0
      %3081 = vmatpush1.msra.mxu0 %v3012
      %3082 = vmatprep.subr.mxu0 0.0
      %3083 = vmatpush1.msra.mxu0 %v3013
      %3084 = vmatprep.subr.mxu0 0.0
      %3085 = vmatpush1.msra.mxu0 %v3014
      %3086 = vmatprep.subr.mxu0 0.0
      %3087 = vmatpush1.msra.mxu0 %v3015
      %3088 = vmatprep.subr.mxu0 0.0
      %3089 = vmatpush1.msra.mxu0 %v3016
      %3090 = vmatprep.subr.mxu0 0.0
      %3091 = vmatpush1.msra.mxu0 %v3017
      %3092 = vmatprep.subr.mxu0 0.0
      %3093 = vmatpush1.msra.mxu0 %v3018
      %3094 = vmatprep.subr.mxu0 0.0
      %3095 = vmatpush1.msra.mxu0 %v3019
      %3096 = vmatprep.subr.mxu0 0.0
      %3097 = vmatpush1.msra.mxu0 %v3020
      %3098 = vmatprep.subr.mxu0 0.0
      %3099 = vmatpush1.msra.mxu0 %v3021
      %3100 = vmatprep.subr.mxu0 0.0
      %3101 = vmatpush1.msra.mxu0 %v3022
      %3102 = vmatprep.subr.mxu0 0.0
      %3103 = vmatpush1.msra.mxu0 %v3023
      %3104 = vmatprep.subr.mxu0 0.0
      %3105 = vmatpush1.msra.mxu0 %v3024
      %3106 = vmatprep.subr.mxu0 0.0
      %3107 = vmatpush1.msra.mxu0 %v3025
      %3108 = vmatprep.subr.mxu0 0.0
      %3109 = vmatpush1.msra.mxu0 %v3026
      %3110 = vmatprep.subr.mxu0 0.0
      %3111 = vmatpush1.msra.mxu0 %v3027
      %3112 = vmatprep.mubr.f32.mxu0 %v2993
      %3113 = vmatmul.mubr.f32.gmra.mrb[0].mxu0 %v2984
      %v3114 = vpop.f32.mrb[0].mxu0
      %v3115 = vadd.f32 %v3037, %v3114
      %v3116 = vpop.f32.mrb[0].mxu0
      %3117 = vmatprep.mubr.f32.mxu0 %v2994
      %3118 = vmatmul.mubr.f32.gmra.mrb[0].mxu0 %v2985
      %v3119 = vpop.f32.mrb[0].mxu0
      %v3120 = vadd.f32 %v3037, %v3119
      %v3121 = vpop.f32.mrb[0].mxu0
      %3122 = vmatprep.mubr.f32.mxu0 %v2995
      %3123 = vmatmul.mubr.f32.gmra.mrb[0].mxu0 %v2986
      %v3124 = vpop.f32.mrb[0].mxu0
      %v3125 = vadd.f32 %v3037, %v3124
      %v3126 = vpop.f32.mrb[0].mxu0
      %3127 = vdwg.mxu0
      %3128 = vmatprep.subr.mxu0 0.0
      %3129 = vmatpush1.msra.mxu0 %v3028
      %3130 = vmatprep.subr.mxu0 0.0
      %3131 = vmatpush1.msra.mxu0 %v3029
      %3132 = vmatprep.subr.mxu0 0.0
      %3133 = vmatpush1.msra.mxu0 %v3030
      %3134 = vmatprep.subr.mxu0 0.0
      %3135 = vmatpush1.msra.mxu0 %v3031
      %3136 = vmatprep.subr.mxu0 0.0
      %3137 = vmatpush1.msra.mxu0 0.0
      %3138 = vmatprep.subr.mxu0 0.0
      %3139 = vmatpush1.msra.mxu0 0.0
      %3140 = vmatprep.subr.mxu0 0.0
      %3141 = vmatpush1.msra.mxu0 0.0
      %3142 = vmatprep.subr.mxu0 0.0
      %3143 = vmatpush1.msra.mxu0 0.0
      %3144 = vmatprep.subr.mxu0 0.0
      %3145 = vmatpush1.msra.mxu0 0.0
      %3146 = vmatprep.subr.mxu0 0.0
      %3147 = vmatpush1.msra.mxu0 0.0
      %3148 = vmatprep.subr.mxu0 0.0
      %3149 = vmatpush1.msra.mxu0 0.0
      %3150 = vmatprep.subr.mxu0 0.0
      %3151 = vmatpush1.msra.mxu0 0.0
      %3152 = vmatprep.subr.mxu0 0.0
      %3153 = vmatpush1.msra.mxu0 0.0
      %3154 = vmatprep.subr.mxu0 0.0
      %3155 = vmatpush1.msra.mxu0 0.0
      %3156 = vmatprep.subr.mxu0 0.0
      %3157 = vmatpush1.msra.mxu0 0.0
      %3158 = vmatprep.subr.mxu0 0.0
      %3159 = vmatpush1.msra.mxu0 0.0
      %3160 = vmatprep.subr.mxu0 0.0
      %3161 = vmatpush1.msra.mxu0 0.0
      %3162 = vmatprep.subr.mxu0 0.0
      %3163 = vmatpush1.msra.mxu0 0.0
      %3164 = vmatprep.subr.mxu0 0.0
      %3165 = vmatpush1.msra.mxu0 0.0
      %3166 = vmatprep.subr.mxu0 0.0
      %3167 = vmatpush1.msra.mxu0 0.0
      %3168 = vmatprep.subr.mxu0 0.0
      %3169 = vmatpush1.msra.mxu0 0.0
      %3170 = vmatprep.subr.mxu0 0.0
      %3171 = vmatpush1.msra.mxu0 0.0
      %3172 = vmatprep.subr.mxu0 0.0
      %3173 = vmatpush1.msra.mxu0 0.0
      %3174 = vmatprep.subr.mxu0 0.0
      %3175 = vmatpush1.msra.mxu0 0.0
      %3176 = vmatprep.subr.mxu0 0.0
      %3177 = vmatpush1.msra.mxu0 0.0
      %3178 = vmatprep.subr.mxu0 0.0
      %3179 = vmatpush1.msra.mxu0 0.0
      %3180 = vmatprep.subr.mxu0 0.0
      %3181 = vmatpush1.msra.mxu0 0.0
      %3182 = vmatprep.subr.mxu0 0.0
      %3183 = vmatpush1.msra.mxu0 0.0
      %3184 = vmatprep.subr.mxu0 0.0
      %3185 = vmatpush1.msra.mxu0 0.0
      %3186 = vmatprep.subr.mxu0 0.0
      %3187 = vmatpush1.msra.mxu0 0.0
      %3188 = vmatprep.subr.mxu0 0.0
      %3189 = vmatpush1.msra.mxu0 0.0
      %3190 = vmatprep.subr.mxu0 0.0
      %3191 = vmatpush1.msra.mxu0 0.0
      %3192 = vmatprep.mubr.f32.mxu0 0.0
      %3193 = vmatmul.mubr.f32.gmra.mrb[0].mxu0 %v3040
      %v3194 = vpop.f32.mrb[0].mxu0
      %v3195 = vadd.f32 %v3115, %v3194
      %v3196 = vpop.f32.mrb[0].mxu0
      %3197 = vmatprep.mubr.f32.mxu0 0.0
      %3198 = vmatmul.mubr.f32.gmra.mrb[0].mxu0 %v3043
      %v3199 = vpop.f32.mrb[0].mxu0
      %v3200 = vadd.f32 %v3120, %v3199
      %v3201 = vpop.f32.mrb[0].mxu0
      %3202 = vmatprep.mubr.f32.mxu0 0.0
      %3203 = vmatmul.mubr.f32.gmra.mrb[0].mxu0 %v3046
      %v3204 = vpop.f32.mrb[0].mxu0
      %v3205 = vadd.f32 %v3125, %v3204
      %v3206 = vpop.f32.mrb[0].mxu0
      %3207 = vdwg.mxu0
      %vm3208 = vcmp.ge.f32.partialorder %v3195, 0.0
      %vm3209 = vcmp.ge.f32.partialorder %v3200, 0.0
      %vm3210 = vcmp.ge.f32.partialorder %v3205, 0.0
      %v3211 = vmul.f32 %v3195, 0.2
      %v3212 = vmul.f32 %v3200, 0.2
      %v3213 = vmul.f32 %v3205, 0.2
      %v3214 = vsel %vm3208, %v3195, %v3211
      %v3215 = vsel %vm3209, %v3200, %v3212
      %v3216 = vsel %vm3210, %v3205, %v3213
      %v3218 = vsel %vm2715, %v3216, 0
      %3220 = vmatprep.subr.mxu0 0.0
      %3221 = vmatpush1.msra.mxu0 %v3214
      %3222 = vmatprep.subr.mxu0 0.0
      %3223 = vmatpush1.msra.mxu0 %v3215
      %3224 = vmatprep.subr.mxu0 0.0
      %3225 = vmatpush1.msra.mxu0 %v3218
      %3226 = vmatprep.subr.mxu0 0.0
      %3227 = vmatpush1.msra.mxu0 0.0
      %3228 = vmatprep.subr.mxu0 0.0
      %3229 = vmatpush1.msra.mxu0 0.0
      %3230 = vmatprep.subr.mxu0 0.0
      %3231 = vmatpush1.msra.mxu0 0.0
      %3232 = vmatprep.subr.mxu0 0.0
      %3233 = vmatpush1.msra.mxu0 0.0
      %3234 = vmatprep.subr.mxu0 0.0
      %3235 = vmatpush1.msra.mxu0 0.0
      %3236 = vmatprep.subr.mxu0 0.0
      %3237 = vmatpush1.msra.mxu0 0.0
      %3238 = vmatprep.subr.mxu0 0.0
      %3239 = vmatpush1.msra.mxu0 0.0
      %3240 = vmatprep.subr.mxu0 0.0
      %3241 = vmatpush1.msra.mxu0 0.0
      %3242 = vmatprep.subr.mxu0 0.0
      %3243 = vmatpush1.msra.mxu0 0.0
      %3244 = vmatprep.subr.mxu0 0.0
      %3245 = vmatpush1.msra.mxu0 0.0
      %3246 = vmatprep.subr.mxu0 0.0
      %3247 = vmatpush1.msra.mxu0 0.0
      %3248 = vmatprep.subr.mxu0 0.0
      %3249 = vmatpush1.msra.mxu0 0.0
      %3250 = vmatprep.subr.mxu0 0.0
      %3251 = vmatpush1.msra.mxu0 0.0
      %3252 = vmatprep.subr.mxu0 0.0
      %3253 = vmatpush1.msra.mxu0 0.0
      %3254 = vmatprep.subr.mxu0 0.0
      %3255 = vmatpush1.msra.mxu0 0.0
      %3256 = vmatprep.subr.mxu0 0.0
      %3257 = vmatpush1.msra.mxu0 0.0
      %3258 = vmatprep.subr.mxu0 0.0
      %3259 = vmatpush1.msra.mxu0 0.0
      %3260 = vmatprep.subr.mxu0 0.0
      %3261 = vmatpush1.msra.mxu0 0.0
      %3262 = vmatprep.subr.mxu0 0.0
      %3263 = vmatpush1.msra.mxu0 0.0
      %3264 = vmatprep.subr.mxu0 0.0
      %3265 = vmatpush1.msra.mxu0 0.0
      %3266 = vmatprep.subr.mxu0 0.0
      %3267 = vmatpush1.msra.mxu0 0.0
      %3268 = vmatprep.subr.mxu0 0.0
      %3269 = vmatpush1.msra.mxu0 0.0
      %3270 = vmatprep.subr.mxu0 0.0
      %3271 = vmatpush1.msra.mxu0 0.0
      %3272 = vmatprep.subr.mxu0 0.0
      %3273 = vmatpush1.msra.mxu0 0.0
      %3274 = vmatprep.subr.mxu0 0.0
      %3275 = vmatpush1.msra.mxu0 0.0
      %3276 = vmatprep.subr.mxu0 0.0
      %3277 = vmatpush1.msra.mxu0 0.0
      %3278 = vmatprep.subr.mxu0 0.0
      %3279 = vmatpush1.msra.mxu0 0.0
      %3280 = vmatprep.subr.mxu0 0.0
      %3281 = vmatpush1.msra.mxu0 0.0
      %3282 = vmatprep.subr.mxu0 0.0
      %3283 = vmatpush1.msra.mxu0 0.0
      %3284 = vmatprep.mubr.f32.mxu0 0.0
      %3285 = vmatmul.mubr.f32.gmra.mrb[0].mxu0 %v2711
      %v3286 = vpop.f32.mrb[0].mxu0
      %v3287 = vadd.f32 0.0, %v3286
      %v3288 = vpop.f32.mrb[0].mxu0
      %3289 = vmatprep.mubr.f32.mxu0 0.0
      %3290 = vmatmul.mubr.f32.gmra.mrb[0].mxu0 %v2713
      %v3291 = vpop.f32.mrb[0].mxu0
      %v3292 = vadd.f32 0.0, %v3291
      %v3293 = vpop.f32.mrb[0].mxu0
      %3294 = vdwg.mxu0
      %s3295 = scalar_lea.vmem [#allocation4], 32
      %3296 = vst.msk [vmem:[%s3295] sm:$0xff] %vm331, %v3287
      %3297 = vst.msk [vmem:[%s3295 + $0x8] sm:$0x7] %vm394, %v3292
      %3298 = vmatprep.subr.mxu0 0.0
      %3299 = vmatpush1.msra.mxu0 %v3214
      %3300 = vmatprep.subr.mxu0 0.0
      %3301 = vmatpush1.msra.mxu0 %v3215
      %3302 = vmatprep.subr.mxu0 0.0
      %3303 = vmatpush1.msra.mxu0 %v3218
      %3304 = vmatprep.subr.mxu0 0.0
      %3305 = vmatpush1.msra.mxu0 0.0
      %3306 = vmatprep.subr.mxu0 0.0
      %3307 = vmatpush1.msra.mxu0 0.0
      %3308 = vmatprep.subr.mxu0 0.0
      %3309 = vmatpush1.msra.mxu0 0.0
      %3310 = vmatprep.subr.mxu0 0.0
      %3311 = vmatpush1.msra.mxu0 0.0
      %3312 = vmatprep.subr.mxu0 0.0
      %3313 = vmatpush1.msra.mxu0 0.0
      %3314 = vmatprep.subr.mxu0 0.0
      %3315 = vmatpush1.msra.mxu0 0.0
      %3316 = vmatprep.subr.mxu0 0.0
      %3317 = vmatpush1.msra.mxu0 0.0
      %3318 = vmatprep.subr.mxu0 0.0
      %3319 = vmatpush1.msra.mxu0 0.0
      %3320 = vmatprep.subr.mxu0 0.0
      %3321 = vmatpush1.msra.mxu0 0.0
      %3322 = vmatprep.subr.mxu0 0.0
      %3323 = vmatpush1.msra.mxu0 0.0
      %3324 = vmatprep.subr.mxu0 0.0
      %3325 = vmatpush1.msra.mxu0 0.0
      %3326 = vmatprep.subr.mxu0 0.0
      %3327 = vmatpush1.msra.mxu0 0.0
      %3328 = vmatprep.subr.mxu0 0.0
      %3329 = vmatpush1.msra.mxu0 0.0
      %3330 = vmatprep.subr.mxu0 0.0
      %3331 = vmatpush1.msra.mxu0 0.0
      %3332 = vmatprep.subr.mxu0 0.0
      %3333 = vmatpush1.msra.mxu0 0.0
      %3334 = vmatprep.subr.mxu0 0.0
      %3335 = vmatpush1.msra.mxu0 0.0
      %3336 = vmatprep.subr.mxu0 0.0
      %3337 = vmatpush1.msra.mxu0 0.0
      %3338 = vmatprep.subr.mxu0 0.0
      %3339 = vmatpush1.msra.mxu0 0.0
      %3340 = vmatprep.subr.mxu0 0.0
      %3341 = vmatpush1.msra.mxu0 0.0
      %3342 = vmatprep.subr.mxu0 0.0
      %3343 = vmatpush1.msra.mxu0 0.0
      %3344 = vmatprep.subr.mxu0 0.0
      %3345 = vmatpush1.msra.mxu0 0.0
      %3346 = vmatprep.subr.mxu0 0.0
      %3347 = vmatpush1.msra.mxu0 0.0
      %3348 = vmatprep.subr.mxu0 0.0
      %3349 = vmatpush1.msra.mxu0 0.0
      %3350 = vmatprep.subr.mxu0 0.0
      %3351 = vmatpush1.msra.mxu0 0.0
      %3352 = vmatprep.subr.mxu0 0.0
      %3353 = vmatpush1.msra.mxu0 0.0
      %3354 = vmatprep.subr.mxu0 0.0
      %3355 = vmatpush1.msra.mxu0 0.0
      %3356 = vmatprep.subr.mxu0 0.0
      %3357 = vmatpush1.msra.mxu0 0.0
      %3358 = vmatprep.subr.mxu0 0.0
      %3359 = vmatpush1.msra.mxu0 0.0
      %3360 = vmatprep.subr.mxu0 0.0
      %3361 = vmatpush1.msra.mxu0 0.0
      %3362 = vmatprep.mubr.f32.mxu0 0.0
      %3363 = vmatmul.mubr.f32.gmra.mrb[0].mxu0 %v2797
      %v3364 = vpop.f32.mrb[0].mxu0
      %v3365 = vadd.f32 0.0, %v3364
      %v3366 = vpop.f32.mrb[0].mxu0
      %3367 = vmatprep.mubr.f32.mxu0 0.0
      %3368 = vmatmul.mubr.f32.gmra.mrb[0].mxu0 %v2799
      %v3369 = vpop.f32.mrb[0].mxu0
      %v3370 = vadd.f32 0.0, %v3369
      %v3371 = vpop.f32.mrb[0].mxu0
      %3372 = vdwg.mxu0
      %s3373 = scalar_lea.vmem [#allocation5], 32
      %3374 = vst.msk [vmem:[%s3373] sm:$0xff] %vm331, %v3365
      %3375 = vst.msk [vmem:[%s3373 + $0x8] sm:$0x7] %vm394, %v3370
      %v3376 = vld [vmem:[%s1610] sm:$0xff]
      %v3377 = vld [vmem:[%s1610 + $0x8] sm:$0xff]
      %v3378 = vld [vmem:[%s1610 + $0x10] sm:$0xf]
      %v3379 = vld [vmem:[%s1694] sm:$0xff]
      %v3380 = vld [vmem:[%s1694 + $0x8] sm:$0xff]
      %v3381 = vld [vmem:[%s1694 + $0x10] sm:$0xf]
      %v3382 = vld [vmem:[%s1610 + $0x1] sm:$0xff]
      %v3383 = vld [vmem:[%s1610 + $0x9] sm:$0xff]
      %v3384 = vld [vmem:[%s1610 + $0x11] sm:$0xf]
      %v3385 = vld [vmem:[%s1778] sm:$0xff]
      %v3386 = vld [vmem:[%s1778 + $0x8] sm:$0xff]
      %v3387 = vld [vmem:[%s1778 + $0x10] sm:$0xf]
      %v3388 = vld [vmem:[%s1862] sm:$0xff]
      %v3389 = vld [vmem:[%s1862 + $0x8] sm:$0xff]
      %v3390 = vld [vmem:[%s1862 + $0x10] sm:$0xf]
      %v3391 = vld [vmem:[%s1778 + $0x1] sm:$0xff]
      %v3392 = vld [vmem:[%s1778 + $0x9] sm:$0xff]
      %v3393 = vld [vmem:[%s1778 + $0x11] sm:$0xf]
      %v3394 = vld [vmem:[%s1946] sm:$0xff]
      %v3395 = vld [vmem:[%s1946 + $0x8] sm:$0xff]
      %v3396 = vld [vmem:[%s1946 + $0x10] sm:$0xf]
      %v3397 = vld [vmem:[%s2030] sm:$0xff]
      %v3398 = vld [vmem:[%s2030 + $0x8] sm:$0xff]
      %v3399 = vld [vmem:[%s2030 + $0x10] sm:$0xf]
      %v3400 = vld [vmem:[%s1946 + $0x1] sm:$0xff]
      %v3401 = vld [vmem:[%s1946 + $0x9] sm:$0xff]
      %v3402 = vld [vmem:[%s1946 + $0x11] sm:$0xf]
      %3406 = vrot.lane.b32.xlu0 %v3379, 32
      %v3407 = vpop.permute.xlu0 %3406
      %3408 = vrot.lane.b32.xlu0 %v3380, 32
      %v3409 = vpop.permute.xlu0 %3408
      %3410 = vrot.lane.b32.xlu0 %v3381, 32
      %v3411 = vpop.permute.xlu0 %3410
      %3418 = vrot.lane.b32.xlu0 %v3382, 64
      %v3419 = vpop.permute.xlu0 %3418
      %3420 = vrot.lane.b32.xlu0 %v3383, 64
      %v3421 = vpop.permute.xlu0 %3420
      %3422 = vrot.lane.b32.xlu0 %v3384, 64
      %v3423 = vpop.permute.xlu0 %3422
      %3430 = vrot.lane.b32.xlu0 %v3385, 96
      %v3431 = vpop.permute.xlu0 %3430
      %3432 = vrot.lane.b32.xlu0 %v3386, 96
      %v3433 = vpop.permute.xlu0 %3432
      %3434 = vrot.lane.b32.xlu0 %v3387, 96
      %v3435 = vpop.permute.xlu0 %3434
      %3442 = vrot.lane.b32.xlu0 %v3391, 32
      %v3443 = vpop.permute.xlu0 %3442
      %3444 = vrot.lane.b32.xlu0 %v3392, 32
      %v3445 = vpop.permute.xlu0 %3444
      %3446 = vrot.lane.b32.xlu0 %v3393, 32
      %v3447 = vpop.permute.xlu0 %3446
      %3454 = vrot.lane.b32.xlu0 %v3394, 64
      %v3455 = vpop.permute.xlu0 %3454
      %3456 = vrot.lane.b32.xlu0 %v3395, 64
      %v3457 = vpop.permute.xlu0 %3456
      %3458 = vrot.lane.b32.xlu0 %v3396, 64
      %v3459 = vpop.permute.xlu0 %3458
      %3466 = vrot.lane.b32.xlu0 %v3397, 96
      %v3467 = vpop.permute.xlu0 %3466
      %3468 = vrot.lane.b32.xlu0 %v3398, 96
      %v3469 = vpop.permute.xlu0 %3468
      %3470 = vrot.lane.b32.xlu0 %v3399, 96
      %v3471 = vpop.permute.xlu0 %3470
      %v3475 = vsel %vm331, %v3376, %v3407
      %v3476 = vsel %vm331, %v3377, %v3409
      %v3477 = vsel %vm331, %v3378, %v3411
      %v3478 = vsel %vm2472, %v3475, %v3419
      %v3479 = vsel %vm2472, %v3476, %v3421
      %v3480 = vsel %vm2472, %v3477, %v3423
      %v3481 = vsel %vm2476, %v3478, %v3431
      %v3482 = vsel %vm2476, %v3479, %v3433
      %v3483 = vsel %vm2476, %v3480, %v3435
      %v3484 = vsel %vm331, %v3388, %v3443
      %v3485 = vsel %vm331, %v3389, %v3445
      %v3486 = vsel %vm331, %v3390, %v3447
      %v3487 = vsel %vm2472, %v3484, %v3455
      %v3488 = vsel %vm2472, %v3485, %v3457
      %v3489 = vsel %vm2472, %v3486, %v3459
      %v3490 = vsel %vm2476, %v3487, %v3467
      %v3491 = vsel %vm2476, %v3488, %v3469
      %v3492 = vsel %vm2476, %v3489, %v3471
      %v3493 = vld [vmem:[%s3] sm:$0xff]
      %v3494 = vld [vmem:[%s3 + $0x8] sm:$0xff]
      %v3495 = vld [vmem:[%s3 + $0x10] sm:$0xff]
      %v3496 = vld [vmem:[%s3 + $0x18] sm:$0xff]
      %v3497 = vld [vmem:[%s3 + $0x20] sm:$0xff]
      %v3498 = vld [vmem:[%s3 + $0x28] sm:$0xff]
      %v3499 = vld [vmem:[%s3 + $0x30] sm:$0xff]
      %v3500 = vld [vmem:[%s3 + $0x38] sm:$0xff]
      %v3501 = vld [vmem:[%s3 + $0x40] sm:$0xff]
      %v3502 = vld [vmem:[%s3 + $0x48] sm:$0xff]
      %v3503 = vld [vmem:[%s3 + $0x50] sm:$0xff]
      %v3504 = vld [vmem:[%s3 + $0x58] sm:$0xff]
      %v3505 = vld [vmem:[%s3 + $0x60] sm:$0xff]
      %v3506 = vld [vmem:[%s3 + $0x68] sm:$0xff]
      %v3507 = vld [vmem:[%s3 + $0x70] sm:$0xff]
      %v3508 = vld [vmem:[%s3 + $0x78] sm:$0xff]
      %v3509 = vld [vmem:[%s3 + $0x80] sm:$0xff]
      %v3510 = vld [vmem:[%s3 + $0x88] sm:$0xff]
      %v3511 = vld [vmem:[%s3 + $0x90] sm:$0xff]
      %v3512 = vld [vmem:[%s3 + $0x98] sm:$0xff]
      %v3513 = vld [vmem:[%s3 + $0xa0] sm:$0xff]
      %v3514 = vld [vmem:[%s3 + $0xa8] sm:$0xff]
      %v3515 = vld [vmem:[%s3 + $0xb0] sm:$0xff]
      %v3516 = vld [vmem:[%s3 + $0xb8] sm:$0xff]
      %v3517 = vld [vmem:[%s3 + $0xc0] sm:$0xff]
      %v3518 = vld [vmem:[%s3 + $0xc8] sm:$0xff]
      %v3519 = vld [vmem:[%s3 + $0xd0] sm:$0xff]
      %v3520 = vld [vmem:[%s3 + $0xd8] sm:$0xff]
      %v3521 = vld [vmem:[%s3 + $0xe0] sm:$0xff]
      %v3522 = vld [vmem:[%s3 + $0xe8] sm:$0xff]
      %v3523 = vld [vmem:[%s3 + $0xf0] sm:$0xff]
      %v3524 = vld [vmem:[%s3 + $0xf8] sm:$0xff]
      %v3525 = vld [vmem:[%s3 + $0x100] sm:$0xff]
      %v3526 = vld [vmem:[%s3 + $0x108] sm:$0xff]
      %v3527 = vld [vmem:[%s3 + $0x110] sm:$0xff]
      %v3528 = vld [vmem:[%s3 + $0x118] sm:$0xff]
      %v3529 = vld [vmem:[%s4] sm:$0x1]
      %v3531 = vlaneseq
      %v3532 = vshrl.u32 %v3531, 7
      %v3533 = vsub.s32 0, %v3532
      %v3534 = vrot.slane %v3529, %v3533
      %v3537 = vsel %vm331, %v3400, 0
      %v3540 = vsel %vm331, %v3401, 0
      %v3543 = vsel %vm331, %v3402, 0
      %3545 = vmatprep.subr.mxu0 0.0
      %3546 = vmatpush1.msra.mxu0 %v3493
      %3547 = vmatprep.subr.mxu0 0.0
      %3548 = vmatpush1.msra.mxu0 %v3494
      %3549 = vmatprep.subr.mxu0 0.0
      %3550 = vmatpush1.msra.mxu0 %v3495
      %3551 = vmatprep.subr.mxu0 0.0
      %3552 = vmatpush1.msra.mxu0 %v3496
      %3553 = vmatprep.subr.mxu0 0.0
      %3554 = vmatpush1.msra.mxu0 %v3497
      %3555 = vmatprep.subr.mxu0 0.0
      %3556 = vmatpush1.msra.mxu0 %v3498
      %3557 = vmatprep.subr.mxu0 0.0
      %3558 = vmatpush1.msra.mxu0 %v3499
      %3559 = vmatprep.subr.mxu0 0.0
      %3560 = vmatpush1.msra.mxu0 %v3500
      %3561 = vmatprep.subr.mxu0 0.0
      %3562 = vmatpush1.msra.mxu0 %v3501
      %3563 = vmatprep.subr.mxu0 0.0
      %3564 = vmatpush1.msra.mxu0 %v3502
      %3565 = vmatprep.subr.mxu0 0.0
      %3566 = vmatpush1.msra.mxu0 %v3503
      %3567 = vmatprep.subr.mxu0 0.0
      %3568 = vmatpush1.msra.mxu0 %v3504
      %3569 = vmatprep.subr.mxu0 0.0
      %3570 = vmatpush1.msra.mxu0 %v3505
      %3571 = vmatprep.subr.mxu0 0.0
      %3572 = vmatpush1.msra.mxu0 %v3506
      %3573 = vmatprep.subr.mxu0 0.0
      %3574 = vmatpush1.msra.mxu0 %v3507
      %3575 = vmatprep.subr.mxu0 0.0
      %3576 = vmatpush1.msra.mxu0 %v3508
      %3577 = vmatprep.subr.mxu0 0.0
      %3578 = vmatpush1.msra.mxu0 %v3509
      %3579 = vmatprep.subr.mxu0 0.0
      %3580 = vmatpush1.msra.mxu0 %v3510
      %3581 = vmatprep.subr.mxu0 0.0
      %3582 = vmatpush1.msra.mxu0 %v3511
      %3583 = vmatprep.subr.mxu0 0.0
      %3584 = vmatpush1.msra.mxu0 %v3512
      %3585 = vmatprep.subr.mxu0 0.0
      %3586 = vmatpush1.msra.mxu0 %v3513
      %3587 = vmatprep.subr.mxu0 0.0
      %3588 = vmatpush1.msra.mxu0 %v3514
      %3589 = vmatprep.subr.mxu0 0.0
      %3590 = vmatpush1.msra.mxu0 %v3515
      %3591 = vmatprep.subr.mxu0 0.0
      %3592 = vmatpush1.msra.mxu0 %v3516
      %3593 = vmatprep.subr.mxu0 0.0
      %3594 = vmatpush1.msra.mxu0 %v3517
      %3595 = vmatprep.subr.mxu0 0.0
      %3596 = vmatpush1.msra.mxu0 %v3518
      %3597 = vmatprep.subr.mxu0 0.0
      %3598 = vmatpush1.msra.mxu0 %v3519
      %3599 = vmatprep.subr.mxu0 0.0
      %3600 = vmatpush1.msra.mxu0 %v3520
      %3601 = vmatprep.subr.mxu0 0.0
      %3602 = vmatpush1.msra.mxu0 %v3521
      %3603 = vmatprep.subr.mxu0 0.0
      %3604 = vmatpush1.msra.mxu0 %v3522
      %3605 = vmatprep.subr.mxu0 0.0
      %3606 = vmatpush1.msra.mxu0 %v3523
      %3607 = vmatprep.subr.mxu0 0.0
      %3608 = vmatpush1.msra.mxu0 %v3524
      %3609 = vmatprep.mubr.f32.mxu0 %v3490
      %3610 = vmatmul.mubr.f32.gmra.mrb[0].mxu0 %v3481
      %v3611 = vpop.f32.mrb[0].mxu0
      %v3612 = vadd.f32 %v3534, %v3611
      %v3613 = vpop.f32.mrb[0].mxu0
      %3614 = vmatprep.mubr.f32.mxu0 %v3491
      %3615 = vmatmul.mubr.f32.gmra.mrb[0].mxu0 %v3482
      %v3616 = vpop.f32.mrb[0].mxu0
      %v3617 = vadd.f32 %v3534, %v3616
      %v3618 = vpop.f32.mrb[0].mxu0
      %3619 = vmatprep.mubr.f32.mxu0 %v3492
      %3620 = vmatmul.mubr.f32.gmra.mrb[0].mxu0 %v3483
      %v3621 = vpop.f32.mrb[0].mxu0
      %v3622 = vadd.f32 %v3534, %v3621
      %v3623 = vpop.f32.mrb[0].mxu0
      %3624 = vdwg.mxu0
      %3625 = vmatprep.subr.mxu0 0.0
      %3626 = vmatpush1.msra.mxu0 %v3525
      %3627 = vmatprep.subr.mxu0 0.0
      %3628 = vmatpush1.msra.mxu0 %v3526
      %3629 = vmatprep.subr.mxu0 0.0
      %3630 = vmatpush1.msra.mxu0 %v3527
      %3631 = vmatprep.subr.mxu0 0.0
      %3632 = vmatpush1.msra.mxu0 %v3528
      %3633 = vmatprep.subr.mxu0 0.0
      %3634 = vmatpush1.msra.mxu0 0.0
      %3635 = vmatprep.subr.mxu0 0.0
      %3636 = vmatpush1.msra.mxu0 0.0
      %3637 = vmatprep.subr.mxu0 0.0
      %3638 = vmatpush1.msra.mxu0 0.0
      %3639 = vmatprep.subr.mxu0 0.0
      %3640 = vmatpush1.msra.mxu0 0.0
      %3641 = vmatprep.subr.mxu0 0.0
      %3642 = vmatpush1.msra.mxu0 0.0
      %3643 = vmatprep.subr.mxu0 0.0
      %3644 = vmatpush1.msra.mxu0 0.0
      %3645 = vmatprep.subr.mxu0 0.0
      %3646 = vmatpush1.msra.mxu0 0.0
      %3647 = vmatprep.subr.mxu0 0.0
      %3648 = vmatpush1.msra.mxu0 0.0
      %3649 = vmatprep.subr.mxu0 0.0
      %3650 = vmatpush1.msra.mxu0 0.0
      %3651 = vmatprep.subr.mxu0 0.0
      %3652 = vmatpush1.msra.mxu0 0.0
      %3653 = vmatprep.subr.mxu0 0.0
      %3654 = vmatpush1.msra.mxu0 0.0
      %3655 = vmatprep.subr.mxu0 0.0
      %3656 = vmatpush1.msra.mxu0 0.0
      %3657 = vmatprep.subr.mxu0 0.0
      %3658 = vmatpush1.msra.mxu0 0.0
      %3659 = vmatprep.subr.mxu0 0.0
      %3660 = vmatpush1.msra.mxu0 0.0
      %3661 = vmatprep.subr.mxu0 0.0
      %3662 = vmatpush1.msra.mxu0 0.0
      %3663 = vmatprep.subr.mxu0 0.0
      %3664 = vmatpush1.msra.mxu0 0.0
      %3665 = vmatprep.subr.mxu0 0.0
      %3666 = vmatpush1.msra.mxu0 0.0
      %3667 = vmatprep.subr.mxu0 0.0
      %3668 = vmatpush1.msra.mxu0 0.0
      %3669 = vmatprep.subr.mxu0 0.0
      %3670 = vmatpush1.msra.mxu0 0.0
      %3671 = vmatprep.subr.mxu0 0.0
      %3672 = vmatpush1.msra.mxu0 0.0
      %3673 = vmatprep.subr.mxu0 0.0
      %3674 = vmatpush1.msra.mxu0 0.0
      %3675 = vmatprep.subr.mxu0 0.0
      %3676 = vmatpush1.msra.mxu0 0.0
      %3677 = vmatprep.subr.mxu0 0.0
      %3678 = vmatpush1.msra.mxu0 0.0
      %3679 = vmatprep.subr.mxu0 0.0
      %3680 = vmatpush1.msra.mxu0 0.0
      %3681 = vmatprep.subr.mxu0 0.0
      %3682 = vmatpush1.msra.mxu0 0.0
      %3683 = vmatprep.subr.mxu0 0.0
      %3684 = vmatpush1.msra.mxu0 0.0
      %3685 = vmatprep.subr.mxu0 0.0
      %3686 = vmatpush1.msra.mxu0 0.0
      %3687 = vmatprep.subr.mxu0 0.0
      %3688 = vmatpush1.msra.mxu0 0.0
      %3689 = vmatprep.mubr.f32.mxu0 0.0
      %3690 = vmatmul.mubr.f32.gmra.mrb[0].mxu0 %v3537
      %v3691 = vpop.f32.mrb[0].mxu0
      %v3692 = vadd.f32 %v3612, %v3691
      %v3693 = vpop.f32.mrb[0].mxu0
      %3694 = vmatprep.mubr.f32.mxu0 0.0
      %3695 = vmatmul.mubr.f32.gmra.mrb[0].mxu0 %v3540
      %v3696 = vpop.f32.mrb[0].mxu0
      %v3697 = vadd.f32 %v3617, %v3696
      %v3698 = vpop.f32.mrb[0].mxu0
      %3699 = vmatprep.mubr.f32.mxu0 0.0
      %3700 = vmatmul.mubr.f32.gmra.mrb[0].mxu0 %v3543
      %v3701 = vpop.f32.mrb[0].mxu0
      %v3702 = vadd.f32 %v3622, %v3701
      %v3703 = vpop.f32.mrb[0].mxu0
      %3704 = vdwg.mxu0
      %vm3705 = vcmp.ge.f32.partialorder %v3692, 0.0
      %vm3706 = vcmp.ge.f32.partialorder %v3697, 0.0
      %vm3707 = vcmp.ge.f32.partialorder %v3702, 0.0
      %v3708 = vmul.f32 %v3692, 0.2
      %v3709 = vmul.f32 %v3697, 0.2
      %v3710 = vmul.f32 %v3702, 0.2
      %v3711 = vsel %vm3705, %v3692, %v3708
      %v3712 = vsel %vm3706, %v3697, %v3709
      %v3713 = vsel %vm3707, %v3702, %v3710
      %v3715 = vsel %vm2715, %v3713, 0
      %3717 = vmatprep.subr.mxu0 0.0
      %3718 = vmatpush1.msra.mxu0 %v3711
      %3719 = vmatprep.subr.mxu0 0.0
      %3720 = vmatpush1.msra.mxu0 %v3712
      %3721 = vmatprep.subr.mxu0 0.0
      %3722 = vmatpush1.msra.mxu0 %v3715
      %3723 = vmatprep.subr.mxu0 0.0
      %3724 = vmatpush1.msra.mxu0 0.0
      %3725 = vmatprep.subr.mxu0 0.0
      %3726 = vmatpush1.msra.mxu0 0.0
      %3727 = vmatprep.subr.mxu0 0.0
      %3728 = vmatpush1.msra.mxu0 0.0
      %3729 = vmatprep.subr.mxu0 0.0
      %3730 = vmatpush1.msra.mxu0 0.0
      %3731 = vmatprep.subr.mxu0 0.0
      %3732 = vmatpush1.msra.mxu0 0.0
      %3733 = vmatprep.subr.mxu0 0.0
      %3734 = vmatpush1.msra.mxu0 0.0
      %3735 = vmatprep.subr.mxu0 0.0
      %3736 = vmatpush1.msra.mxu0 0.0
      %3737 = vmatprep.subr.mxu0 0.0
      %3738 = vmatpush1.msra.mxu0 0.0
      %3739 = vmatprep.subr.mxu0 0.0
      %3740 = vmatpush1.msra.mxu0 0.0
      %3741 = vmatprep.subr.mxu0 0.0
      %3742 = vmatpush1.msra.mxu0 0.0
      %3743 = vmatprep.subr.mxu0 0.0
      %3744 = vmatpush1.msra.mxu0 0.0
      %3745 = vmatprep.subr.mxu0 0.0
      %3746 = vmatpush1.msra.mxu0 0.0
      %3747 = vmatprep.subr.mxu0 0.0
      %3748 = vmatpush1.msra.mxu0 0.0
      %3749 = vmatprep.subr.mxu0 0.0
      %3750 = vmatpush1.msra.mxu0 0.0
      %3751 = vmatprep.subr.mxu0 0.0
      %3752 = vmatpush1.msra.mxu0 0.0
      %3753 = vmatprep.subr.mxu0 0.0
      %3754 = vmatpush1.msra.mxu0 0.0
      %3755 = vmatprep.subr.mxu0 0.0
      %3756 = vmatpush1.msra.mxu0 0.0
      %3757 = vmatprep.subr.mxu0 0.0
      %3758 = vmatpush1.msra.mxu0 0.0
      %3759 = vmatprep.subr.mxu0 0.0
      %3760 = vmatpush1.msra.mxu0 0.0
      %3761 = vmatprep.subr.mxu0 0.0
      %3762 = vmatpush1.msra.mxu0 0.0
      %3763 = vmatprep.subr.mxu0 0.0
      %3764 = vmatpush1.msra.mxu0 0.0
      %3765 = vmatprep.subr.mxu0 0.0
      %3766 = vmatpush1.msra.mxu0 0.0
      %3767 = vmatprep.subr.mxu0 0.0
      %3768 = vmatpush1.msra.mxu0 0.0
      %3769 = vmatprep.subr.mxu0 0.0
      %3770 = vmatpush1.msra.mxu0 0.0
      %3771 = vmatprep.subr.mxu0 0.0
      %3772 = vmatpush1.msra.mxu0 0.0
      %3773 = vmatprep.subr.mxu0 0.0
      %3774 = vmatpush1.msra.mxu0 0.0
      %3775 = vmatprep.subr.mxu0 0.0
      %3776 = vmatpush1.msra.mxu0 0.0
      %3777 = vmatprep.subr.mxu0 0.0
      %3778 = vmatpush1.msra.mxu0 0.0
      %3779 = vmatprep.subr.mxu0 0.0
      %3780 = vmatpush1.msra.mxu0 0.0
      %3781 = vmatprep.mubr.f32.mxu0 0.0
      %3782 = vmatmul.mubr.f32.gmra.mrb[0].mxu0 %v2711
      %v3783 = vpop.f32.mrb[0].mxu0
      %v3784 = vadd.f32 0.0, %v3783
      %v3785 = vpop.f32.mrb[0].mxu0
      %3786 = vmatprep.mubr.f32.mxu0 0.0
      %3787 = vmatmul.mubr.f32.gmra.mrb[0].mxu0 %v2713
      %v3788 = vpop.f32.mrb[0].mxu0
      %v3789 = vadd.f32 0.0, %v3788
      %v3790 = vpop.f32.mrb[0].mxu0
      %3791 = vdwg.mxu0
      %s3792 = scalar_lea.vmem [#allocation4], 48
      %3793 = vst.msk [vmem:[%s3792] sm:$0xff] %vm331, %v3784
      %3794 = vst.msk [vmem:[%s3792 + $0x8] sm:$0x7] %vm394, %v3789
      %3795 = vmatprep.subr.mxu0 0.0
      %3796 = vmatpush1.msra.mxu0 %v3711
      %3797 = vmatprep.subr.mxu0 0.0
      %3798 = vmatpush1.msra.mxu0 %v3712
      %3799 = vmatprep.subr.mxu0 0.0
      %3800 = vmatpush1.msra.mxu0 %v3715
      %3801 = vmatprep.subr.mxu0 0.0
      %3802 = vmatpush1.msra.mxu0 0.0
      %3803 = vmatprep.subr.mxu0 0.0
      %3804 = vmatpush1.msra.mxu0 0.0
      %3805 = vmatprep.subr.mxu0 0.0
      %3806 = vmatpush1.msra.mxu0 0.0
      %3807 = vmatprep.subr.mxu0 0.0
      %3808 = vmatpush1.msra.mxu0 0.0
      %3809 = vmatprep.subr.mxu0 0.0
      %3810 = vmatpush1.msra.mxu0 0.0
      %3811 = vmatprep.subr.mxu0 0.0
      %3812 = vmatpush1.msra.mxu0 0.0
      %3813 = vmatprep.subr.mxu0 0.0
      %3814 = vmatpush1.msra.mxu0 0.0
      %3815 = vmatprep.subr.mxu0 0.0
      %3816 = vmatpush1.msra.mxu0 0.0
      %3817 = vmatprep.subr.mxu0 0.0
      %3818 = vmatpush1.msra.mxu0 0.0
      %3819 = vmatprep.subr.mxu0 0.0
      %3820 = vmatpush1.msra.mxu0 0.0
      %3821 = vmatprep.subr.mxu0 0.0
      %3822 = vmatpush1.msra.mxu0 0.0
      %3823 = vmatprep.subr.mxu0 0.0
      %3824 = vmatpush1.msra.mxu0 0.0
      %3825 = vmatprep.subr.mxu0 0.0
      %3826 = vmatpush1.msra.mxu0 0.0
      %3827 = vmatprep.subr.mxu0 0.0
      %3828 = vmatpush1.msra.mxu0 0.0
      %3829 = vmatprep.subr.mxu0 0.0
      %3830 = vmatpush1.msra.mxu0 0.0
      %3831 = vmatprep.subr.mxu0 0.0
      %3832 = vmatpush1.msra.mxu0 0.0
      %3833 = vmatprep.subr.mxu0 0.0
      %3834 = vmatpush1.msra.mxu0 0.0
      %3835 = vmatprep.subr.mxu0 0.0
      %3836 = vmatpush1.msra.mxu0 0.0
      %3837 = vmatprep.subr.mxu0 0.0
      %3838 = vmatpush1.msra.mxu0 0.0
      %3839 = vmatprep.subr.mxu0 0.0
      %3840 = vmatpush1.msra.mxu0 0.0
      %3841 = vmatprep.subr.mxu0 0.0
      %3842 = vmatpush1.msra.mxu0 0.0
      %3843 = vmatprep.subr.mxu0 0.0
      %3844 = vmatpush1.msra.mxu0 0.0
      %3845 = vmatprep.subr.mxu0 0.0
      %3846 = vmatpush1.msra.mxu0 0.0
      %3847 = vmatprep.subr.mxu0 0.0
      %3848 = vmatpush1.msra.mxu0 0.0
      %3849 = vmatprep.subr.mxu0 0.0
      %3850 = vmatpush1.msra.mxu0 0.0
      %3851 = vmatprep.subr.mxu0 0.0
      %3852 = vmatpush1.msra.mxu0 0.0
      %3853 = vmatprep.subr.mxu0 0.0
      %3854 = vmatpush1.msra.mxu0 0.0
      %3855 = vmatprep.subr.mxu0 0.0
      %3856 = vmatpush1.msra.mxu0 0.0
      %3857 = vmatprep.subr.mxu0 0.0
      %3858 = vmatpush1.msra.mxu0 0.0
      %3859 = vmatprep.mubr.f32.mxu0 0.0
      %3860 = vmatmul.mubr.f32.gmra.mrb[0].mxu0 %v2797
      %v3861 = vpop.f32.mrb[0].mxu0
      %v3862 = vadd.f32 0.0, %v3861
      %v3863 = vpop.f32.mrb[0].mxu0
      %3864 = vmatprep.mubr.f32.mxu0 0.0
      %3865 = vmatmul.mubr.f32.gmra.mrb[0].mxu0 %v2799
      %v3866 = vpop.f32.mrb[0].mxu0
      %v3867 = vadd.f32 0.0, %v3866
      %v3868 = vpop.f32.mrb[0].mxu0
      %3869 = vdwg.mxu0
      %s3870 = scalar_lea.vmem [#allocation5], 48
      %3871 = vst.msk [vmem:[%s3870] sm:$0xff] %vm331, %v3862
      %3872 = vst.msk [vmem:[%s3870 + $0x8] sm:$0x7] %vm394, %v3867
      %v3873 = vld [vmem:[%s1946] sm:$0xff]
      %v3874 = vld [vmem:[%s1946 + $0x8] sm:$0xff]
      %v3875 = vld [vmem:[%s1946 + $0x10] sm:$0xf]
      %v3876 = vld [vmem:[%s2030] sm:$0xff]
      %v3877 = vld [vmem:[%s2030 + $0x8] sm:$0xff]
      %v3878 = vld [vmem:[%s2030 + $0x10] sm:$0xf]
      %v3879 = vld [vmem:[%s1946 + $0x1] sm:$0xff]
      %v3880 = vld [vmem:[%s1946 + $0x9] sm:$0xff]
      %v3881 = vld [vmem:[%s1946 + $0x11] sm:$0xf]
      %v3882 = vld [vmem:[%s2114] sm:$0xff]
      %v3883 = vld [vmem:[%s2114 + $0x8] sm:$0xff]
      %v3884 = vld [vmem:[%s2114 + $0x10] sm:$0xf]
      %v3885 = vld [vmem:[%s2198] sm:$0xff]
      %v3886 = vld [vmem:[%s2198 + $0x8] sm:$0xff]
      %v3887 = vld [vmem:[%s2198 + $0x10] sm:$0xf]
      %v3888 = vld [vmem:[%s2114 + $0x1] sm:$0xff]
      %v3889 = vld [vmem:[%s2114 + $0x9] sm:$0xff]
      %v3890 = vld [vmem:[%s2114 + $0x11] sm:$0xf]
      %v3891 = vld [vmem:[%s2282] sm:$0xff]
      %v3892 = vld [vmem:[%s2282 + $0x8] sm:$0xff]
      %v3893 = vld [vmem:[%s2282 + $0x10] sm:$0xf]
      %v3894 = vld [vmem:[%s2366] sm:$0xff]
      %v3895 = vld [vmem:[%s2366 + $0x8] sm:$0xff]
      %v3896 = vld [vmem:[%s2366 + $0x10] sm:$0xf]
      %v3897 = vld [vmem:[%s2282 + $0x1] sm:$0xff]
      %v3898 = vld [vmem:[%s2282 + $0x9] sm:$0xff]
      %v3899 = vld [vmem:[%s2282 + $0x11] sm:$0xf]
      %3903 = vrot.lane.b32.xlu0 %v3876, 32
      %v3904 = vpop.permute.xlu0 %3903
      %3905 = vrot.lane.b32.xlu0 %v3877, 32
      %v3906 = vpop.permute.xlu0 %3905
      %3907 = vrot.lane.b32.xlu0 %v3878, 32
      %v3908 = vpop.permute.xlu0 %3907
      %3915 = vrot.lane.b32.xlu0 %v3879, 64
      %v3916 = vpop.permute.xlu0 %3915
      %3917 = vrot.lane.b32.xlu0 %v3880, 64
      %v3918 = vpop.permute.xlu0 %3917
      %3919 = vrot.lane.b32.xlu0 %v3881, 64
      %v3920 = vpop.permute.xlu0 %3919
      %3927 = vrot.lane.b32.xlu0 %v3882, 96
      %v3928 = vpop.permute.xlu0 %3927
      %3929 = vrot.lane.b32.xlu0 %v3883, 96
      %v3930 = vpop.permute.xlu0 %3929
      %3931 = vrot.lane.b32.xlu0 %v3884, 96
      %v3932 = vpop.permute.xlu0 %3931
      %3939 = vrot.lane.b32.xlu0 %v3888, 32
      %v3940 = vpop.permute.xlu0 %3939
      %3941 = vrot.lane.b32.xlu0 %v3889, 32
      %v3942 = vpop.permute.xlu0 %3941
      %3943 = vrot.lane.b32.xlu0 %v3890, 32
      %v3944 = vpop.permute.xlu0 %3943
      %3951 = vrot.lane.b32.xlu0 %v3891, 64
      %v3952 = vpop.permute.xlu0 %3951
      %3953 = vrot.lane.b32.xlu0 %v3892, 64
      %v3954 = vpop.permute.xlu0 %3953
      %3955 = vrot.lane.b32.xlu0 %v3893, 64
      %v3956 = vpop.permute.xlu0 %3955
      %3963 = vrot.lane.b32.xlu0 %v3894, 96
      %v3964 = vpop.permute.xlu0 %3963
      %3965 = vrot.lane.b32.xlu0 %v3895, 96
      %v3966 = vpop.permute.xlu0 %3965
      %3967 = vrot.lane.b32.xlu0 %v3896, 96
      %v3968 = vpop.permute.xlu0 %3967
      %v3972 = vsel %vm331, %v3873, %v3904
      %v3973 = vsel %vm331, %v3874, %v3906
      %v3974 = vsel %vm331, %v3875, %v3908
      %v3975 = vsel %vm2472, %v3972, %v3916
      %v3976 = vsel %vm2472, %v3973, %v3918
      %v3977 = vsel %vm2472, %v3974, %v3920
      %v3978 = vsel %vm2476, %v3975, %v3928
      %v3979 = vsel %vm2476, %v3976, %v3930
      %v3980 = vsel %vm2476, %v3977, %v3932
      %v3981 = vsel %vm331, %v3885, %v3940
      %v3982 = vsel %vm331, %v3886, %v3942
      %v3983 = vsel %vm331, %v3887, %v3944
      %v3984 = vsel %vm2472, %v3981, %v3952
      %v3985 = vsel %vm2472, %v3982, %v3954
      %v3986 = vsel %vm2472, %v3983, %v3956
      %v3987 = vsel %vm2476, %v3984, %v3964
      %v3988 = vsel %vm2476, %v3985, %v3966
      %v3989 = vsel %vm2476, %v3986, %v3968
      %v3990 = vld [vmem:[%s3] sm:$0xff]
      %v3991 = vld [vmem:[%s3 + $0x8] sm:$0xff]
      %v3992 = vld [vmem:[%s3 + $0x10] sm:$0xff]
      %v3993 = vld [vmem:[%s3 + $0x18] sm:$0xff]
      %v3994 = vld [vmem:[%s3 + $0x20] sm:$0xff]
      %v3995 = vld [vmem:[%s3 + $0x28] sm:$0xff]
      %v3996 = vld [vmem:[%s3 + $0x30] sm:$0xff]
      %v3997 = vld [vmem:[%s3 + $0x38] sm:$0xff]
      %v3998 = vld [vmem:[%s3 + $0x40] sm:$0xff]
      %v3999 = vld [vmem:[%s3 + $0x48] sm:$0xff]
      %v4000 = vld [vmem:[%s3 + $0x50] sm:$0xff]
      %v4001 = vld [vmem:[%s3 + $0x58] sm:$0xff]
      %v4002 = vld [vmem:[%s3 + $0x60] sm:$0xff]
      %v4003 = vld [vmem:[%s3 + $0x68] sm:$0xff]
      %v4004 = vld [vmem:[%s3 + $0x70] sm:$0xff]
      %v4005 = vld [vmem:[%s3 + $0x78] sm:$0xff]
      %v4006 = vld [vmem:[%s3 + $0x80] sm:$0xff]
      %v4007 = vld [vmem:[%s3 + $0x88] sm:$0xff]
      %v4008 = vld [vmem:[%s3 + $0x90] sm:$0xff]
      %v4009 = vld [vmem:[%s3 + $0x98] sm:$0xff]
      %v4010 = vld [vmem:[%s3 + $0xa0] sm:$0xff]
      %v4011 = vld [vmem:[%s3 + $0xa8] sm:$0xff]
      %v4012 = vld [vmem:[%s3 + $0xb0] sm:$0xff]
      %v4013 = vld [vmem:[%s3 + $0xb8] sm:$0xff]
      %v4014 = vld [vmem:[%s3 + $0xc0] sm:$0xff]
      %v4015 = vld [vmem:[%s3 + $0xc8] sm:$0xff]
      %v4016 = vld [vmem:[%s3 + $0xd0] sm:$0xff]
      %v4017 = vld [vmem:[%s3 + $0xd8] sm:$0xff]
      %v4018 = vld [vmem:[%s3 + $0xe0] sm:$0xff]
      %v4019 = vld [vmem:[%s3 + $0xe8] sm:$0xff]
      %v4020 = vld [vmem:[%s3 + $0xf0] sm:$0xff]
      %v4021 = vld [vmem:[%s3 + $0xf8] sm:$0xff]
      %v4022 = vld [vmem:[%s3 + $0x100] sm:$0xff]
      %v4023 = vld [vmem:[%s3 + $0x108] sm:$0xff]
      %v4024 = vld [vmem:[%s3 + $0x110] sm:$0xff]
      %v4025 = vld [vmem:[%s3 + $0x118] sm:$0xff]
      %v4026 = vld [vmem:[%s4] sm:$0x1]
      %v4028 = vlaneseq
      %v4029 = vshrl.u32 %v4028, 7
      %v4030 = vsub.s32 0, %v4029
      %v4031 = vrot.slane %v4026, %v4030
      %v4034 = vsel %vm331, %v3897, 0
      %v4037 = vsel %vm331, %v3898, 0
      %v4040 = vsel %vm331, %v3899, 0
      %4042 = vmatprep.subr.mxu0 0.0
      %4043 = vmatpush1.msra.mxu0 %v3990
      %4044 = vmatprep.subr.mxu0 0.0
      %4045 = vmatpush1.msra.mxu0 %v3991
      %4046 = vmatprep.subr.mxu0 0.0
      %4047 = vmatpush1.msra.mxu0 %v3992
      %4048 = vmatprep.subr.mxu0 0.0
      %4049 = vmatpush1.msra.mxu0 %v3993
      %4050 = vmatprep.subr.mxu0 0.0
      %4051 = vmatpush1.msra.mxu0 %v3994
      %4052 = vmatprep.subr.mxu0 0.0
      %4053 = vmatpush1.msra.mxu0 %v3995
      %4054 = vmatprep.subr.mxu0 0.0
      %4055 = vmatpush1.msra.mxu0 %v3996
      %4056 = vmatprep.subr.mxu0 0.0
      %4057 = vmatpush1.msra.mxu0 %v3997
      %4058 = vmatprep.subr.mxu0 0.0
      %4059 = vmatpush1.msra.mxu0 %v3998
      %4060 = vmatprep.subr.mxu0 0.0
      %4061 = vmatpush1.msra.mxu0 %v3999
      %4062 = vmatprep.subr.mxu0 0.0
      %4063 = vmatpush1.msra.mxu0 %v4000
      %4064 = vmatprep.subr.mxu0 0.0
      %4065 = vmatpush1.msra.mxu0 %v4001
      %4066 = vmatprep.subr.mxu0 0.0
      %4067 = vmatpush1.msra.mxu0 %v4002
      %4068 = vmatprep.subr.mxu0 0.0
      %4069 = vmatpush1.msra.mxu0 %v4003
      %4070 = vmatprep.subr.mxu0 0.0
      %4071 = vmatpush1.msra.mxu0 %v4004
      %4072 = vmatprep.subr.mxu0 0.0
      %4073 = vmatpush1.msra.mxu0 %v4005
      %4074 = vmatprep.subr.mxu0 0.0
      %4075 = vmatpush1.msra.mxu0 %v4006
      %4076 = vmatprep.subr.mxu0 0.0
      %4077 = vmatpush1.msra.mxu0 %v4007
      %4078 = vmatprep.subr.mxu0 0.0
      %4079 = vmatpush1.msra.mxu0 %v4008
      %4080 = vmatprep.subr.mxu0 0.0
      %4081 = vmatpush1.msra.mxu0 %v4009
      %4082 = vmatprep.subr.mxu0 0.0
      %4083 = vmatpush1.msra.mxu0 %v4010
      %4084 = vmatprep.subr.mxu0 0.0
      %4085 = vmatpush1.msra.mxu0 %v4011
      %4086 = vmatprep.subr.mxu0 0.0
      %4087 = vmatpush1.msra.mxu0 %v4012
      %4088 = vmatprep.subr.mxu0 0.0
      %4089 = vmatpush1.msra.mxu0 %v4013
      %4090 = vmatprep.subr.mxu0 0.0
      %4091 = vmatpush1.msra.mxu0 %v4014
      %4092 = vmatprep.subr.mxu0 0.0
      %4093 = vmatpush1.msra.mxu0 %v4015
      %4094 = vmatprep.subr.mxu0 0.0
      %4095 = vmatpush1.msra.mxu0 %v4016
      %4096 = vmatprep.subr.mxu0 0.0
      %4097 = vmatpush1.msra.mxu0 %v4017
      %4098 = vmatprep.subr.mxu0 0.0
      %4099 = vmatpush1.msra.mxu0 %v4018
      %4100 = vmatprep.subr.mxu0 0.0
      %4101 = vmatpush1.msra.mxu0 %v4019
      %4102 = vmatprep.subr.mxu0 0.0
      %4103 = vmatpush1.msra.mxu0 %v4020
      %4104 = vmatprep.subr.mxu0 0.0
      %4105 = vmatpush1.msra.mxu0 %v4021
      %4106 = vmatprep.mubr.f32.mxu0 %v3987
      %4107 = vmatmul.mubr.f32.gmra.mrb[0].mxu0 %v3978
      %v4108 = vpop.f32.mrb[0].mxu0
      %v4109 = vadd.f32 %v4031, %v4108
      %v4110 = vpop.f32.mrb[0].mxu0
      %4111 = vmatprep.mubr.f32.mxu0 %v3988
      %4112 = vmatmul.mubr.f32.gmra.mrb[0].mxu0 %v3979
      %v4113 = vpop.f32.mrb[0].mxu0
      %v4114 = vadd.f32 %v4031, %v4113
      %v4115 = vpop.f32.mrb[0].mxu0
      %4116 = vmatprep.mubr.f32.mxu0 %v3989
      %4117 = vmatmul.mubr.f32.gmra.mrb[0].mxu0 %v3980
      %v4118 = vpop.f32.mrb[0].mxu0
      %v4119 = vadd.f32 %v4031, %v4118
      %v4120 = vpop.f32.mrb[0].mxu0
      %4121 = vdwg.mxu0
      %4122 = vmatprep.subr.mxu0 0.0
      %4123 = vmatpush1.msra.mxu0 %v4022
      %4124 = vmatprep.subr.mxu0 0.0
      %4125 = vmatpush1.msra.mxu0 %v4023
      %4126 = vmatprep.subr.mxu0 0.0
      %4127 = vmatpush1.msra.mxu0 %v4024
      %4128 = vmatprep.subr.mxu0 0.0
      %4129 = vmatpush1.msra.mxu0 %v4025
      %4130 = vmatprep.subr.mxu0 0.0
      %4131 = vmatpush1.msra.mxu0 0.0
      %4132 = vmatprep.subr.mxu0 0.0
      %4133 = vmatpush1.msra.mxu0 0.0
      %4134 = vmatprep.subr.mxu0 0.0
      %4135 = vmatpush1.msra.mxu0 0.0
      %4136 = vmatprep.subr.mxu0 0.0
      %4137 = vmatpush1.msra.mxu0 0.0
      %4138 = vmatprep.subr.mxu0 0.0
      %4139 = vmatpush1.msra.mxu0 0.0
      %4140 = vmatprep.subr.mxu0 0.0
      %4141 = vmatpush1.msra.mxu0 0.0
      %4142 = vmatprep.subr.mxu0 0.0
      %4143 = vmatpush1.msra.mxu0 0.0
      %4144 = vmatprep.subr.mxu0 0.0
      %4145 = vmatpush1.msra.mxu0 0.0
      %4146 = vmatprep.subr.mxu0 0.0
      %4147 = vmatpush1.msra.mxu0 0.0
      %4148 = vmatprep.subr.mxu0 0.0
      %4149 = vmatpush1.msra.mxu0 0.0
      %4150 = vmatprep.subr.mxu0 0.0
      %4151 = vmatpush1.msra.mxu0 0.0
      %4152 = vmatprep.subr.mxu0 0.0
      %4153 = vmatpush1.msra.mxu0 0.0
      %4154 = vmatprep.subr.mxu0 0.0
      %4155 = vmatpush1.msra.mxu0 0.0
      %4156 = vmatprep.subr.mxu0 0.0
      %4157 = vmatpush1.msra.mxu0 0.0
      %4158 = vmatprep.subr.mxu0 0.0
      %4159 = vmatpush1.msra.mxu0 0.0
      %4160 = vmatprep.subr.mxu0 0.0
      %4161 = vmatpush1.msra.mxu0 0.0
      %4162 = vmatprep.subr.mxu0 0.0
      %4163 = vmatpush1.msra.mxu0 0.0
      %4164 = vmatprep.subr.mxu0 0.0
      %4165 = vmatpush1.msra.mxu0 0.0
      %4166 = vmatprep.subr.mxu0 0.0
      %4167 = vmatpush1.msra.mxu0 0.0
      %4168 = vmatprep.subr.mxu0 0.0
      %4169 = vmatpush1.msra.mxu0 0.0
      %4170 = vmatprep.subr.mxu0 0.0
      %4171 = vmatpush1.msra.mxu0 0.0
      %4172 = vmatprep.subr.mxu0 0.0
      %4173 = vmatpush1.msra.mxu0 0.0
      %4174 = vmatprep.subr.mxu0 0.0
      %4175 = vmatpush1.msra.mxu0 0.0
      %4176 = vmatprep.subr.mxu0 0.0
      %4177 = vmatpush1.msra.mxu0 0.0
      %4178 = vmatprep.subr.mxu0 0.0
      %4179 = vmatpush1.msra.mxu0 0.0
      %4180 = vmatprep.subr.mxu0 0.0
      %4181 = vmatpush1.msra.mxu0 0.0
      %4182 = vmatprep.subr.mxu0 0.0
      %4183 = vmatpush1.msra.mxu0 0.0
      %4184 = vmatprep.subr.mxu0 0.0
      %4185 = vmatpush1.msra.mxu0 0.0
      %4186 = vmatprep.mubr.f32.mxu0 0.0
      %4187 = vmatmul.mubr.f32.gmra.mrb[0].mxu0 %v4034
      %v4188 = vpop.f32.mrb[0].mxu0
      %v4189 = vadd.f32 %v4109, %v4188
      %v4190 = vpop.f32.mrb[0].mxu0
      %4191 = vmatprep.mubr.f32.mxu0 0.0
      %4192 = vmatmul.mubr.f32.gmra.mrb[0].mxu0 %v4037
      %v4193 = vpop.f32.mrb[0].mxu0
      %v4194 = vadd.f32 %v4114, %v4193
      %v4195 = vpop.f32.mrb[0].mxu0
      %4196 = vmatprep.mubr.f32.mxu0 0.0
      %4197 = vmatmul.mubr.f32.gmra.mrb[0].mxu0 %v4040
      %v4198 = vpop.f32.mrb[0].mxu0
      %v4199 = vadd.f32 %v4119, %v4198
      %v4200 = vpop.f32.mrb[0].mxu0
      %4201 = vdwg.mxu0
      %vm4202 = vcmp.ge.f32.partialorder %v4189, 0.0
      %vm4203 = vcmp.ge.f32.partialorder %v4194, 0.0
      %vm4204 = vcmp.ge.f32.partialorder %v4199, 0.0
      %v4205 = vmul.f32 %v4189, 0.2
      %v4206 = vmul.f32 %v4194, 0.2
      %v4207 = vmul.f32 %v4199, 0.2
      %v4208 = vsel %vm4202, %v4189, %v4205
      %v4209 = vsel %vm4203, %v4194, %v4206
      %v4210 = vsel %vm4204, %v4199, %v4207
      %v4212 = vsel %vm2715, %v4210, 0
      %4214 = vmatprep.subr.mxu0 0.0
      %4215 = vmatpush1.msra.mxu0 %v4208
      %4216 = vmatprep.subr.mxu0 0.0
      %4217 = vmatpush1.msra.mxu0 %v4209
      %4218 = vmatprep.subr.mxu0 0.0
      %4219 = vmatpush1.msra.mxu0 %v4212
      %4220 = vmatprep.subr.mxu0 0.0
      %4221 = vmatpush1.msra.mxu0 0.0
      %4222 = vmatprep.subr.mxu0 0.0
      %4223 = vmatpush1.msra.mxu0 0.0
      %4224 = vmatprep.subr.mxu0 0.0
      %4225 = vmatpush1.msra.mxu0 0.0
      %4226 = vmatprep.subr.mxu0 0.0
      %4227 = vmatpush1.msra.mxu0 0.0
      %4228 = vmatprep.subr.mxu0 0.0
      %4229 = vmatpush1.msra.mxu0 0.0
      %4230 = vmatprep.subr.mxu0 0.0
      %4231 = vmatpush1.msra.mxu0 0.0
      %4232 = vmatprep.subr.mxu0 0.0
      %4233 = vmatpush1.msra.mxu0 0.0
      %4234 = vmatprep.subr.mxu0 0.0
      %4235 = vmatpush1.msra.mxu0 0.0
      %4236 = vmatprep.subr.mxu0 0.0
      %4237 = vmatpush1.msra.mxu0 0.0
      %4238 = vmatprep.subr.mxu0 0.0
      %4239 = vmatpush1.msra.mxu0 0.0
      %4240 = vmatprep.subr.mxu0 0.0
      %4241 = vmatpush1.msra.mxu0 0.0
      %4242 = vmatprep.subr.mxu0 0.0
      %4243 = vmatpush1.msra.mxu0 0.0
      %4244 = vmatprep.subr.mxu0 0.0
      %4245 = vmatpush1.msra.mxu0 0.0
      %4246 = vmatprep.subr.mxu0 0.0
      %4247 = vmatpush1.msra.mxu0 0.0
      %4248 = vmatprep.subr.mxu0 0.0
      %4249 = vmatpush1.msra.mxu0 0.0
      %4250 = vmatprep.subr.mxu0 0.0
      %4251 = vmatpush1.msra.mxu0 0.0
      %4252 = vmatprep.subr.mxu0 0.0
      %4253 = vmatpush1.msra.mxu0 0.0
      %4254 = vmatprep.subr.mxu0 0.0
      %4255 = vmatpush1.msra.mxu0 0.0
      %4256 = vmatprep.subr.mxu0 0.0
      %4257 = vmatpush1.msra.mxu0 0.0
      %4258 = vmatprep.subr.mxu0 0.0
      %4259 = vmatpush1.msra.mxu0 0.0
      %4260 = vmatprep.subr.mxu0 0.0
      %4261 = vmatpush1.msra.mxu0 0.0
      %4262 = vmatprep.subr.mxu0 0.0
      %4263 = vmatpush1.msra.mxu0 0.0
      %4264 = vmatprep.subr.mxu0 0.0
      %4265 = vmatpush1.msra.mxu0 0.0
      %4266 = vmatprep.subr.mxu0 0.0
      %4267 = vmatpush1.msra.mxu0 0.0
      %4268 = vmatprep.subr.mxu0 0.0
      %4269 = vmatpush1.msra.mxu0 0.0
      %4270 = vmatprep.subr.mxu0 0.0
      %4271 = vmatpush1.msra.mxu0 0.0
      %4272 = vmatprep.subr.mxu0 0.0
      %4273 = vmatpush1.msra.mxu0 0.0
      %4274 = vmatprep.subr.mxu0 0.0
      %4275 = vmatpush1.msra.mxu0 0.0
      %4276 = vmatprep.subr.mxu0 0.0
      %4277 = vmatpush1.msra.mxu0 0.0
      %4278 = vmatprep.mubr.f32.mxu0 0.0
      %4279 = vmatmul.mubr.f32.gmra.mrb[0].mxu0 %v2711
      %v4280 = vpop.f32.mrb[0].mxu0
      %v4281 = vadd.f32 0.0, %v4280
      %v4282 = vpop.f32.mrb[0].mxu0
      %4283 = vmatprep.mubr.f32.mxu0 0.0
      %4284 = vmatmul.mubr.f32.gmra.mrb[0].mxu0 %v2713
      %v4285 = vpop.f32.mrb[0].mxu0
      %v4286 = vadd.f32 0.0, %v4285
      %v4287 = vpop.f32.mrb[0].mxu0
      %4288 = vdwg.mxu0
      %s4289 = scalar_lea.vmem [#allocation4], 64
      %4290 = vst.msk [vmem:[%s4289] sm:$0xff] %vm331, %v4281
      %4291 = vst.msk [vmem:[%s4289 + $0x8] sm:$0x7] %vm394, %v4286
      %4292 = vmatprep.subr.mxu0 0.0
      %4293 = vmatpush1.msra.mxu0 %v4208
      %4294 = vmatprep.subr.mxu0 0.0
      %4295 = vmatpush1.msra.mxu0 %v4209
      %4296 = vmatprep.subr.mxu0 0.0
      %4297 = vmatpush1.msra.mxu0 %v4212
      %4298 = vmatprep.subr.mxu0 0.0
      %4299 = vmatpush1.msra.mxu0 0.0
      %4300 = vmatprep.subr.mxu0 0.0
      %4301 = vmatpush1.msra.mxu0 0.0
      %4302 = vmatprep.subr.mxu0 0.0
      %4303 = vmatpush1.msra.mxu0 0.0
      %4304 = vmatprep.subr.mxu0 0.0
      %4305 = vmatpush1.msra.mxu0 0.0
      %4306 = vmatprep.subr.mxu0 0.0
      %4307 = vmatpush1.msra.mxu0 0.0
      %4308 = vmatprep.subr.mxu0 0.0
      %4309 = vmatpush1.msra.mxu0 0.0
      %4310 = vmatprep.subr.mxu0 0.0
      %4311 = vmatpush1.msra.mxu0 0.0
      %4312 = vmatprep.subr.mxu0 0.0
      %4313 = vmatpush1.msra.mxu0 0.0
      %4314 = vmatprep.subr.mxu0 0.0
      %4315 = vmatpush1.msra.mxu0 0.0
      %4316 = vmatprep.subr.mxu0 0.0
      %4317 = vmatpush1.msra.mxu0 0.0
      %4318 = vmatprep.subr.mxu0 0.0
      %4319 = vmatpush1.msra.mxu0 0.0
      %4320 = vmatprep.subr.mxu0 0.0
      %4321 = vmatpush1.msra.mxu0 0.0
      %4322 = vmatprep.subr.mxu0 0.0
      %4323 = vmatpush1.msra.mxu0 0.0
      %4324 = vmatprep.subr.mxu0 0.0
      %4325 = vmatpush1.msra.mxu0 0.0
      %4326 = vmatprep.subr.mxu0 0.0
      %4327 = vmatpush1.msra.mxu0 0.0
      %4328 = vmatprep.subr.mxu0 0.0
      %4329 = vmatpush1.msra.mxu0 0.0
      %4330 = vmatprep.subr.mxu0 0.0
      %4331 = vmatpush1.msra.mxu0 0.0
      %4332 = vmatprep.subr.mxu0 0.0
      %4333 = vmatpush1.msra.mxu0 0.0
      %4334 = vmatprep.subr.mxu0 0.0
      %4335 = vmatpush1.msra.mxu0 0.0
      %4336 = vmatprep.subr.mxu0 0.0
      %4337 = vmatpush1.msra.mxu0 0.0
      %4338 = vmatprep.subr.mxu0 0.0
      %4339 = vmatpush1.msra.mxu0 0.0
      %4340 = vmatprep.subr.mxu0 0.0
      %4341 = vmatpush1.msra.mxu0 0.0
      %4342 = vmatprep.subr.mxu0 0.0
      %4343 = vmatpush1.msra.mxu0 0.0
      %4344 = vmatprep.subr.mxu0 0.0
      %4345 = vmatpush1.msra.mxu0 0.0
      %4346 = vmatprep.subr.mxu0 0.0
      %4347 = vmatpush1.msra.mxu0 0.0
      %4348 = vmatprep.subr.mxu0 0.0
      %4349 = vmatpush1.msra.mxu0 0.0
      %4350 = vmatprep.subr.mxu0 0.0
      %4351 = vmatpush1.msra.mxu0 0.0
      %4352 = vmatprep.subr.mxu0 0.0
      %4353 = vmatpush1.msra.mxu0 0.0
      %4354 = vmatprep.subr.mxu0 0.0
      %4355 = vmatpush1.msra.mxu0 0.0
      %4356 = vmatprep.mubr.f32.mxu0 0.0
      %4357 = vmatmul.mubr.f32.gmra.mrb[0].mxu0 %v2797
      %v4358 = vpop.f32.mrb[0].mxu0
      %v4359 = vadd.f32 0.0, %v4358
      %v4360 = vpop.f32.mrb[0].mxu0
      %4361 = vmatprep.mubr.f32.mxu0 0.0
      %4362 = vmatmul.mubr.f32.gmra.mrb[0].mxu0 %v2799
      %v4363 = vpop.f32.mrb[0].mxu0
      %v4364 = vadd.f32 0.0, %v4363
      %v4365 = vpop.f32.mrb[0].mxu0
      %4366 = vdwg.mxu0
      %s4367 = scalar_lea.vmem [#allocation5], 64
      %4368 = vst.msk [vmem:[%s4367] sm:$0xff] %vm331, %v4359
      %4369 = vst.msk [vmem:[%s4367 + $0x8] sm:$0x7] %vm394, %v4364
      %v4370 = vld [vmem:[#allocation4] sm:$0xff]
      %v4371 = vld [vmem:[#allocation4 + $0x8] sm:$0x3]
      %v4372 = vld [vmem:[#allocation5] sm:$0xff]
      %v4373 = vld [vmem:[#allocation5 + $0x8] sm:$0x3]
      %v4374 = vld [vmem:[#allocation4 + $0x1] sm:$0xff]
      %v4375 = vld [vmem:[#allocation4 + $0x9] sm:$0x3]
      %v4376 = vld [vmem:[%s2794] sm:$0xff]
      %v4377 = vld [vmem:[%s2794 + $0x8] sm:$0x3]
      %v4378 = vld [vmem:[%s2876] sm:$0xff]
      %v4379 = vld [vmem:[%s2876 + $0x8] sm:$0x3]
      %v4380 = vld [vmem:[%s2794 + $0x1] sm:$0xff]
      %v4381 = vld [vmem:[%s2794 + $0x9] sm:$0x3]
      %v4382 = vld [vmem:[%s3295] sm:$0xff]
      %v4383 = vld [vmem:[%s3295 + $0x8] sm:$0x3]
      %v4384 = vld [vmem:[%s3373] sm:$0xff]
      %v4385 = vld [vmem:[%s3373 + $0x8] sm:$0x3]
      %v4386 = vld [vmem:[%s3295 + $0x1] sm:$0xff]
      %v4387 = vld [vmem:[%s3295 + $0x9] sm:$0x3]
      %4390 = vrot.lane.b32.xlu0 %v4372, 32
      %v4391 = vpop.permute.xlu0 %4390
      %4392 = vrot.lane.b32.xlu0 %v4373, 32
      %v4393 = vpop.permute.xlu0 %4392
      %4398 = vrot.lane.b32.xlu0 %v4374, 64
      %v4399 = vpop.permute.xlu0 %4398
      %4400 = vrot.lane.b32.xlu0 %v4375, 64
      %v4401 = vpop.permute.xlu0 %4400
      %4406 = vrot.lane.b32.xlu0 %v4376, 96
      %v4407 = vpop.permute.xlu0 %4406
      %4408 = vrot.lane.b32.xlu0 %v4377, 96
      %v4409 = vpop.permute.xlu0 %4408
      %4414 = vrot.lane.b32.xlu0 %v4380, 32
      %v4415 = vpop.permute.xlu0 %4414
      %4416 = vrot.lane.b32.xlu0 %v4381, 32
      %v4417 = vpop.permute.xlu0 %4416
      %4422 = vrot.lane.b32.xlu0 %v4382, 64
      %v4423 = vpop.permute.xlu0 %4422
      %4424 = vrot.lane.b32.xlu0 %v4383, 64
      %v4425 = vpop.permute.xlu0 %4424
      %4430 = vrot.lane.b32.xlu0 %v4384, 96
      %v4431 = vpop.permute.xlu0 %4430
      %4432 = vrot.lane.b32.xlu0 %v4385, 96
      %v4433 = vpop.permute.xlu0 %4432
      %v4436 = vsel %vm331, %v4370, %v4391
      %v4437 = vsel %vm331, %v4371, %v4393
      %v4438 = vsel %vm2472, %v4436, %v4399
      %v4439 = vsel %vm2472, %v4437, %v4401
      %v4440 = vsel %vm2476, %v4438, %v4407
      %v4441 = vsel %vm2476, %v4439, %v4409
      %v4442 = vsel %vm331, %v4378, %v4415
      %v4443 = vsel %vm331, %v4379, %v4417
      %v4444 = vsel %vm2472, %v4442, %v4423
      %v4445 = vsel %vm2472, %v4443, %v4425
      %v4446 = vsel %vm2476, %v4444, %v4431
      %v4447 = vsel %vm2476, %v4445, %v4433
      %v4448 = vld [vmem:[%s5] sm:$0xff]
      %v4449 = vld [vmem:[%s5 + $0x8] sm:$0xff]
      %v4450 = vld [vmem:[%s5 + $0x10] sm:$0xff]
      %v4451 = vld [vmem:[%s5 + $0x18] sm:$0xff]
      %v4452 = vld [vmem:[%s5 + $0x20] sm:$0xff]
      %v4453 = vld [vmem:[%s5 + $0x28] sm:$0xff]
      %v4454 = vld [vmem:[%s5 + $0x30] sm:$0xff]
      %v4455 = vld [vmem:[%s5 + $0x38] sm:$0xff]
      %v4456 = vld [vmem:[%s5 + $0x40] sm:$0xff]
      %v4457 = vld [vmem:[%s5 + $0x48] sm:$0xff]
      %v4458 = vld [vmem:[%s5 + $0x50] sm:$0xff]
      %v4459 = vld [vmem:[%s5 + $0x58] sm:$0xff]
      %v4460 = vld [vmem:[%s5 + $0x60] sm:$0xff]
      %v4461 = vld [vmem:[%s5 + $0x68] sm:$0xff]
      %v4462 = vld [vmem:[%s5 + $0x70] sm:$0xff]
      %v4463 = vld [vmem:[%s5 + $0x78] sm:$0xff]
      %v4464 = vld [vmem:[%s5 + $0x80] sm:$0xff]
      %v4465 = vld [vmem:[%s5 + $0x88] sm:$0xff]
      %v4466 = vld [vmem:[%s5 + $0x90] sm:$0xff]
      %v4467 = vld [vmem:[%s5 + $0x98] sm:$0xff]
      %v4468 = vld [vmem:[%s5 + $0xa0] sm:$0xff]
      %v4469 = vld [vmem:[%s5 + $0xa8] sm:$0xff]
      %v4470 = vld [vmem:[%s5 + $0xb0] sm:$0xff]
      %v4471 = vld [vmem:[%s5 + $0xb8] sm:$0xff]
      %v4472 = vld [vmem:[%s5 + $0xc0] sm:$0xff]
      %v4473 = vld [vmem:[%s5 + $0xc8] sm:$0xff]
      %v4474 = vld [vmem:[%s5 + $0xd0] sm:$0xff]
      %v4475 = vld [vmem:[%s5 + $0xd8] sm:$0xff]
      %v4476 = vld [vmem:[%s5 + $0xe0] sm:$0xff]
      %v4477 = vld [vmem:[%s5 + $0xe8] sm:$0xff]
      %v4478 = vld [vmem:[%s5 + $0xf0] sm:$0xff]
      %v4479 = vld [vmem:[%s5 + $0xf8] sm:$0xff]
      %v4480 = vld [vmem:[%s5 + $0x100] sm:$0xff]
      %v4481 = vld [vmem:[%s5 + $0x108] sm:$0xff]
      %v4482 = vld [vmem:[%s5 + $0x110] sm:$0xff]
      %v4483 = vld [vmem:[%s5 + $0x118] sm:$0xff]
      %v4484 = vld [vmem:[%s6] sm:$0x1]
      %v4486 = vlaneseq
      %v4487 = vshrl.u32 %v4486, 7
      %v4488 = vsub.s32 0, %v4487
      %v4489 = vrot.slane %v4484, %v4488
      %v4492 = vsel %vm331, %v4386, 0
      %v4495 = vsel %vm331, %v4387, 0
      %4497 = vmatprep.subr.mxu0 0.0
      %4498 = vmatpush1.msra.mxu0 %v4448
      %4499 = vmatprep.subr.mxu0 0.0
      %4500 = vmatpush1.msra.mxu0 %v4449
      %4501 = vmatprep.subr.mxu0 0.0
      %4502 = vmatpush1.msra.mxu0 %v4450
      %4503 = vmatprep.subr.mxu0 0.0
      %4504 = vmatpush1.msra.mxu0 %v4451
      %4505 = vmatprep.subr.mxu0 0.0
      %4506 = vmatpush1.msra.mxu0 %v4452
      %4507 = vmatprep.subr.mxu0 0.0
      %4508 = vmatpush1.msra.mxu0 %v4453
      %4509 = vmatprep.subr.mxu0 0.0
      %4510 = vmatpush1.msra.mxu0 %v4454
      %4511 = vmatprep.subr.mxu0 0.0
      %4512 = vmatpush1.msra.mxu0 %v4455
      %4513 = vmatprep.subr.mxu0 0.0
      %4514 = vmatpush1.msra.mxu0 %v4456
      %4515 = vmatprep.subr.mxu0 0.0
      %4516 = vmatpush1.msra.mxu0 %v4457
      %4517 = vmatprep.subr.mxu0 0.0
      %4518 = vmatpush1.msra.mxu0 %v4458
      %4519 = vmatprep.subr.mxu0 0.0
      %4520 = vmatpush1.msra.mxu0 %v4459
      %4521 = vmatprep.subr.mxu0 0.0
      %4522 = vmatpush1.msra.mxu0 %v4460
      %4523 = vmatprep.subr.mxu0 0.0
      %4524 = vmatpush1.msra.mxu0 %v4461
      %4525 = vmatprep.subr.mxu0 0.0
      %4526 = vmatpush1.msra.mxu0 %v4462
      %4527 = vmatprep.subr.mxu0 0.0
      %4528 = vmatpush1.msra.mxu0 %v4463
      %4529 = vmatprep.subr.mxu0 0.0
      %4530 = vmatpush1.msra.mxu0 %v4464
      %4531 = vmatprep.subr.mxu0 0.0
      %4532 = vmatpush1.msra.mxu0 %v4465
      %4533 = vmatprep.subr.mxu0 0.0
      %4534 = vmatpush1.msra.mxu0 %v4466
      %4535 = vmatprep.subr.mxu0 0.0
      %4536 = vmatpush1.msra.mxu0 %v4467
      %4537 = vmatprep.subr.mxu0 0.0
      %4538 = vmatpush1.msra.mxu0 %v4468
      %4539 = vmatprep.subr.mxu0 0.0
      %4540 = vmatpush1.msra.mxu0 %v4469
      %4541 = vmatprep.subr.mxu0 0.0
      %4542 = vmatpush1.msra.mxu0 %v4470
      %4543 = vmatprep.subr.mxu0 0.0
      %4544 = vmatpush1.msra.mxu0 %v4471
      %4545 = vmatprep.subr.mxu0 0.0
      %4546 = vmatpush1.msra.mxu0 %v4472
      %4547 = vmatprep.subr.mxu0 0.0
      %4548 = vmatpush1.msra.mxu0 %v4473
      %4549 = vmatprep.subr.mxu0 0.0
      %4550 = vmatpush1.msra.mxu0 %v4474
      %4551 = vmatprep.subr.mxu0 0.0
      %4552 = vmatpush1.msra.mxu0 %v4475
      %4553 = vmatprep.subr.mxu0 0.0
      %4554 = vmatpush1.msra.mxu0 %v4476
      %4555 = vmatprep.subr.mxu0 0.0
      %4556 = vmatpush1.msra.mxu0 %v4477
      %4557 = vmatprep.subr.mxu0 0.0
      %4558 = vmatpush1.msra.mxu0 %v4478
      %4559 = vmatprep.subr.mxu0 0.0
      %4560 = vmatpush1.msra.mxu0 %v4479
      %4561 = vmatprep.mubr.f32.mxu0 %v4446
      %4562 = vmatmul.mubr.f32.gmra.mrb[0].mxu0 %v4440
      %v4563 = vpop.f32.mrb[0].mxu0
      %v4564 = vadd.f32 %v4489, %v4563
      %v4565 = vpop.f32.mrb[0].mxu0
      %4566 = vmatprep.mubr.f32.mxu0 %v4447
      %4567 = vmatmul.mubr.f32.gmra.mrb[0].mxu0 %v4441
      %v4568 = vpop.f32.mrb[0].mxu0
      %v4569 = vadd.f32 %v4489, %v4568
      %v4570 = vpop.f32.mrb[0].mxu0
      %4571 = vdwg.mxu0
      %4572 = vmatprep.subr.mxu0 0.0
      %4573 = vmatpush1.msra.mxu0 %v4480
      %4574 = vmatprep.subr.mxu0 0.0
      %4575 = vmatpush1.msra.mxu0 %v4481
      %4576 = vmatprep.subr.mxu0 0.0
      %4577 = vmatpush1.msra.mxu0 %v4482
      %4578 = vmatprep.subr.mxu0 0.0
      %4579 = vmatpush1.msra.mxu0 %v4483
      %4580 = vmatprep.subr.mxu0 0.0
      %4581 = vmatpush1.msra.mxu0 0.0
      %4582 = vmatprep.subr.mxu0 0.0
      %4583 = vmatpush1.msra.mxu0 0.0
      %4584 = vmatprep.subr.mxu0 0.0
      %4585 = vmatpush1.msra.mxu0 0.0
      %4586 = vmatprep.subr.mxu0 0.0
      %4587 = vmatpush1.msra.mxu0 0.0
      %4588 = vmatprep.subr.mxu0 0.0
      %4589 = vmatpush1.msra.mxu0 0.0
      %4590 = vmatprep.subr.mxu0 0.0
      %4591 = vmatpush1.msra.mxu0 0.0
      %4592 = vmatprep.subr.mxu0 0.0
      %4593 = vmatpush1.msra.mxu0 0.0
      %4594 = vmatprep.subr.mxu0 0.0
      %4595 = vmatpush1.msra.mxu0 0.0
      %4596 = vmatprep.subr.mxu0 0.0
      %4597 = vmatpush1.msra.mxu0 0.0
      %4598 = vmatprep.subr.mxu0 0.0
      %4599 = vmatpush1.msra.mxu0 0.0
      %4600 = vmatprep.subr.mxu0 0.0
      %4601 = vmatpush1.msra.mxu0 0.0
      %4602 = vmatprep.subr.mxu0 0.0
      %4603 = vmatpush1.msra.mxu0 0.0
      %4604 = vmatprep.subr.mxu0 0.0
      %4605 = vmatpush1.msra.mxu0 0.0
      %4606 = vmatprep.subr.mxu0 0.0
      %4607 = vmatpush1.msra.mxu0 0.0
      %4608 = vmatprep.subr.mxu0 0.0
      %4609 = vmatpush1.msra.mxu0 0.0
      %4610 = vmatprep.subr.mxu0 0.0
      %4611 = vmatpush1.msra.mxu0 0.0
      %4612 = vmatprep.subr.mxu0 0.0
      %4613 = vmatpush1.msra.mxu0 0.0
      %4614 = vmatprep.subr.mxu0 0.0
      %4615 = vmatpush1.msra.mxu0 0.0
      %4616 = vmatprep.subr.mxu0 0.0
      %4617 = vmatpush1.msra.mxu0 0.0
      %4618 = vmatprep.subr.mxu0 0.0
      %4619 = vmatpush1.msra.mxu0 0.0
      %4620 = vmatprep.subr.mxu0 0.0
      %4621 = vmatpush1.msra.mxu0 0.0
      %4622 = vmatprep.subr.mxu0 0.0
      %4623 = vmatpush1.msra.mxu0 0.0
      %4624 = vmatprep.subr.mxu0 0.0
      %4625 = vmatpush1.msra.mxu0 0.0
      %4626 = vmatprep.subr.mxu0 0.0
      %4627 = vmatpush1.msra.mxu0 0.0
      %4628 = vmatprep.subr.mxu0 0.0
      %4629 = vmatpush1.msra.mxu0 0.0
      %4630 = vmatprep.subr.mxu0 0.0
      %4631 = vmatpush1.msra.mxu0 0.0
      %4632 = vmatprep.subr.mxu0 0.0
      %4633 = vmatpush1.msra.mxu0 0.0
      %4634 = vmatprep.subr.mxu0 0.0
      %4635 = vmatpush1.msra.mxu0 0.0
      %4636 = vmatprep.mubr.f32.mxu0 0.0
      %4637 = vmatmul.mubr.f32.gmra.mrb[0].mxu0 %v4492
      %v4638 = vpop.f32.mrb[0].mxu0
      %v4639 = vadd.f32 %v4564, %v4638
      %v4640 = vpop.f32.mrb[0].mxu0
      %4641 = vmatprep.mubr.f32.mxu0 0.0
      %4642 = vmatmul.mubr.f32.gmra.mrb[0].mxu0 %v4495
      %v4643 = vpop.f32.mrb[0].mxu0
      %v4644 = vadd.f32 %v4569, %v4643
      %v4645 = vpop.f32.mrb[0].mxu0
      %4646 = vdwg.mxu0
      %vm4647 = vcmp.ge.f32.partialorder %v4639, 0.0
      %vm4648 = vcmp.ge.f32.partialorder %v4644, 0.0
      %v4649 = vmul.f32 %v4639, 0.2
      %v4650 = vmul.f32 %v4644, 0.2
      %v4651 = vsel %vm4647, %v4639, %v4649
      %v4652 = vsel %vm4648, %v4644, %v4650
      %v4653 = vld [vmem:[%s7] sm:$0xff]
      %v4654 = vld [vmem:[%s7 + $0x8] sm:$0x3]
      %v4655 = vmul.f32 %v4651, %v4653
      %v4656 = vmul.f32 %v4652, %v4654
      %v4657 = vsel %vm331, %v4655, 0.0
      %vm4658 = vcmask 254976
      %v4659 = vsel %vm4658, %v4656, 0.0
      %v4660 = vadd.f32 %v4657, %v4659
      %v4661 = vrot.slane %v4660, 4
      %v4662 = vadd.f32 %v4660, %v4661
      %v4663 = vrot.slane %v4662, 2
      %v4664 = vadd.f32 %v4662, %v4663
      %v4665 = vrot.slane %v4664, 1
      %v4666 = vadd.f32 %v4664, %v4665
      %v4667 = vadd.f32 %v4666, 0.0
      %v4668 = vld [vmem:[%s3792] sm:$0xff]
      %v4669 = vld [vmem:[%s3792 + $0x8] sm:$0x3]
      %v4670 = vld [vmem:[%s3870] sm:$0xff]
      %v4671 = vld [vmem:[%s3870 + $0x8] sm:$0x3]
      %v4672 = vld [vmem:[%s3792 + $0x1] sm:$0xff]
      %v4673 = vld [vmem:[%s3792 + $0x9] sm:$0x3]
      %v4674 = vld [vmem:[%s4289] sm:$0xff]
      %v4675 = vld [vmem:[%s4289 + $0x8] sm:$0x3]
      %v4676 = vld [vmem:[%s4367] sm:$0xff]
      %v4677 = vld [vmem:[%s4367 + $0x8] sm:$0x3]
      %v4678 = vld [vmem:[%s4289 + $0x1] sm:$0xff]
      %v4679 = vld [vmem:[%s4289 + $0x9] sm:$0x3]
      %4680 = vrot.lane.b32.xlu0 %v4384, 32
      %v4681 = vpop.permute.xlu0 %4680
      %4682 = vrot.lane.b32.xlu0 %v4385, 32
      %v4683 = vpop.permute.xlu0 %4682
      %4686 = vrot.lane.b32.xlu0 %v4386, 64
      %v4687 = vpop.permute.xlu0 %4686
      %4688 = vrot.lane.b32.xlu0 %v4387, 64
      %v4689 = vpop.permute.xlu0 %4688
      %4694 = vrot.lane.b32.xlu0 %v4668, 96
      %v4695 = vpop.permute.xlu0 %4694
      %4696 = vrot.lane.b32.xlu0 %v4669, 96
      %v4697 = vpop.permute.xlu0 %4696
      %4702 = vrot.lane.b32.xlu0 %v4672, 32
      %v4703 = vpop.permute.xlu0 %4702
      %4704 = vrot.lane.b32.xlu0 %v4673, 32
      %v4705 = vpop.permute.xlu0 %4704
      %4710 = vrot.lane.b32.xlu0 %v4674, 64
      %v4711 = vpop.permute.xlu0 %4710
      %4712 = vrot.lane.b32.xlu0 %v4675, 64
      %v4713 = vpop.permute.xlu0 %4712
      %4718 = vrot.lane.b32.xlu0 %v4676, 96
      %v4719 = vpop.permute.xlu0 %4718
      %4720 = vrot.lane.b32.xlu0 %v4677, 96
      %v4721 = vpop.permute.xlu0 %4720
      %v4724 = vsel %vm331, %v4382, %v4681
      %v4725 = vsel %vm331, %v4383, %v4683
      %v4726 = vsel %vm2472, %v4724, %v4687
      %v4727 = vsel %vm2472, %v4725, %v4689
      %v4728 = vsel %vm2476, %v4726, %v4695
      %v4729 = vsel %vm2476, %v4727, %v4697
      %v4730 = vsel %vm331, %v4670, %v4703
      %v4731 = vsel %vm331, %v4671, %v4705
      %v4732 = vsel %vm2472, %v4730, %v4711
      %v4733 = vsel %vm2472, %v4731, %v4713
      %v4734 = vsel %vm2476, %v4732, %v4719
      %v4735 = vsel %vm2476, %v4733, %v4721
      %v4737 = vsel %vm331, %v4678, 0
      %v4740 = vsel %vm331, %v4679, 0
      %4742 = vmatprep.subr.mxu0 0.0
      %4743 = vmatpush1.msra.mxu0 %v4448
      %4744 = vmatprep.subr.mxu0 0.0
      %4745 = vmatpush1.msra.mxu0 %v4449
      %4746 = vmatprep.subr.mxu0 0.0
      %4747 = vmatpush1.msra.mxu0 %v4450
      %4748 = vmatprep.subr.mxu0 0.0
      %4749 = vmatpush1.msra.mxu0 %v4451
      %4750 = vmatprep.subr.mxu0 0.0
      %4751 = vmatpush1.msra.mxu0 %v4452
      %4752 = vmatprep.subr.mxu0 0.0
      %4753 = vmatpush1.msra.mxu0 %v4453
      %4754 = vmatprep.subr.mxu0 0.0
      %4755 = vmatpush1.msra.mxu0 %v4454
      %4756 = vmatprep.subr.mxu0 0.0
      %4757 = vmatpush1.msra.mxu0 %v4455
      %4758 = vmatprep.subr.mxu0 0.0
      %4759 = vmatpush1.msra.mxu0 %v4456
      %4760 = vmatprep.subr.mxu0 0.0
      %4761 = vmatpush1.msra.mxu0 %v4457
      %4762 = vmatprep.subr.mxu0 0.0
      %4763 = vmatpush1.msra.mxu0 %v4458
      %4764 = vmatprep.subr.mxu0 0.0
      %4765 = vmatpush1.msra.mxu0 %v4459
      %4766 = vmatprep.subr.mxu0 0.0
      %4767 = vmatpush1.msra.mxu0 %v4460
      %4768 = vmatprep.subr.mxu0 0.0
      %4769 = vmatpush1.msra.mxu0 %v4461
      %4770 = vmatprep.subr.mxu0 0.0
      %4771 = vmatpush1.msra.mxu0 %v4462
      %4772 = vmatprep.subr.mxu0 0.0
      %4773 = vmatpush1.msra.mxu0 %v4463
      %4774 = vmatprep.subr.mxu0 0.0
      %4775 = vmatpush1.msra.mxu0 %v4464
      %4776 = vmatprep.subr.mxu0 0.0
      %4777 = vmatpush1.msra.mxu0 %v4465
      %4778 = vmatprep.subr.mxu0 0.0
      %4779 = vmatpush1.msra.mxu0 %v4466
      %4780 = vmatprep.subr.mxu0 0.0
      %4781 = vmatpush1.msra.mxu0 %v4467
      %4782 = vmatprep.subr.mxu0 0.0
      %4783 = vmatpush1.msra.mxu0 %v4468
      %4784 = vmatprep.subr.mxu0 0.0
      %4785 = vmatpush1.msra.mxu0 %v4469
      %4786 = vmatprep.subr.mxu0 0.0
      %4787 = vmatpush1.msra.mxu0 %v4470
      %4788 = vmatprep.subr.mxu0 0.0
      %4789 = vmatpush1.msra.mxu0 %v4471
      %4790 = vmatprep.subr.mxu0 0.0
      %4791 = vmatpush1.msra.mxu0 %v4472
      %4792 = vmatprep.subr.mxu0 0.0
      %4793 = vmatpush1.msra.mxu0 %v4473
      %4794 = vmatprep.subr.mxu0 0.0
      %4795 = vmatpush1.msra.mxu0 %v4474
      %4796 = vmatprep.subr.mxu0 0.0
      %4797 = vmatpush1.msra.mxu0 %v4475
      %4798 = vmatprep.subr.mxu0 0.0
      %4799 = vmatpush1.msra.mxu0 %v4476
      %4800 = vmatprep.subr.mxu0 0.0
      %4801 = vmatpush1.msra.mxu0 %v4477
      %4802 = vmatprep.subr.mxu0 0.0
      %4803 = vmatpush1.msra.mxu0 %v4478
      %4804 = vmatprep.subr.mxu0 0.0
      %4805 = vmatpush1.msra.mxu0 %v4479
      %4806 = vmatprep.mubr.f32.mxu0 %v4734
      %4807 = vmatmul.mubr.f32.gmra.mrb[0].mxu0 %v4728
      %v4808 = vpop.f32.mrb[0].mxu0
      %v4809 = vadd.f32 %v4489, %v4808
      %v4810 = vpop.f32.mrb[0].mxu0
      %4811 = vmatprep.mubr.f32.mxu0 %v4735
      %4812 = vmatmul.mubr.f32.gmra.mrb[0].mxu0 %v4729
      %v4813 = vpop.f32.mrb[0].mxu0
      %v4814 = vadd.f32 %v4489, %v4813
      %v4815 = vpop.f32.mrb[0].mxu0
      %4816 = vdwg.mxu0
      %4817 = vmatprep.subr.mxu0 0.0
      %4818 = vmatpush1.msra.mxu0 %v4480
      %4819 = vmatprep.subr.mxu0 0.0
      %4820 = vmatpush1.msra.mxu0 %v4481
      %4821 = vmatprep.subr.mxu0 0.0
      %4822 = vmatpush1.msra.mxu0 %v4482
      %4823 = vmatprep.subr.mxu0 0.0
      %4824 = vmatpush1.msra.mxu0 %v4483
      %4825 = vmatprep.subr.mxu0 0.0
      %4826 = vmatpush1.msra.mxu0 0.0
      %4827 = vmatprep.subr.mxu0 0.0
      %4828 = vmatpush1.msra.mxu0 0.0
      %4829 = vmatprep.subr.mxu0 0.0
      %4830 = vmatpush1.msra.mxu0 0.0
      %4831 = vmatprep.subr.mxu0 0.0
      %4832 = vmatpush1.msra.mxu0 0.0
      %4833 = vmatprep.subr.mxu0 0.0
      %4834 = vmatpush1.msra.mxu0 0.0
      %4835 = vmatprep.subr.mxu0 0.0
      %4836 = vmatpush1.msra.mxu0 0.0
      %4837 = vmatprep.subr.mxu0 0.0
      %4838 = vmatpush1.msra.mxu0 0.0
      %4839 = vmatprep.subr.mxu0 0.0
      %4840 = vmatpush1.msra.mxu0 0.0
      %4841 = vmatprep.subr.mxu0 0.0
      %4842 = vmatpush1.msra.mxu0 0.0
      %4843 = vmatprep.subr.mxu0 0.0
      %4844 = vmatpush1.msra.mxu0 0.0
      %4845 = vmatprep.subr.mxu0 0.0
      %4846 = vmatpush1.msra.mxu0 0.0
      %4847 = vmatprep.subr.mxu0 0.0
      %4848 = vmatpush1.msra.mxu0 0.0
      %4849 = vmatprep.subr.mxu0 0.0
      %4850 = vmatpush1.msra.mxu0 0.0
      %4851 = vmatprep.subr.mxu0 0.0
      %4852 = vmatpush1.msra.mxu0 0.0
      %4853 = vmatprep.subr.mxu0 0.0
      %4854 = vmatpush1.msra.mxu0 0.0
      %4855 = vmatprep.subr.mxu0 0.0
      %4856 = vmatpush1.msra.mxu0 0.0
      %4857 = vmatprep.subr.mxu0 0.0
      %4858 = vmatpush1.msra.mxu0 0.0
      %4859 = vmatprep.subr.mxu0 0.0
      %4860 = vmatpush1.msra.mxu0 0.0
      %4861 = vmatprep.subr.mxu0 0.0
      %4862 = vmatpush1.msra.mxu0 0.0
      %4863 = vmatprep.subr.mxu0 0.0
      %4864 = vmatpush1.msra.mxu0 0.0
      %4865 = vmatprep.subr.mxu0 0.0
      %4866 = vmatpush1.msra.mxu0 0.0
      %4867 = vmatprep.subr.mxu0 0.0
      %4868 = vmatpush1.msra.mxu0 0.0
      %4869 = vmatprep.subr.mxu0 0.0
      %4870 = vmatpush1.msra.mxu0 0.0
      %4871 = vmatprep.subr.mxu0 0.0
      %4872 = vmatpush1.msra.mxu0 0.0
      %4873 = vmatprep.subr.mxu0 0.0
      %4874 = vmatpush1.msra.mxu0 0.0
      %4875 = vmatprep.subr.mxu0 0.0
      %4876 = vmatpush1.msra.mxu0 0.0
      %4877 = vmatprep.subr.mxu0 0.0
      %4878 = vmatpush1.msra.mxu0 0.0
      %4879 = vmatprep.subr.mxu0 0.0
      %4880 = vmatpush1.msra.mxu0 0.0
      %4881 = vmatprep.mubr.f32.mxu0 0.0
      %4882 = vmatmul.mubr.f32.gmra.mrb[0].mxu0 %v4737
      %v4883 = vpop.f32.mrb[0].mxu0
      %v4884 = vadd.f32 %v4809, %v4883
      %v4885 = vpop.f32.mrb[0].mxu0
      %4886 = vmatprep.mubr.f32.mxu0 0.0
      %4887 = vmatmul.mubr.f32.gmra.mrb[0].mxu0 %v4740
      %v4888 = vpop.f32.mrb[0].mxu0
      %v4889 = vadd.f32 %v4814, %v4888
      %v4890 = vpop.f32.mrb[0].mxu0
      %4891 = vdwg.mxu0
      %vm4892 = vcmp.ge.f32.partialorder %v4884, 0.0
      %vm4893 = vcmp.ge.f32.partialorder %v4889, 0.0
      %v4894 = vmul.f32 %v4884, 0.2
      %v4895 = vmul.f32 %v4889, 0.2
      %v4896 = vsel %vm4892, %v4884, %v4894
      %v4897 = vsel %vm4893, %v4889, %v4895
      %v4898 = vld [vmem:[%s7 + $0xa] sm:$0xff]
      %v4899 = vld [vmem:[%s7 + $0x12] sm:$0x3]
      %v4900 = vmul.f32 %v4896, %v4898
      %v4901 = vmul.f32 %v4897, %v4899
      %v4902 = vsel %vm331, %v4900, 0.0
      %v4903 = vsel %vm4658, %v4901, 0.0
      %v4904 = vadd.f32 %v4902, %v4903
      %v4905 = vrot.slane %v4904, 4
      %v4906 = vadd.f32 %v4904, %v4905
      %v4907 = vrot.slane %v4906, 2
      %v4908 = vadd.f32 %v4906, %v4907
      %v4909 = vrot.slane %v4908, 1
      %v4910 = vadd.f32 %v4908, %v4909
      %v4911 = vadd.f32 %v4667, %v4910
      %v4912 = vsel %vm331, %v4911, 0.0
      %4913 = vadd.xlane.f32.xlu0 %v4912
      %v4914 = vpop.xlane.xlu0 %4913
      %v4915 = vld [vmem:[#allocation6] sm:$0x1]
      %v4916 = vadd.f32 %v4914, %v4915
      %vm4917 = vcmask 0
      %4918 = vst.msk [vmem:[%s330] sm:$0x1] %vm4917, %v4916
      %p4919 = scmp.lt.s32.totalorder %s22, 1
      %s4920 = scalar_select %p4919, %s22, 1
      %s4921 = scalar_lea.vmem %s9, %s4920
      // Predicated region
      $region57: #{discriminator_forward.1} parent=55 // pred_check
        %p4922 = pneg %p234
      $region58: #{discriminator_forward.1} parent=55 // pred_check_branch
        %4924 = sbr.rel (%p4922) target = $region60
      $region59: #{discriminator_forward.1} parent=55 // pred_region
        _
      $region60: #{discriminator_forward.1} parent=55 // pred_fallthru
        _
    $region56: #{discriminator_forward.1} parent=5 // pred_fallthru
      _
    %p4925 = scmp.le.s32.totalorder 2, %s17
    // Predicated region
    $region61: #{discriminator_forward.1} parent=5 // pred_check
      %p4926 = pneg %p4925
    $region62: #{discriminator_forward.1} parent=5 // pred_check_branch
      %4928 = sbr.rel (%p4926) target = $region64
    $region63: #{discriminator_forward.1} parent=5 // pred_region
      %s4929 = ssub.s32 %s17, 2
      // Predicated region
      $region65: #{discriminator_forward.1} parent=63 // pred_check
        %p4930 = pneg %p240
      $region66: #{discriminator_forward.1} parent=63 // pred_check_branch
        %4932 = sbr.rel (%p4930) target = $region68
      $region67: #{discriminator_forward.1} parent=63 // pred_region
        %p4933 = scmp.lt.s32.totalorder %s23, 1
        %s4934 = scalar_select %p4933, %s23, 1
        %s4935 = scalar_lea.vmem %s9, %s4934
      $region68: #{discriminator_forward.1} parent=63 // pred_fallthru
        _
    $region64: #{discriminator_forward.1} parent=5 // pred_fallthru
      _
  $region6: #{discriminator_forward.1} parent=0 // loop_footer
    %s21 = sadd.s32 1, %s17
  $region7: #{discriminator_forward.1} parent=0 // loop_footer_branch
    %16 = sbr.rel target = $region3
  $region8: #{discriminator_forward.1} parent=0 // loop_exit
    _

</llo_original>
